<compile_context>
chip_gen: v6e
topology: v6e:2x2x1
jax: 0.10.0
libtpu: 0.0.40
codegen_flags: <defaults>
</compile_context>

<pallas_src>
import functools

import jax
import jax.numpy as jnp
from jax.experimental import pallas as pl
from jax.experimental.pallas import tpu as pltpu

LANE = 128


# ----------------------------- in-kernel math helpers -----------------------------

def _ln(x, g, b, eps):
    """fp32 LayerNorm (biased variance, matches torch LayerNorm)."""
    mu = jnp.mean(x, axis=-1, keepdims=True)
    xc = x - mu
    var = jnp.mean(xc * xc, axis=-1, keepdims=True)
    return xc * jax.lax.rsqrt(var + eps) * g + b


def _erf(x):
    """Abramowitz-Stegun 7.1.26 erf approximation (|err| < 1.5e-7): exp + VPU polynomial only."""
    a1, a2, a3, a4, a5 = 0.254829592, -0.284496736, 1.421413741, -1.453152027, 1.061405429
    p = 0.3275911
    sgn = jnp.where(x >= 0.0, 1.0, -1.0)
    ax = jnp.abs(x)
    t = 1.0 / (1.0 + p * ax)
    poly = ((((a5 * t + a4) * t + a3) * t + a2) * t + a1) * t
    return sgn * (1.0 - poly * jnp.exp(-ax * ax))


def _gelu_exact(x):
    """Exact (erf) GELU, matching torch nn.GELU() default numerics to ~1e-7."""
    return 0.5 * x * (1.0 + _erf(x * 0.7071067811865476))


def _attention(x_q, x_kv, wq, wkv, wo_h, bo, *, heads):
    """Multi-head attention.  Q from x_q, K/V from x_kv (all f32 activations).
      wq   : (D, D)        bf16, softmax scale pre-folded
      wkv  : (Dkv, 2D)     bf16, K and V projections fused into one MXU pass
      wo_h : (heads, Dh, D) bf16, out-projection pre-split per head -> head merge is folded into
             the out-proj accumulation (no lane concatenate of sub-128 head slices)
      bo   : (1, D)        f32
    """
    D = wq.shape[1]
    Dh = D // heads
    q = jnp.dot(x_q.astype(jnp.bfloat16), wq, preferred_element_type=jnp.float32)      # (Nq, D)
    kv = jnp.dot(x_kv.astype(jnp.bfloat16), wkv, preferred_element_type=jnp.float32)   # (Nk, 2D)
    k = kv[:, :D]
    v = kv[:, D:]

    # TODO(synk): at production shapes reshape Q/K/V to a head-major layout once and flash-tile over
    # KV instead of per-head lane slices, to keep the MXU contraction dim full.
    out = None
    for h in range(heads):
        sl = slice(h * Dh, (h + 1) * Dh)
        qh = q[:, sl].astype(jnp.bfloat16)
        kh = k[:, sl].astype(jnp.bfloat16)
        vh = v[:, sl].astype(jnp.bfloat16)
        # scores: contract the Dh axis of both operands -- no K^T materialized.
        s = jax.lax.dot_general(qh, kh, (((1,), (1,)), ((), ())),
                                preferred_element_type=jnp.float32)                    # (Nq, Nk)
        m = jnp.max(s, axis=-1, keepdims=True)
        p = jnp.exp(s - m)
        l = jnp.sum(p, axis=-1, keepdims=True)
        oh = jnp.dot(p.astype(jnp.bfloat16), vh, preferred_element_type=jnp.float32)   # (Nq, Dh)
        oh = oh * pl.reciprocal(l, approx=True)                                        # EUP divide
        contrib = jnp.dot(oh.astype(jnp.bfloat16), wo_h[h],
                          preferred_element_type=jnp.float32)                          # (Nq, D)
        out = contrib if out is None else out + contrib
    return out + bo


def _ffn(x, w1, b1, w2, b2):
    hid = jnp.dot(x.astype(jnp.bfloat16), w1, preferred_element_type=jnp.float32) + b1
    hid = _gelu_exact(hid)
    return jnp.dot(hid.astype(jnp.bfloat16), w2, preferred_element_type=jnp.float32) + b2


# ------------------------------- the fused encoder kernel -------------------------------

def _encoder_kernel(s1_ref, s2_ref,
                    wq_in_ref, bq_in_ref, wkv_in_ref, bkv_in_ref,
                    c_ln_ref, c_wq_ref, c_wkv_ref, c_wo_ref, c_bo_ref,
                    c_w1_ref, c_b1_ref, c_w2_ref, c_b2_ref,
                    s_ln_ref, s_wq_ref, s_wkv_ref, s_wo_ref, s_bo_ref,
                    s_w1_ref, s_b1_ref, s_w2_ref, s_b2_ref,
                    out_ln_ref, o_ref, *, heads, eps, n_self):
    # ---- input projections (f32; channel dim already lane-padded with zeros) ----
    h = jnp.dot(s1_ref[0], wq_in_ref[...], preferred_element_type=jnp.float32) + bq_in_ref[...]
    enc = jnp.dot(s2_ref[0], wkv_in_ref[...], preferred_element_type=jnp.float32) + bkv_in_ref[...]

    # ---- block 0: cross-attention DiT block ----
    c_ln = c_ln_ref[...]
    nh = _ln(h, c_ln[0:1], c_ln[1:2], eps)            # norm on the query path (norm2)
    ctx = _ln(enc, c_ln[2:3], c_ln[3:4], eps)         # cross_attention_norm = 'layer_norm'
    h = h + _attention(nh, ctx, c_wq_ref[...], c_wkv_ref[...], c_wo_ref[...], c_bo_ref[...],
                       heads=heads)
    nh = _ln(h, c_ln[4:5], c_ln[5:6], eps)            # norm3
    h = h + _ffn(nh, c_w1_ref[...], c_b1_ref[...], c_w2_ref[...], c_b2_ref[...])

    # ---- blocks 1..n_self: self-attention DiT blocks (static unroll over stacked weights) ----
    # TODO(synk): for many / large layers switch to a layer grid axis or fori_loop + VMEM tiling.
    for l in range(n_self):
        lnp = s_ln_ref[l]
        nh = _ln(h, lnp[0:1], lnp[1:2], eps)          # norm1
        h = h + _attention(nh, nh, s_wq_ref[l], s_wkv_ref[l], s_wo_ref[l], s_bo_ref[l],
                           heads=heads)
        nh = _ln(h, lnp[2:3], lnp[3:4], eps)          # norm3
        h = h + _ffn(nh, s_w1_ref[l], s_b1_ref[l], s_w2_ref[l], s_b2_ref[l])

    # ---- final LayerNorm ----
    ol = out_ln_ref[...]
    o_ref[0] = _ln(h, ol[0:1], ol[1:2], eps)


def _const_spec(shape):
    """Full-array block whose index_map is constant -> block stays resident across grid steps."""
    n = len(shape)
    def idx(i):
        return (0,) * n
    return pl.BlockSpec(shape, idx)


# --------------------------------- forward (single pallas_call) ---------------------------------

def cross_attention_encoder_forward(params, sample_1, sample_2, *, heads, eps=1e-5):
    B, Nq, Cq = sample_1.shape
    _, Nk, Ck = sample_2.shape
    D = params["q_proj_in"]["w"].shape[1]
    assert D % heads == 0
    Dh = D // heads
    scale = 1.0 / float(Dh) ** 0.5

    blocks = params["blocks"]
    cross_p, self_ps = blocks[0], blocks[1:]
    n_self = len(self_ps)
    assert n_self >= 1
    H = cross_p["ff"]["w1"].shape[1]

    # ---- host-side packing (constant-folded under jit) ----
    # zero-pad the tiny input-channel dims to a full 128-lane tile (mathematically exact).
    Cq_p = pl.cdiv(Cq, LANE) * LANE
    Ck_p = pl.cdiv(Ck, LANE) * LANE
    s1 = jnp.pad(sample_1, ((0, 0), (0, 0), (0, Cq_p - Cq)))
    s2 = jnp.pad(sample_2, ((0, 0), (0, 0), (0, Ck_p - Ck)))
    wq_in = jnp.pad(params["q_proj_in"]["w"], ((0, Cq_p - Cq), (0, 0)))
    bq_in = params["q_proj_in"]["b"].reshape(1, D)
    wkv_in = jnp.pad(params["kv_proj_in"]["w"], ((0, Ck_p - Ck), (0, 0)))
    bkv_in = params["kv_proj_in"]["b"].reshape(1, D)

    def attn_w(a):
        wq = (a["to_q"]["w"] * scale).astype(jnp.bfloat16)                 # fold softmax scale
        wkv = jnp.concatenate([a["to_k"]["w"], a["to_v"]["w"]], axis=1).astype(jnp.bfloat16)
        wo = a["to_out"]["w"].reshape(heads, Dh, D).astype(jnp.bfloat16)   # head-split out-proj
        bo = a["to_out"]["b"].reshape(1, D)
        return wq, wkv, wo, bo

    c_wq, c_wkv, c_wo, c_bo = attn_w(cross_p["attn2"])
    c_ln = jnp.stack([cross_p["norm2"]["g"], cross_p["norm2"]["b"],
                      cross_p["norm_cross"]["g"], cross_p["norm_cross"]["b"],
                      cross_p["norm3"]["g"], cross_p["norm3"]["b"]])        # (6, D)
    c_w1 = cross_p["ff"]["w1"].astype(jnp.bfloat16)
    c_b1 = cross_p["ff"]["b1"].reshape(1, H)
    c_w2 = cross_p["ff"]["w2"].astype(jnp.bfloat16)
    c_b2 = cross_p["ff"]["b2"].reshape(1, D)

    s_attn = [attn_w(b["attn1"]) for b in self_ps]
    s_wq = jnp.stack([a[0] for a in s_attn])                               # (L, D, D)       bf16
    s_wkv = jnp.stack([a[1] for a in s_attn])                              # (L, D, 2D)      bf16
    s_wo = jnp.stack([a[2] for a in s_attn])                               # (L, heads,Dh,D) bf16
    s_bo = jnp.stack([a[3] for a in s_attn])                               # (L, 1, D)       f32
    s_ln = jnp.stack([jnp.stack([b["norm1"]["g"], b["norm1"]["b"],
                                 b["norm3"]["g"], b["norm3"]["b"]]) for b in self_ps])  # (L,4,D)
    s_w1 = jnp.stack([b["ff"]["w1"] for b in self_ps]).astype(jnp.bfloat16)   # (L, D, H)
    s_b1 = jnp.stack([b["ff"]["b1"].reshape(1, H) for b in self_ps])          # (L, 1, H)
    s_w2 = jnp.stack([b["ff"]["w2"] for b in self_ps]).astype(jnp.bfloat16)   # (L, H, D)
    s_b2 = jnp.stack([b["ff"]["b2"].reshape(1, D) for b in self_ps])          # (L, 1, D)

    out_ln = jnp.stack([params["norm_out"]["g"], params["norm_out"]["b"]])    # (2, D)

    weights = (wq_in, bq_in, wkv_in, bkv_in,
               c_ln, c_wq, c_wkv, c_wo, c_bo, c_w1, c_b1, c_w2, c_b2,
               s_ln, s_wq, s_wkv, s_wo, s_bo, s_w1, s_b1, s_w2, s_b2,
               out_ln)
    weight_specs = [_const_spec(w.shape) for w in weights]

    return pl.pallas_call(
        functools.partial(_encoder_kernel, heads=heads, eps=eps, n_self=n_self),
        out_shape=jax.ShapeDtypeStruct((B, Nq, D), jnp.float32),
        grid=(B,),
        in_specs=[pl.BlockSpec((1, Nq, Cq_p), lambda i: (i, 0, 0)),
                  pl.BlockSpec((1, Nk, Ck_p), lambda i: (i, 0, 0))] + weight_specs,
        out_specs=pl.BlockSpec((1, Nq, D), lambda i: (i, 0, 0)),
        compiler_params=pltpu.CompilerParams(
            dimension_semantics=("parallel",),          # both v7x TensorCores get a batch item
            vmem_limit_bytes=32 * 1024 * 1024),
    )(s1, s2, *weights)


# ------------------------------ deterministic init ------------------------------

def init_linear(key, din, dout, bias=True, scale=0.02):
    kw, kb = jax.random.split(key)
    p = {"w": jax.random.normal(kw, (din, dout), jnp.float32) * scale}
    if bias:
        p["b"] = jax.random.normal(kb, (dout,), jnp.float32) * scale
    return p


def init_layernorm(dim):
    return {"g": jnp.ones((dim,), jnp.float32), "b": jnp.zeros((dim,), jnp.float32)}


def init_attention(key, dim, cross_dim):
    k1, k2, k3, k4 = jax.random.split(key, 4)
    return {
        "to_q": init_linear(k1, dim, dim, bias=False),        # qkv_bias=False
        "to_k": init_linear(k2, cross_dim, dim, bias=False),
        "to_v": init_linear(k3, cross_dim, dim, bias=False),
        "to_out": init_linear(k4, dim, dim, bias=True),
    }


def init_params(key, q_in=3, kv_in=3, dim=32, num_layers=2):
    state = {"key": key}

    def nk():
        state["key"], sub = jax.random.split(state["key"])
        return sub

    ff_hidden = 4 * dim

    def init_ff():
        l1 = init_linear(nk(), dim, ff_hidden)
        l2 = init_linear(nk(), ff_hidden, dim)
        return {"w1": l1["w"], "b1": l1["b"], "w2": l2["w"], "b2": l2["b"]}

    params = {
        "q_proj_in": init_linear(nk(), q_in, dim),
        "kv_proj_in": init_linear(nk(), kv_in, dim),
        "blocks": [],
        "norm_out": init_layernorm(dim),
    }
    # block 0: cross-attention only
    params["blocks"].append({
        "norm2": init_layernorm(dim),
        "norm_cross": init_layernorm(dim),
        "attn2": init_attention(nk(), dim, dim),
        "norm3": init_layernorm(dim),
        "ff": init_ff(),
    })
    # blocks 1..num_layers: self-attention only
    for _ in range(num_layers):
        params["blocks"].append({
            "norm1": init_layernorm(dim),
            "attn1": init_attention(nk(), dim, dim),
            "norm3": init_layernorm(dim),
            "ff": init_ff(),
        })
    return params


# ------------------------------ pure-JAX reference (sanity check) ------------------------------

def _reference_forward(params, sample_1, sample_2, *, heads, eps=1e-5):
    def ln(x, g, b):
        mu = x.mean(-1, keepdims=True)
        xc = x - mu
        var = (xc * xc).mean(-1, keepdims=True)
        return xc / jnp.sqrt(var + eps) * g + b

    def attn(xq, xkv, a):
        D = a["to_q"]["w"].shape[1]
        Dh = D // heads
        q = xq @ a["to_q"]["w"]
        k = xkv @ a["to_k"]["w"]
        v = xkv @ a["to_v"]["w"]
        B, Nq, _ = q.shape
        Nk = k.shape[1]
        q = q.reshape(B, Nq, heads, Dh).transpose(0, 2, 1, 3)
        k = k.reshape(B, Nk, heads, Dh).transpose(0, 2, 1, 3)
        v = v.reshape(B, Nk, heads, Dh).transpose(0, 2, 1, 3)
        s = jnp.einsum("bhqd,bhkd->bhqk", q, k) / jnp.sqrt(jnp.float32(Dh))
        p = jax.nn.softmax(s, axis=-1)
        o = jnp.einsum("bhqk,bhkd->bhqd", p, v).transpose(0, 2, 1, 3).reshape(B, Nq, D)
        return o @ a["to_out"]["w"] + a["to_out"]["b"]

    def ff(x, f):
        hid = jax.nn.gelu(x @ f["w1"] + f["b1"], approximate=False)
        return hid @ f["w2"] + f["b2"]

    h = sample_1 @ params["q_proj_in"]["w"] + params["q_proj_in"]["b"]
    enc = sample_2 @ params["kv_proj_in"]["w"] + params["kv_proj_in"]["b"]
    b0 = params["blocks"][0]
    h = h + attn(ln(h, b0["norm2"]["g"], b0["norm2"]["b"]),
                 ln(enc, b0["norm_cross"]["g"], b0["norm_cross"]["b"]), b0["attn2"])
    h = h + ff(ln(h, b0["norm3"]["g"], b0["norm3"]["b"]), b0["ff"])
    for b in params["blocks"][1:]:
        n = ln(h, b["norm1"]["g"], b["norm1"]["b"])
        h = h + attn(n, n, b["attn1"])
        h = h + ff(ln(h, b["norm3"]["g"], b["norm3"]["b"]), b["ff"])
    return ln(h, params["norm_out"]["g"], params["norm_out"]["b"])


# ----------------------------------- main -----------------------------------

if __name__ == "__main__":
    key = jax.random.PRNGKey(0)
    kp, k1, k2 = jax.random.split(key, 3)

    B, Nq, Nkv = 2, 8, 16
    q_in, kv_in, dim, heads, num_layers = 3, 3, 32, 4, 2

    params = init_params(kp, q_in=q_in, kv_in=kv_in, dim=dim, num_layers=num_layers)
    sample_1 = jax.random.normal(k1, (B, Nq, q_in), jnp.float32)
    sample_2 = jax.random.normal(k2, (B, Nkv, kv_in), jnp.float32)

    fwd = jax.jit(functools.partial(cross_attention_encoder_forward, heads=heads))
    out = jax.block_until_ready(fwd(params, sample_1, sample_2))

    ref = jax.jit(functools.partial(_reference_forward, heads=heads))(params, sample_1, sample_2)
    max_err = float(jnp.max(jnp.abs(out - ref)))

    assert out.shape == (B, Nq, dim)
    assert bool(jnp.all(jnp.isfinite(out)))
    # bf16 MXU inputs + approx reciprocal -> loose tolerance; catches structural bugs only.
    assert max_err < 0.15, max_err
    print("KERNEL_OK")
</pallas_src>

<mosaic_0001>
module attributes {stable_mosaic.version = 11 : i64} {
  func.func @_encoder_kernel(%arg0: i32, %arg1: memref<1x8x128xf32, #tpu.memory_space<vmem>>, %arg2: memref<1x16x128xf32, #tpu.memory_space<vmem>>, %arg3: memref<128x32xf32, #tpu.memory_space<vmem>>, %arg4: memref<1x32xf32, #tpu.memory_space<vmem>>, %arg5: memref<128x32xf32, #tpu.memory_space<vmem>>, %arg6: memref<1x32xf32, #tpu.memory_space<vmem>>, %arg7: memref<6x32xf32, #tpu.memory_space<vmem>>, %arg8: memref<32x32xbf16, #tpu.memory_space<vmem>>, %arg9: memref<32x64xbf16, #tpu.memory_space<vmem>>, %arg10: memref<4x8x32xbf16, #tpu.memory_space<vmem>>, %arg11: memref<1x32xf32, #tpu.memory_space<vmem>>, %arg12: memref<32x128xbf16, #tpu.memory_space<vmem>>, %arg13: memref<1x128xf32, #tpu.memory_space<vmem>>, %arg14: memref<128x32xbf16, #tpu.memory_space<vmem>>, %arg15: memref<1x32xf32, #tpu.memory_space<vmem>>, %arg16: memref<2x4x32xf32, #tpu.memory_space<vmem>>, %arg17: memref<2x32x32xbf16, #tpu.memory_space<vmem>>, %arg18: memref<2x32x64xbf16, #tpu.memory_space<vmem>>, %arg19: memref<2x4x8x32xbf16, #tpu.memory_space<vmem>>, %arg20: memref<2x1x32xf32, #tpu.memory_space<vmem>>, %arg21: memref<2x32x128xbf16, #tpu.memory_space<vmem>>, %arg22: memref<2x1x128xf32, #tpu.memory_space<vmem>>, %arg23: memref<2x128x32xbf16, #tpu.memory_space<vmem>>, %arg24: memref<2x1x32xf32, #tpu.memory_space<vmem>>, %arg25: memref<2x32xf32, #tpu.memory_space<vmem>>, %arg26: memref<1x8x32xf32, #tpu.memory_space<vmem>>) attributes {dimension_semantics = [#tpu.dimension_semantics<parallel>], iteration_bounds = array<i64: 2>, scalar_prefetch = 0 : i64, scratch_operands = 0 : i64, tpu.core_type = #tpu.core_type<tc>, window_params = [{transform_indices = @transform_0, window_bounds = array<i64: 1, 8, 128>}, {transform_indices = @transform_1, window_bounds = array<i64: 1, 16, 128>}, {pipeline_mode = #tpu.pipeline_mode<synchronous>, transform_indices = @transform_2, window_bounds = array<i64: 128, 32>}, {pipeline_mode = #tpu.pipeline_mode<synchronous>, transform_indices = @transform_3, window_bounds = array<i64: 1, 32>}, {pipeline_mode = #tpu.pipeline_mode<synchronous>, transform_indices = @transform_4, window_bounds = array<i64: 128, 32>}, {pipeline_mode = #tpu.pipeline_mode<synchronous>, transform_indices = @transform_5, window_bounds = array<i64: 1, 32>}, {pipeline_mode = #tpu.pipeline_mode<synchronous>, transform_indices = @transform_6, window_bounds = array<i64: 6, 32>}, {pipeline_mode = #tpu.pipeline_mode<synchronous>, transform_indices = @transform_7, window_bounds = array<i64: 32, 32>}, {pipeline_mode = #tpu.pipeline_mode<synchronous>, transform_indices = @transform_8, window_bounds = array<i64: 32, 64>}, {pipeline_mode = #tpu.pipeline_mode<synchronous>, transform_indices = @transform_9, window_bounds = array<i64: 4, 8, 32>}, {pipeline_mode = #tpu.pipeline_mode<synchronous>, transform_indices = @transform_10, window_bounds = array<i64: 1, 32>}, {pipeline_mode = #tpu.pipeline_mode<synchronous>, transform_indices = @transform_11, window_bounds = array<i64: 32, 128>}, {pipeline_mode = #tpu.pipeline_mode<synchronous>, transform_indices = @transform_12, window_bounds = array<i64: 1, 128>}, {pipeline_mode = #tpu.pipeline_mode<synchronous>, transform_indices = @transform_13, window_bounds = array<i64: 128, 32>}, {pipeline_mode = #tpu.pipeline_mode<synchronous>, transform_indices = @transform_14, window_bounds = array<i64: 1, 32>}, {pipeline_mode = #tpu.pipeline_mode<synchronous>, transform_indices = @transform_15, window_bounds = array<i64: 2, 4, 32>}, {pipeline_mode = #tpu.pipeline_mode<synchronous>, transform_indices = @transform_16, window_bounds = array<i64: 2, 32, 32>}, {pipeline_mode = #tpu.pipeline_mode<synchronous>, transform_indices = @transform_17, window_bounds = array<i64: 2, 32, 64>}, {pipeline_mode = #tpu.pipeline_mode<synchronous>, transform_indices = @transform_18, window_bounds = array<i64: 2, 4, 8, 32>}, {pipeline_mode = #tpu.pipeline_mode<synchronous>, transform_indices = @transform_19, window_bounds = array<i64: 2, 1, 32>}, {pipeline_mode = #tpu.pipeline_mode<synchronous>, transform_indices = @transform_20, window_bounds = array<i64: 2, 32, 128>}, {pipeline_mode = #tpu.pipeline_mode<synchronous>, transform_indices = @transform_21, window_bounds = array<i64: 2, 1, 128>}, {pipeline_mode = #tpu.pipeline_mode<synchronous>, transform_indices = @transform_22, window_bounds = array<i64: 2, 128, 32>}, {pipeline_mode = #tpu.pipeline_mode<synchronous>, transform_indices = @transform_23, window_bounds = array<i64: 2, 1, 32>}, {pipeline_mode = #tpu.pipeline_mode<synchronous>, transform_indices = @transform_24, window_bounds = array<i64: 2, 32>}, {transform_indices = @transform_25, window_bounds = array<i64: 1, 8, 32>}]} {
    %c0 = arith.constant 0 : index
    %c0_0 = arith.constant 0 : index
    %c0_1 = arith.constant 0 : index
    %0 = vector.load %arg1[%c0, %c0_0, %c0_1] : memref<1x8x128xf32, #tpu.memory_space<vmem>>, vector<1x8x128xf32>
    %1 = vector.shape_cast %0 : vector<1x8x128xf32> to vector<8x128xf32>
    %c0_2 = arith.constant 0 : index
    %c0_3 = arith.constant 0 : index
    %2 = vector.load %arg3[%c0_2, %c0_3] : memref<128x32xf32, #tpu.memory_space<vmem>>, vector<128x32xf32>
    %cst = arith.constant dense<0.000000e+00> : vector<8x32xf32>
    %3 = tpu.matmul %1, %2, %cst {dimension_numbers = #tpu.dot_dimension_numbers<[1], [0], [0], [1], [0, 0, 1, 1], [], []>} : vector<8x128xf32>, vector<128x32xf32>, vector<8x32xf32> -> vector<8x32xf32>
    %c0_4 = arith.constant 0 : index
    %c0_5 = arith.constant 0 : index
    %4 = vector.load %arg4[%c0_4, %c0_5] : memref<1x32xf32, #tpu.memory_space<vmem>>, vector<1x32xf32>
    %5 = vector.broadcast %4 : vector<1x32xf32> to vector<8x32xf32>
    %6 = arith.addf %3, %5 : vector<8x32xf32>
    %c0_6 = arith.constant 0 : index
    %c0_7 = arith.constant 0 : index
    %c0_8 = arith.constant 0 : index
    %7 = vector.load %arg2[%c0_6, %c0_7, %c0_8] : memref<1x16x128xf32, #tpu.memory_space<vmem>>, vector<1x16x128xf32>
    %8 = vector.shape_cast %7 : vector<1x16x128xf32> to vector<16x128xf32>
    %c0_9 = arith.constant 0 : index
    %c0_10 = arith.constant 0 : index
    %9 = vector.load %arg5[%c0_9, %c0_10] : memref<128x32xf32, #tpu.memory_space<vmem>>, vector<128x32xf32>
    %cst_11 = arith.constant dense<0.000000e+00> : vector<16x32xf32>
    %10 = tpu.matmul %8, %9, %cst_11 {dimension_numbers = #tpu.dot_dimension_numbers<[1], [0], [0], [1], [0, 0, 1, 1], [], []>} : vector<16x128xf32>, vector<128x32xf32>, vector<16x32xf32> -> vector<16x32xf32>
    %c0_12 = arith.constant 0 : index
    %c0_13 = arith.constant 0 : index
    %11 = vector.load %arg6[%c0_12, %c0_13] : memref<1x32xf32, #tpu.memory_space<vmem>>, vector<1x32xf32>
    %12 = vector.broadcast %11 : vector<1x32xf32> to vector<16x32xf32>
    %13 = arith.addf %10, %12 : vector<16x32xf32>
    %c0_14 = arith.constant 0 : index
    %c0_15 = arith.constant 0 : index
    %14 = vector.load %arg7[%c0_14, %c0_15] : memref<6x32xf32, #tpu.memory_space<vmem>>, vector<6x32xf32>
    %15 = vector.extract_strided_slice %14 {offsets = [0, 0], sizes = [1, 32], strides = [1, 1]} : vector<6x32xf32> to vector<1x32xf32>
    %16 = vector.extract_strided_slice %14 {offsets = [1, 0], sizes = [1, 32], strides = [1, 1]} : vector<6x32xf32> to vector<1x32xf32>
    %cst_16 = arith.constant dense<0.000000e+00> : vector<8xf32>
    %17 = vector.multi_reduction <add>, %6, %cst_16 [1] : vector<8x32xf32> to vector<8xf32>
    %18 = vector.shape_cast %17 : vector<8xf32> to vector<8x1xf32>
    %cst_17 = arith.constant 3.200000e+01 : f32
    %19 = vector.broadcast %cst_17 : f32 to vector<8x1xf32>
    %20 = arith.divf %18, %19 : vector<8x1xf32>
    %21 = vector.broadcast %20 : vector<8x1xf32> to vector<8x32xf32>
    %22 = arith.subf %6, %21 : vector<8x32xf32>
    %23 = arith.mulf %22, %22 : vector<8x32xf32>
    %cst_18 = arith.constant dense<0.000000e+00> : vector<8xf32>
    %24 = vector.multi_reduction <add>, %23, %cst_18 [1] : vector<8x32xf32> to vector<8xf32>
    %25 = vector.shape_cast %24 : vector<8xf32> to vector<8x1xf32>
    %cst_19 = arith.constant 3.200000e+01 : f32
    %26 = vector.broadcast %cst_19 : f32 to vector<8x1xf32>
    %27 = arith.divf %25, %26 : vector<8x1xf32>
    %cst_20 = arith.constant 9.99999974E-6 : f32
    %28 = vector.broadcast %cst_20 : f32 to vector<8x1xf32>
    %29 = arith.addf %27, %28 : vector<8x1xf32>
    %30 = math.rsqrt %29 : vector<8x1xf32>
    %31 = vector.broadcast %30 : vector<8x1xf32> to vector<8x32xf32>
    %32 = arith.mulf %22, %31 : vector<8x32xf32>
    %33 = vector.broadcast %15 : vector<1x32xf32> to vector<8x32xf32>
    %34 = arith.mulf %32, %33 : vector<8x32xf32>
    %35 = vector.broadcast %16 : vector<1x32xf32> to vector<8x32xf32>
    %36 = arith.addf %34, %35 : vector<8x32xf32>
    %37 = vector.extract_strided_slice %14 {offsets = [2, 0], sizes = [1, 32], strides = [1, 1]} : vector<6x32xf32> to vector<1x32xf32>
    %38 = vector.extract_strided_slice %14 {offsets = [3, 0], sizes = [1, 32], strides = [1, 1]} : vector<6x32xf32> to vector<1x32xf32>
    %cst_21 = arith.constant dense<0.000000e+00> : vector<16xf32>
    %39 = vector.multi_reduction <add>, %13, %cst_21 [1] : vector<16x32xf32> to vector<16xf32>
    %40 = vector.shape_cast %39 : vector<16xf32> to vector<16x1xf32>
    %cst_22 = arith.constant 3.200000e+01 : f32
    %41 = vector.broadcast %cst_22 : f32 to vector<16x1xf32>
    %42 = arith.divf %40, %41 : vector<16x1xf32>
    %43 = vector.broadcast %42 : vector<16x1xf32> to vector<16x32xf32>
    %44 = arith.subf %13, %43 : vector<16x32xf32>
    %45 = arith.mulf %44, %44 : vector<16x32xf32>
    %cst_23 = arith.constant dense<0.000000e+00> : vector<16xf32>
    %46 = vector.multi_reduction <add>, %45, %cst_23 [1] : vector<16x32xf32> to vector<16xf32>
    %47 = vector.shape_cast %46 : vector<16xf32> to vector<16x1xf32>
    %cst_24 = arith.constant 3.200000e+01 : f32
    %48 = vector.broadcast %cst_24 : f32 to vector<16x1xf32>
    %49 = arith.divf %47, %48 : vector<16x1xf32>
    %cst_25 = arith.constant 9.99999974E-6 : f32
    %50 = vector.broadcast %cst_25 : f32 to vector<16x1xf32>
    %51 = arith.addf %49, %50 : vector<16x1xf32>
    %52 = math.rsqrt %51 : vector<16x1xf32>
    %53 = vector.broadcast %52 : vector<16x1xf32> to vector<16x32xf32>
    %54 = arith.mulf %44, %53 : vector<16x32xf32>
    %55 = vector.broadcast %37 : vector<1x32xf32> to vector<16x32xf32>
    %56 = arith.mulf %54, %55 : vector<16x32xf32>
    %57 = vector.broadcast %38 : vector<1x32xf32> to vector<16x32xf32>
    %58 = arith.addf %56, %57 : vector<16x32xf32>
    %c0_26 = arith.constant 0 : index
    %c0_27 = arith.constant 0 : index
    %59 = vector.load %arg8[%c0_26, %c0_27] : memref<32x32xbf16, #tpu.memory_space<vmem>>, vector<32x32xbf16>
    %c0_28 = arith.constant 0 : index
    %c0_29 = arith.constant 0 : index
    %60 = vector.load %arg9[%c0_28, %c0_29] : memref<32x64xbf16, #tpu.memory_space<vmem>>, vector<32x64xbf16>
    %c0_30 = arith.constant 0 : index
    %c0_31 = arith.constant 0 : index
    %c0_32 = arith.constant 0 : index
    %61 = vector.load %arg10[%c0_30, %c0_31, %c0_32] : memref<4x8x32xbf16, #tpu.memory_space<vmem>>, vector<4x8x32xbf16>
    %c0_33 = arith.constant 0 : index
    %c0_34 = arith.constant 0 : index
    %62 = vector.load %arg11[%c0_33, %c0_34] : memref<1x32xf32, #tpu.memory_space<vmem>>, vector<1x32xf32>
    %63 = arith.truncf %36 : vector<8x32xf32> to vector<8x32xbf16>
    %cst_35 = arith.constant dense<0.000000e+00> : vector<8x32xf32>
    %64 = tpu.matmul %63, %59, %cst_35 {dimension_numbers = #tpu.dot_dimension_numbers<[1], [0], [0], [1], [0, 0, 1, 1], [], []>} : vector<8x32xbf16>, vector<32x32xbf16>, vector<8x32xf32> -> vector<8x32xf32>
    %65 = arith.truncf %58 : vector<16x32xf32> to vector<16x32xbf16>
    %cst_36 = arith.constant dense<0.000000e+00> : vector<16x64xf32>
    %66 = tpu.matmul %65, %60, %cst_36 {dimension_numbers = #tpu.dot_dimension_numbers<[1], [0], [0], [1], [0, 0, 1, 1], [], []>} : vector<16x32xbf16>, vector<32x64xbf16>, vector<16x64xf32> -> vector<16x64xf32>
    %67 = vector.extract_strided_slice %66 {offsets = [0, 0], sizes = [16, 32], strides = [1, 1]} : vector<16x64xf32> to vector<16x32xf32>
    %68 = vector.extract_strided_slice %66 {offsets = [0, 32], sizes = [16, 32], strides = [1, 1]} : vector<16x64xf32> to vector<16x32xf32>
    %69 = vector.extract_strided_slice %64 {offsets = [0, 0], sizes = [8, 8], strides = [1, 1]} : vector<8x32xf32> to vector<8x8xf32>
    %70 = arith.truncf %69 : vector<8x8xf32> to vector<8x8xbf16>
    %71 = vector.extract_strided_slice %67 {offsets = [0, 0], sizes = [16, 8], strides = [1, 1]} : vector<16x32xf32> to vector<16x8xf32>
    %72 = arith.truncf %71 : vector<16x8xf32> to vector<16x8xbf16>
    %73 = vector.extract_strided_slice %68 {offsets = [0, 0], sizes = [16, 8], strides = [1, 1]} : vector<16x32xf32> to vector<16x8xf32>
    %74 = arith.truncf %73 : vector<16x8xf32> to vector<16x8xbf16>
    %cst_37 = arith.constant dense<0.000000e+00> : vector<8x16xf32>
    %75 = tpu.matmul %70, %72, %cst_37 {dimension_numbers = #tpu.dot_dimension_numbers<[1], [1], [0], [0], [0, 0, 1, 0], [], []>} : vector<8x8xbf16>, vector<16x8xbf16>, vector<8x16xf32> -> vector<8x16xf32>
    %cst_38 = arith.constant dense<0xFF800000> : vector<8xf32>
    %76 = vector.multi_reduction <maximumf>, %75, %cst_38 [1] : vector<8x16xf32> to vector<8xf32>
    %77 = vector.shape_cast %76 : vector<8xf32> to vector<8x1xf32>
    %78 = vector.broadcast %77 : vector<8x1xf32> to vector<8x16xf32>
    %79 = arith.subf %75, %78 : vector<8x16xf32>
    %80 = math.exp %79 : vector<8x16xf32>
    %cst_39 = arith.constant dense<0.000000e+00> : vector<8xf32>
    %81 = vector.multi_reduction <add>, %80, %cst_39 [1] : vector<8x16xf32> to vector<8xf32>
    %82 = vector.shape_cast %81 : vector<8xf32> to vector<8x1xf32>
    %83 = arith.truncf %80 : vector<8x16xf32> to vector<8x16xbf16>
    %cst_40 = arith.constant dense<0.000000e+00> : vector<8x8xf32>
    %84 = tpu.matmul %83, %74, %cst_40 {dimension_numbers = #tpu.dot_dimension_numbers<[1], [0], [0], [1], [0, 0, 1, 1], [], []>} : vector<8x16xbf16>, vector<16x8xbf16>, vector<8x8xf32> -> vector<8x8xf32>
    %85 = tpu.reciprocal %82 {approx = true} : vector<8x1xf32> -> vector<8x1xf32>
    %86 = vector.broadcast %85 : vector<8x1xf32> to vector<8x8xf32>
    %87 = arith.mulf %84, %86 : vector<8x8xf32>
    %88 = arith.truncf %87 : vector<8x8xf32> to vector<8x8xbf16>
    %89 = vector.extract_strided_slice %61 {offsets = [0, 0, 0], sizes = [1, 8, 32], strides = [1, 1, 1]} : vector<4x8x32xbf16> to vector<1x8x32xbf16>
    %90 = vector.shape_cast %89 : vector<1x8x32xbf16> to vector<8x32xbf16>
    %cst_41 = arith.constant dense<0.000000e+00> : vector<8x32xf32>
    %91 = tpu.matmul %88, %90, %cst_41 {dimension_numbers = #tpu.dot_dimension_numbers<[1], [0], [0], [1], [0, 0, 1, 1], [], []>} : vector<8x8xbf16>, vector<8x32xbf16>, vector<8x32xf32> -> vector<8x32xf32>
    %92 = vector.extract_strided_slice %64 {offsets = [0, 8], sizes = [8, 8], strides = [1, 1]} : vector<8x32xf32> to vector<8x8xf32>
    %93 = arith.truncf %92 : vector<8x8xf32> to vector<8x8xbf16>
    %94 = vector.extract_strided_slice %67 {offsets = [0, 8], sizes = [16, 8], strides = [1, 1]} : vector<16x32xf32> to vector<16x8xf32>
    %95 = arith.truncf %94 : vector<16x8xf32> to vector<16x8xbf16>
    %96 = vector.extract_strided_slice %68 {offsets = [0, 8], sizes = [16, 8], strides = [1, 1]} : vector<16x32xf32> to vector<16x8xf32>
    %97 = arith.truncf %96 : vector<16x8xf32> to vector<16x8xbf16>
    %cst_42 = arith.constant dense<0.000000e+00> : vector<8x16xf32>
    %98 = tpu.matmul %93, %95, %cst_42 {dimension_numbers = #tpu.dot_dimension_numbers<[1], [1], [0], [0], [0, 0, 1, 0], [], []>} : vector<8x8xbf16>, vector<16x8xbf16>, vector<8x16xf32> -> vector<8x16xf32>
    %cst_43 = arith.constant dense<0xFF800000> : vector<8xf32>
    %99 = vector.multi_reduction <maximumf>, %98, %cst_43 [1] : vector<8x16xf32> to vector<8xf32>
    %100 = vector.shape_cast %99 : vector<8xf32> to vector<8x1xf32>
    %101 = vector.broadcast %100 : vector<8x1xf32> to vector<8x16xf32>
    %102 = arith.subf %98, %101 : vector<8x16xf32>
    %103 = math.exp %102 : vector<8x16xf32>
    %cst_44 = arith.constant dense<0.000000e+00> : vector<8xf32>
    %104 = vector.multi_reduction <add>, %103, %cst_44 [1] : vector<8x16xf32> to vector<8xf32>
    %105 = vector.shape_cast %104 : vector<8xf32> to vector<8x1xf32>
    %106 = arith.truncf %103 : vector<8x16xf32> to vector<8x16xbf16>
    %cst_45 = arith.constant dense<0.000000e+00> : vector<8x8xf32>
    %107 = tpu.matmul %106, %97, %cst_45 {dimension_numbers = #tpu.dot_dimension_numbers<[1], [0], [0], [1], [0, 0, 1, 1], [], []>} : vector<8x16xbf16>, vector<16x8xbf16>, vector<8x8xf32> -> vector<8x8xf32>
    %108 = tpu.reciprocal %105 {approx = true} : vector<8x1xf32> -> vector<8x1xf32>
    %109 = vector.broadcast %108 : vector<8x1xf32> to vector<8x8xf32>
    %110 = arith.mulf %107, %109 : vector<8x8xf32>
    %111 = arith.truncf %110 : vector<8x8xf32> to vector<8x8xbf16>
    %112 = vector.extract_strided_slice %61 {offsets = [1, 0, 0], sizes = [1, 8, 32], strides = [1, 1, 1]} : vector<4x8x32xbf16> to vector<1x8x32xbf16>
    %113 = vector.shape_cast %112 : vector<1x8x32xbf16> to vector<8x32xbf16>
    %cst_46 = arith.constant dense<0.000000e+00> : vector<8x32xf32>
    %114 = tpu.matmul %111, %113, %cst_46 {dimension_numbers = #tpu.dot_dimension_numbers<[1], [0], [0], [1], [0, 0, 1, 1], [], []>} : vector<8x8xbf16>, vector<8x32xbf16>, vector<8x32xf32> -> vector<8x32xf32>
    %115 = arith.addf %91, %114 : vector<8x32xf32>
    %116 = vector.extract_strided_slice %64 {offsets = [0, 16], sizes = [8, 8], strides = [1, 1]} : vector<8x32xf32> to vector<8x8xf32>
    %117 = arith.truncf %116 : vector<8x8xf32> to vector<8x8xbf16>
    %118 = vector.extract_strided_slice %67 {offsets = [0, 16], sizes = [16, 8], strides = [1, 1]} : vector<16x32xf32> to vector<16x8xf32>
    %119 = arith.truncf %118 : vector<16x8xf32> to vector<16x8xbf16>
    %120 = vector.extract_strided_slice %68 {offsets = [0, 16], sizes = [16, 8], strides = [1, 1]} : vector<16x32xf32> to vector<16x8xf32>
    %121 = arith.truncf %120 : vector<16x8xf32> to vector<16x8xbf16>
    %cst_47 = arith.constant dense<0.000000e+00> : vector<8x16xf32>
    %122 = tpu.matmul %117, %119, %cst_47 {dimension_numbers = #tpu.dot_dimension_numbers<[1], [1], [0], [0], [0, 0, 1, 0], [], []>} : vector<8x8xbf16>, vector<16x8xbf16>, vector<8x16xf32> -> vector<8x16xf32>
    %cst_48 = arith.constant dense<0xFF800000> : vector<8xf32>
    %123 = vector.multi_reduction <maximumf>, %122, %cst_48 [1] : vector<8x16xf32> to vector<8xf32>
    %124 = vector.shape_cast %123 : vector<8xf32> to vector<8x1xf32>
    %125 = vector.broadcast %124 : vector<8x1xf32> to vector<8x16xf32>
    %126 = arith.subf %122, %125 : vector<8x16xf32>
    %127 = math.exp %126 : vector<8x16xf32>
    %cst_49 = arith.constant dense<0.000000e+00> : vector<8xf32>
    %128 = vector.multi_reduction <add>, %127, %cst_49 [1] : vector<8x16xf32> to vector<8xf32>
    %129 = vector.shape_cast %128 : vector<8xf32> to vector<8x1xf32>
    %130 = arith.truncf %127 : vector<8x16xf32> to vector<8x16xbf16>
    %cst_50 = arith.constant dense<0.000000e+00> : vector<8x8xf32>
    %131 = tpu.matmul %130, %121, %cst_50 {dimension_numbers = #tpu.dot_dimension_numbers<[1], [0], [0], [1], [0, 0, 1, 1], [], []>} : vector<8x16xbf16>, vector<16x8xbf16>, vector<8x8xf32> -> vector<8x8xf32>
    %132 = tpu.reciprocal %129 {approx = true} : vector<8x1xf32> -> vector<8x1xf32>
    %133 = vector.broadcast %132 : vector<8x1xf32> to vector<8x8xf32>
    %134 = arith.mulf %131, %133 : vector<8x8xf32>
    %135 = arith.truncf %134 : vector<8x8xf32> to vector<8x8xbf16>
    %136 = vector.extract_strided_slice %61 {offsets = [2, 0, 0], sizes = [1, 8, 32], strides = [1, 1, 1]} : vector<4x8x32xbf16> to vector<1x8x32xbf16>
    %137 = vector.shape_cast %136 : vector<1x8x32xbf16> to vector<8x32xbf16>
    %cst_51 = arith.constant dense<0.000000e+00> : vector<8x32xf32>
    %138 = tpu.matmul %135, %137, %cst_51 {dimension_numbers = #tpu.dot_dimension_numbers<[1], [0], [0], [1], [0, 0, 1, 1], [], []>} : vector<8x8xbf16>, vector<8x32xbf16>, vector<8x32xf32> -> vector<8x32xf32>
    %139 = arith.addf %115, %138 : vector<8x32xf32>
    %140 = vector.extract_strided_slice %64 {offsets = [0, 24], sizes = [8, 8], strides = [1, 1]} : vector<8x32xf32> to vector<8x8xf32>
    %141 = arith.truncf %140 : vector<8x8xf32> to vector<8x8xbf16>
    %142 = vector.extract_strided_slice %67 {offsets = [0, 24], sizes = [16, 8], strides = [1, 1]} : vector<16x32xf32> to vector<16x8xf32>
    %143 = arith.truncf %142 : vector<16x8xf32> to vector<16x8xbf16>
    %144 = vector.extract_strided_slice %68 {offsets = [0, 24], sizes = [16, 8], strides = [1, 1]} : vector<16x32xf32> to vector<16x8xf32>
    %145 = arith.truncf %144 : vector<16x8xf32> to vector<16x8xbf16>
    %cst_52 = arith.constant dense<0.000000e+00> : vector<8x16xf32>
    %146 = tpu.matmul %141, %143, %cst_52 {dimension_numbers = #tpu.dot_dimension_numbers<[1], [1], [0], [0], [0, 0, 1, 0], [], []>} : vector<8x8xbf16>, vector<16x8xbf16>, vector<8x16xf32> -> vector<8x16xf32>
    %cst_53 = arith.constant dense<0xFF800000> : vector<8xf32>
    %147 = vector.multi_reduction <maximumf>, %146, %cst_53 [1] : vector<8x16xf32> to vector<8xf32>
    %148 = vector.shape_cast %147 : vector<8xf32> to vector<8x1xf32>
    %149 = vector.broadcast %148 : vector<8x1xf32> to vector<8x16xf32>
    %150 = arith.subf %146, %149 : vector<8x16xf32>
    %151 = math.exp %150 : vector<8x16xf32>
    %cst_54 = arith.constant dense<0.000000e+00> : vector<8xf32>
    %152 = vector.multi_reduction <add>, %151, %cst_54 [1] : vector<8x16xf32> to vector<8xf32>
    %153 = vector.shape_cast %152 : vector<8xf32> to vector<8x1xf32>
    %154 = arith.truncf %151 : vector<8x16xf32> to vector<8x16xbf16>
    %cst_55 = arith.constant dense<0.000000e+00> : vector<8x8xf32>
    %155 = tpu.matmul %154, %145, %cst_55 {dimension_numbers = #tpu.dot_dimension_numbers<[1], [0], [0], [1], [0, 0, 1, 1], [], []>} : vector<8x16xbf16>, vector<16x8xbf16>, vector<8x8xf32> -> vector<8x8xf32>
    %156 = tpu.reciprocal %153 {approx = true} : vector<8x1xf32> -> vector<8x1xf32>
    %157 = vector.broadcast %156 : vector<8x1xf32> to vector<8x8xf32>
    %158 = arith.mulf %155, %157 : vector<8x8xf32>
    %159 = arith.truncf %158 : vector<8x8xf32> to vector<8x8xbf16>
    %160 = vector.extract_strided_slice %61 {offsets = [3, 0, 0], sizes = [1, 8, 32], strides = [1, 1, 1]} : vector<4x8x32xbf16> to vector<1x8x32xbf16>
    %161 = vector.shape_cast %160 : vector<1x8x32xbf16> to vector<8x32xbf16>
    %cst_56 = arith.constant dense<0.000000e+00> : vector<8x32xf32>
    %162 = tpu.matmul %159, %161, %cst_56 {dimension_numbers = #tpu.dot_dimension_numbers<[1], [0], [0], [1], [0, 0, 1, 1], [], []>} : vector<8x8xbf16>, vector<8x32xbf16>, vector<8x32xf32> -> vector<8x32xf32>
    %163 = arith.addf %139, %162 : vector<8x32xf32>
    %164 = vector.broadcast %62 : vector<1x32xf32> to vector<8x32xf32>
    %165 = arith.addf %163, %164 : vector<8x32xf32>
    %166 = arith.addf %6, %165 : vector<8x32xf32>
    %167 = vector.extract_strided_slice %14 {offsets = [4, 0], sizes = [1, 32], strides = [1, 1]} : vector<6x32xf32> to vector<1x32xf32>
    %168 = vector.extract_strided_slice %14 {offsets = [5, 0], sizes = [1, 32], strides = [1, 1]} : vector<6x32xf32> to vector<1x32xf32>
    %cst_57 = arith.constant dense<0.000000e+00> : vector<8xf32>
    %169 = vector.multi_reduction <add>, %166, %cst_57 [1] : vector<8x32xf32> to vector<8xf32>
    %170 = vector.shape_cast %169 : vector<8xf32> to vector<8x1xf32>
    %cst_58 = arith.constant 3.200000e+01 : f32
    %171 = vector.broadcast %cst_58 : f32 to vector<8x1xf32>
    %172 = arith.divf %170, %171 : vector<8x1xf32>
    %173 = vector.broadcast %172 : vector<8x1xf32> to vector<8x32xf32>
    %174 = arith.subf %166, %173 : vector<8x32xf32>
    %175 = arith.mulf %174, %174 : vector<8x32xf32>
    %cst_59 = arith.constant dense<0.000000e+00> : vector<8xf32>
    %176 = vector.multi_reduction <add>, %175, %cst_59 [1] : vector<8x32xf32> to vector<8xf32>
    %177 = vector.shape_cast %176 : vector<8xf32> to vector<8x1xf32>
    %cst_60 = arith.constant 3.200000e+01 : f32
    %178 = vector.broadcast %cst_60 : f32 to vector<8x1xf32>
    %179 = arith.divf %177, %178 : vector<8x1xf32>
    %cst_61 = arith.constant 9.99999974E-6 : f32
    %180 = vector.broadcast %cst_61 : f32 to vector<8x1xf32>
    %181 = arith.addf %179, %180 : vector<8x1xf32>
    %182 = math.rsqrt %181 : vector<8x1xf32>
    %183 = vector.broadcast %182 : vector<8x1xf32> to vector<8x32xf32>
    %184 = arith.mulf %174, %183 : vector<8x32xf32>
    %185 = vector.broadcast %167 : vector<1x32xf32> to vector<8x32xf32>
    %186 = arith.mulf %184, %185 : vector<8x32xf32>
    %187 = vector.broadcast %168 : vector<1x32xf32> to vector<8x32xf32>
    %188 = arith.addf %186, %187 : vector<8x32xf32>
    %c0_62 = arith.constant 0 : index
    %c0_63 = arith.constant 0 : index
    %189 = vector.load %arg12[%c0_62, %c0_63] : memref<32x128xbf16, #tpu.memory_space<vmem>>, vector<32x128xbf16>
    %c0_64 = arith.constant 0 : index
    %c0_65 = arith.constant 0 : index
    %190 = vector.load %arg13[%c0_64, %c0_65] : memref<1x128xf32, #tpu.memory_space<vmem>>, vector<1x128xf32>
    %c0_66 = arith.constant 0 : index
    %c0_67 = arith.constant 0 : index
    %191 = vector.load %arg14[%c0_66, %c0_67] : memref<128x32xbf16, #tpu.memory_space<vmem>>, vector<128x32xbf16>
    %c0_68 = arith.constant 0 : index
    %c0_69 = arith.constant 0 : index
    %192 = vector.load %arg15[%c0_68, %c0_69] : memref<1x32xf32, #tpu.memory_space<vmem>>, vector<1x32xf32>
    %193 = arith.truncf %188 : vector<8x32xf32> to vector<8x32xbf16>
    %cst_70 = arith.constant dense<0.000000e+00> : vector<8x128xf32>
    %194 = tpu.matmul %193, %189, %cst_70 {dimension_numbers = #tpu.dot_dimension_numbers<[1], [0], [0], [1], [0, 0, 1, 1], [], []>} : vector<8x32xbf16>, vector<32x128xbf16>, vector<8x128xf32> -> vector<8x128xf32>
    %195 = vector.broadcast %190 : vector<1x128xf32> to vector<8x128xf32>
    %196 = arith.addf %194, %195 : vector<8x128xf32>
    %cst_71 = arith.constant 5.000000e-01 : f32
    %197 = vector.broadcast %cst_71 : f32 to vector<8x128xf32>
    %198 = arith.mulf %197, %196 : vector<8x128xf32>
    %cst_72 = arith.constant 0.707106769 : f32
    %199 = vector.broadcast %cst_72 : f32 to vector<8x128xf32>
    %200 = arith.mulf %196, %199 : vector<8x128xf32>
    %cst_73 = arith.constant 0.000000e+00 : f32
    %201 = vector.broadcast %cst_73 : f32 to vector<8x128xf32>
    %202 = arith.cmpf oge, %200, %201 : vector<8x128xf32>
    %cst_74 = arith.constant 1.000000e+00 : f32
    %cst_75 = arith.constant -1.000000e+00 : f32
    %203 = vector.broadcast %cst_74 : f32 to vector<8x128xf32>
    %204 = vector.broadcast %cst_75 : f32 to vector<8x128xf32>
    %205 = arith.select %202, %203, %204 : vector<8x128xi1>, vector<8x128xf32>
    %206 = math.absf %200 : vector<8x128xf32>
    %cst_76 = arith.constant 0.327591091 : f32
    %207 = vector.broadcast %cst_76 : f32 to vector<8x128xf32>
    %208 = arith.mulf %207, %206 : vector<8x128xf32>
    %cst_77 = arith.constant 1.000000e+00 : f32
    %209 = vector.broadcast %cst_77 : f32 to vector<8x128xf32>
    %210 = arith.addf %209, %208 : vector<8x128xf32>
    %cst_78 = arith.constant 1.000000e+00 : f32
    %211 = vector.broadcast %cst_78 : f32 to vector<8x128xf32>
    %212 = arith.divf %211, %210 : vector<8x128xf32>
    %cst_79 = arith.constant 1.06140542 : f32
    %213 = vector.broadcast %cst_79 : f32 to vector<8x128xf32>
    %214 = arith.mulf %213, %212 : vector<8x128xf32>
    %cst_80 = arith.constant -1.45315206 : f32
    %215 = vector.broadcast %cst_80 : f32 to vector<8x128xf32>
    %216 = arith.addf %214, %215 : vector<8x128xf32>
    %217 = arith.mulf %216, %212 : vector<8x128xf32>
    %cst_81 = arith.constant 1.42141378 : f32
    %218 = vector.broadcast %cst_81 : f32 to vector<8x128xf32>
    %219 = arith.addf %217, %218 : vector<8x128xf32>
    %220 = arith.mulf %219, %212 : vector<8x128xf32>
    %cst_82 = arith.constant -0.284496725 : f32
    %221 = vector.broadcast %cst_82 : f32 to vector<8x128xf32>
    %222 = arith.addf %220, %221 : vector<8x128xf32>
    %223 = arith.mulf %222, %212 : vector<8x128xf32>
    %cst_83 = arith.constant 0.254829586 : f32
    %224 = vector.broadcast %cst_83 : f32 to vector<8x128xf32>
    %225 = arith.addf %223, %224 : vector<8x128xf32>
    %226 = arith.mulf %225, %212 : vector<8x128xf32>
    %cst_84 = arith.constant 0.000000e+00 : f32
    %227 = vector.broadcast %cst_84 : f32 to vector<8x128xf32>
    %228 = arith.subf %227, %206 : vector<8x128xf32>
    %229 = arith.mulf %228, %206 : vector<8x128xf32>
    %230 = math.exp %229 : vector<8x128xf32>
    %231 = arith.mulf %226, %230 : vector<8x128xf32>
    %cst_85 = arith.constant 1.000000e+00 : f32
    %232 = vector.broadcast %cst_85 : f32 to vector<8x128xf32>
    %233 = arith.subf %232, %231 : vector<8x128xf32>
    %234 = arith.mulf %205, %233 : vector<8x128xf32>
    %cst_86 = arith.constant 1.000000e+00 : f32
    %235 = vector.broadcast %cst_86 : f32 to vector<8x128xf32>
    %236 = arith.addf %235, %234 : vector<8x128xf32>
    %237 = arith.mulf %198, %236 : vector<8x128xf32>
    %238 = arith.truncf %237 : vector<8x128xf32> to vector<8x128xbf16>
    %cst_87 = arith.constant dense<0.000000e+00> : vector<8x32xf32>
    %239 = tpu.matmul %238, %191, %cst_87 {dimension_numbers = #tpu.dot_dimension_numbers<[1], [0], [0], [1], [0, 0, 1, 1], [], []>} : vector<8x128xbf16>, vector<128x32xbf16>, vector<8x32xf32> -> vector<8x32xf32>
    %240 = vector.broadcast %192 : vector<1x32xf32> to vector<8x32xf32>
    %241 = arith.addf %239, %240 : vector<8x32xf32>
    %242 = arith.addf %166, %241 : vector<8x32xf32>
    %c0_88 = arith.constant 0 : index
    %c0_89 = arith.constant 0 : index
    %c0_90 = arith.constant 0 : index
    %243 = vector.load %arg16[%c0_88, %c0_89, %c0_90] : memref<2x4x32xf32, #tpu.memory_space<vmem>>, vector<1x4x32xf32>
    %244 = vector.shape_cast %243 : vector<1x4x32xf32> to vector<4x32xf32>
    %245 = vector.extract_strided_slice %244 {offsets = [0, 0], sizes = [1, 32], strides = [1, 1]} : vector<4x32xf32> to vector<1x32xf32>
    %246 = vector.extract_strided_slice %244 {offsets = [1, 0], sizes = [1, 32], strides = [1, 1]} : vector<4x32xf32> to vector<1x32xf32>
    %cst_91 = arith.constant dense<0.000000e+00> : vector<8xf32>
    %247 = vector.multi_reduction <add>, %242, %cst_91 [1] : vector<8x32xf32> to vector<8xf32>
    %248 = vector.shape_cast %247 : vector<8xf32> to vector<8x1xf32>
    %cst_92 = arith.constant 3.200000e+01 : f32
    %249 = vector.broadcast %cst_92 : f32 to vector<8x1xf32>
    %250 = arith.divf %248, %249 : vector<8x1xf32>
    %251 = vector.broadcast %250 : vector<8x1xf32> to vector<8x32xf32>
    %252 = arith.subf %242, %251 : vector<8x32xf32>
    %253 = arith.mulf %252, %252 : vector<8x32xf32>
    %cst_93 = arith.constant dense<0.000000e+00> : vector<8xf32>
    %254 = vector.multi_reduction <add>, %253, %cst_93 [1] : vector<8x32xf32> to vector<8xf32>
    %255 = vector.shape_cast %254 : vector<8xf32> to vector<8x1xf32>
    %cst_94 = arith.constant 3.200000e+01 : f32
    %256 = vector.broadcast %cst_94 : f32 to vector<8x1xf32>
    %257 = arith.divf %255, %256 : vector<8x1xf32>
    %cst_95 = arith.constant 9.99999974E-6 : f32
    %258 = vector.broadcast %cst_95 : f32 to vector<8x1xf32>
    %259 = arith.addf %257, %258 : vector<8x1xf32>
    %260 = math.rsqrt %259 : vector<8x1xf32>
    %261 = vector.broadcast %260 : vector<8x1xf32> to vector<8x32xf32>
    %262 = arith.mulf %252, %261 : vector<8x32xf32>
    %263 = vector.broadcast %245 : vector<1x32xf32> to vector<8x32xf32>
    %264 = arith.mulf %262, %263 : vector<8x32xf32>
    %265 = vector.broadcast %246 : vector<1x32xf32> to vector<8x32xf32>
    %266 = arith.addf %264, %265 : vector<8x32xf32>
    %c0_96 = arith.constant 0 : index
    %c0_97 = arith.constant 0 : index
    %c0_98 = arith.constant 0 : index
    %267 = vector.load %arg17[%c0_96, %c0_97, %c0_98] : memref<2x32x32xbf16, #tpu.memory_space<vmem>>, vector<1x32x32xbf16>
    %268 = vector.shape_cast %267 : vector<1x32x32xbf16> to vector<32x32xbf16>
    %c0_99 = arith.constant 0 : index
    %c0_100 = arith.constant 0 : index
    %c0_101 = arith.constant 0 : index
    %269 = vector.load %arg18[%c0_99, %c0_100, %c0_101] : memref<2x32x64xbf16, #tpu.memory_space<vmem>>, vector<1x32x64xbf16>
    %270 = vector.shape_cast %269 : vector<1x32x64xbf16> to vector<32x64xbf16>
    %c0_102 = arith.constant 0 : index
    %c0_103 = arith.constant 0 : index
    %c0_104 = arith.constant 0 : index
    %c0_105 = arith.constant 0 : index
    %271 = vector.load %arg19[%c0_102, %c0_103, %c0_104, %c0_105] : memref<2x4x8x32xbf16, #tpu.memory_space<vmem>>, vector<1x4x8x32xbf16>
    %272 = vector.shape_cast %271 : vector<1x4x8x32xbf16> to vector<4x8x32xbf16>
    %c0_106 = arith.constant 0 : index
    %c0_107 = arith.constant 0 : index
    %c0_108 = arith.constant 0 : index
    %273 = vector.load %arg20[%c0_106, %c0_107, %c0_108] : memref<2x1x32xf32, #tpu.memory_space<vmem>>, vector<1x1x32xf32>
    %274 = vector.shape_cast %273 : vector<1x1x32xf32> to vector<1x32xf32>
    %275 = arith.truncf %266 : vector<8x32xf32> to vector<8x32xbf16>
    %cst_109 = arith.constant dense<0.000000e+00> : vector<8x32xf32>
    %276 = tpu.matmul %275, %268, %cst_109 {dimension_numbers = #tpu.dot_dimension_numbers<[1], [0], [0], [1], [0, 0, 1, 1], [], []>} : vector<8x32xbf16>, vector<32x32xbf16>, vector<8x32xf32> -> vector<8x32xf32>
    %277 = arith.truncf %266 : vector<8x32xf32> to vector<8x32xbf16>
    %cst_110 = arith.constant dense<0.000000e+00> : vector<8x64xf32>
    %278 = tpu.matmul %277, %270, %cst_110 {dimension_numbers = #tpu.dot_dimension_numbers<[1], [0], [0], [1], [0, 0, 1, 1], [], []>} : vector<8x32xbf16>, vector<32x64xbf16>, vector<8x64xf32> -> vector<8x64xf32>
    %279 = vector.extract_strided_slice %278 {offsets = [0, 0], sizes = [8, 32], strides = [1, 1]} : vector<8x64xf32> to vector<8x32xf32>
    %280 = vector.extract_strided_slice %278 {offsets = [0, 32], sizes = [8, 32], strides = [1, 1]} : vector<8x64xf32> to vector<8x32xf32>
    %281 = vector.extract_strided_slice %276 {offsets = [0, 0], sizes = [8, 8], strides = [1, 1]} : vector<8x32xf32> to vector<8x8xf32>
    %282 = arith.truncf %281 : vector<8x8xf32> to vector<8x8xbf16>
    %283 = vector.extract_strided_slice %279 {offsets = [0, 0], sizes = [8, 8], strides = [1, 1]} : vector<8x32xf32> to vector<8x8xf32>
    %284 = arith.truncf %283 : vector<8x8xf32> to vector<8x8xbf16>
    %285 = vector.extract_strided_slice %280 {offsets = [0, 0], sizes = [8, 8], strides = [1, 1]} : vector<8x32xf32> to vector<8x8xf32>
    %286 = arith.truncf %285 : vector<8x8xf32> to vector<8x8xbf16>
    %cst_111 = arith.constant dense<0.000000e+00> : vector<8x8xf32>
    %287 = tpu.matmul %282, %284, %cst_111 {dimension_numbers = #tpu.dot_dimension_numbers<[1], [1], [0], [0], [0, 0, 1, 0], [], []>} : vector<8x8xbf16>, vector<8x8xbf16>, vector<8x8xf32> -> vector<8x8xf32>
    %cst_112 = arith.constant dense<0xFF800000> : vector<8xf32>
    %288 = vector.multi_reduction <maximumf>, %287, %cst_112 [1] : vector<8x8xf32> to vector<8xf32>
    %289 = vector.shape_cast %288 : vector<8xf32> to vector<8x1xf32>
    %290 = vector.broadcast %289 : vector<8x1xf32> to vector<8x8xf32>
    %291 = arith.subf %287, %290 : vector<8x8xf32>
    %292 = math.exp %291 : vector<8x8xf32>
    %cst_113 = arith.constant dense<0.000000e+00> : vector<8xf32>
    %293 = vector.multi_reduction <add>, %292, %cst_113 [1] : vector<8x8xf32> to vector<8xf32>
    %294 = vector.shape_cast %293 : vector<8xf32> to vector<8x1xf32>
    %295 = arith.truncf %292 : vector<8x8xf32> to vector<8x8xbf16>
    %cst_114 = arith.constant dense<0.000000e+00> : vector<8x8xf32>
    %296 = tpu.matmul %295, %286, %cst_114 {dimension_numbers = #tpu.dot_dimension_numbers<[1], [0], [0], [1], [0, 0, 1, 1], [], []>} : vector<8x8xbf16>, vector<8x8xbf16>, vector<8x8xf32> -> vector<8x8xf32>
    %297 = tpu.reciprocal %294 {approx = true} : vector<8x1xf32> -> vector<8x1xf32>
    %298 = vector.broadcast %297 : vector<8x1xf32> to vector<8x8xf32>
    %299 = arith.mulf %296, %298 : vector<8x8xf32>
    %300 = arith.truncf %299 : vector<8x8xf32> to vector<8x8xbf16>
    %301 = vector.extract_strided_slice %272 {offsets = [0, 0, 0], sizes = [1, 8, 32], strides = [1, 1, 1]} : vector<4x8x32xbf16> to vector<1x8x32xbf16>
    %302 = vector.shape_cast %301 : vector<1x8x32xbf16> to vector<8x32xbf16>
    %cst_115 = arith.constant dense<0.000000e+00> : vector<8x32xf32>
    %303 = tpu.matmul %300, %302, %cst_115 {dimension_numbers = #tpu.dot_dimension_numbers<[1], [0], [0], [1], [0, 0, 1, 1], [], []>} : vector<8x8xbf16>, vector<8x32xbf16>, vector<8x32xf32> -> vector<8x32xf32>
    %304 = vector.extract_strided_slice %276 {offsets = [0, 8], sizes = [8, 8], strides = [1, 1]} : vector<8x32xf32> to vector<8x8xf32>
    %305 = arith.truncf %304 : vector<8x8xf32> to vector<8x8xbf16>
    %306 = vector.extract_strided_slice %279 {offsets = [0, 8], sizes = [8, 8], strides = [1, 1]} : vector<8x32xf32> to vector<8x8xf32>
    %307 = arith.truncf %306 : vector<8x8xf32> to vector<8x8xbf16>
    %308 = vector.extract_strided_slice %280 {offsets = [0, 8], sizes = [8, 8], strides = [1, 1]} : vector<8x32xf32> to vector<8x8xf32>
    %309 = arith.truncf %308 : vector<8x8xf32> to vector<8x8xbf16>
    %cst_116 = arith.constant dense<0.000000e+00> : vector<8x8xf32>
    %310 = tpu.matmul %305, %307, %cst_116 {dimension_numbers = #tpu.dot_dimension_numbers<[1], [1], [0], [0], [0, 0, 1, 0], [], []>} : vector<8x8xbf16>, vector<8x8xbf16>, vector<8x8xf32> -> vector<8x8xf32>
    %cst_117 = arith.constant dense<0xFF800000> : vector<8xf32>
    %311 = vector.multi_reduction <maximumf>, %310, %cst_117 [1] : vector<8x8xf32> to vector<8xf32>
    %312 = vector.shape_cast %311 : vector<8xf32> to vector<8x1xf32>
    %313 = vector.broadcast %312 : vector<8x1xf32> to vector<8x8xf32>
    %314 = arith.subf %310, %313 : vector<8x8xf32>
    %315 = math.exp %314 : vector<8x8xf32>
    %cst_118 = arith.constant dense<0.000000e+00> : vector<8xf32>
    %316 = vector.multi_reduction <add>, %315, %cst_118 [1] : vector<8x8xf32> to vector<8xf32>
    %317 = vector.shape_cast %316 : vector<8xf32> to vector<8x1xf32>
    %318 = arith.truncf %315 : vector<8x8xf32> to vector<8x8xbf16>
    %cst_119 = arith.constant dense<0.000000e+00> : vector<8x8xf32>
    %319 = tpu.matmul %318, %309, %cst_119 {dimension_numbers = #tpu.dot_dimension_numbers<[1], [0], [0], [1], [0, 0, 1, 1], [], []>} : vector<8x8xbf16>, vector<8x8xbf16>, vector<8x8xf32> -> vector<8x8xf32>
    %320 = tpu.reciprocal %317 {approx = true} : vector<8x1xf32> -> vector<8x1xf32>
    %321 = vector.broadcast %320 : vector<8x1xf32> to vector<8x8xf32>
    %322 = arith.mulf %319, %321 : vector<8x8xf32>
    %323 = arith.truncf %322 : vector<8x8xf32> to vector<8x8xbf16>
    %324 = vector.extract_strided_slice %272 {offsets = [1, 0, 0], sizes = [1, 8, 32], strides = [1, 1, 1]} : vector<4x8x32xbf16> to vector<1x8x32xbf16>
    %325 = vector.shape_cast %324 : vector<1x8x32xbf16> to vector<8x32xbf16>
    %cst_120 = arith.constant dense<0.000000e+00> : vector<8x32xf32>
    %326 = tpu.matmul %323, %325, %cst_120 {dimension_numbers = #tpu.dot_dimension_numbers<[1], [0], [0], [1], [0, 0, 1, 1], [], []>} : vector<8x8xbf16>, vector<8x32xbf16>, vector<8x32xf32> -> vector<8x32xf32>
    %327 = arith.addf %303, %326 : vector<8x32xf32>
    %328 = vector.extract_strided_slice %276 {offsets = [0, 16], sizes = [8, 8], strides = [1, 1]} : vector<8x32xf32> to vector<8x8xf32>
    %329 = arith.truncf %328 : vector<8x8xf32> to vector<8x8xbf16>
    %330 = vector.extract_strided_slice %279 {offsets = [0, 16], sizes = [8, 8], strides = [1, 1]} : vector<8x32xf32> to vector<8x8xf32>
    %331 = arith.truncf %330 : vector<8x8xf32> to vector<8x8xbf16>
    %332 = vector.extract_strided_slice %280 {offsets = [0, 16], sizes = [8, 8], strides = [1, 1]} : vector<8x32xf32> to vector<8x8xf32>
    %333 = arith.truncf %332 : vector<8x8xf32> to vector<8x8xbf16>
    %cst_121 = arith.constant dense<0.000000e+00> : vector<8x8xf32>
    %334 = tpu.matmul %329, %331, %cst_121 {dimension_numbers = #tpu.dot_dimension_numbers<[1], [1], [0], [0], [0, 0, 1, 0], [], []>} : vector<8x8xbf16>, vector<8x8xbf16>, vector<8x8xf32> -> vector<8x8xf32>
    %cst_122 = arith.constant dense<0xFF800000> : vector<8xf32>
    %335 = vector.multi_reduction <maximumf>, %334, %cst_122 [1] : vector<8x8xf32> to vector<8xf32>
    %336 = vector.shape_cast %335 : vector<8xf32> to vector<8x1xf32>
    %337 = vector.broadcast %336 : vector<8x1xf32> to vector<8x8xf32>
    %338 = arith.subf %334, %337 : vector<8x8xf32>
    %339 = math.exp %338 : vector<8x8xf32>
    %cst_123 = arith.constant dense<0.000000e+00> : vector<8xf32>
    %340 = vector.multi_reduction <add>, %339, %cst_123 [1] : vector<8x8xf32> to vector<8xf32>
    %341 = vector.shape_cast %340 : vector<8xf32> to vector<8x1xf32>
    %342 = arith.truncf %339 : vector<8x8xf32> to vector<8x8xbf16>
    %cst_124 = arith.constant dense<0.000000e+00> : vector<8x8xf32>
    %343 = tpu.matmul %342, %333, %cst_124 {dimension_numbers = #tpu.dot_dimension_numbers<[1], [0], [0], [1], [0, 0, 1, 1], [], []>} : vector<8x8xbf16>, vector<8x8xbf16>, vector<8x8xf32> -> vector<8x8xf32>
    %344 = tpu.reciprocal %341 {approx = true} : vector<8x1xf32> -> vector<8x1xf32>
    %345 = vector.broadcast %344 : vector<8x1xf32> to vector<8x8xf32>
    %346 = arith.mulf %343, %345 : vector<8x8xf32>
    %347 = arith.truncf %346 : vector<8x8xf32> to vector<8x8xbf16>
    %348 = vector.extract_strided_slice %272 {offsets = [2, 0, 0], sizes = [1, 8, 32], strides = [1, 1, 1]} : vector<4x8x32xbf16> to vector<1x8x32xbf16>
    %349 = vector.shape_cast %348 : vector<1x8x32xbf16> to vector<8x32xbf16>
    %cst_125 = arith.constant dense<0.000000e+00> : vector<8x32xf32>
    %350 = tpu.matmul %347, %349, %cst_125 {dimension_numbers = #tpu.dot_dimension_numbers<[1], [0], [0], [1], [0, 0, 1, 1], [], []>} : vector<8x8xbf16>, vector<8x32xbf16>, vector<8x32xf32> -> vector<8x32xf32>
    %351 = arith.addf %327, %350 : vector<8x32xf32>
    %352 = vector.extract_strided_slice %276 {offsets = [0, 24], sizes = [8, 8], strides = [1, 1]} : vector<8x32xf32> to vector<8x8xf32>
    %353 = arith.truncf %352 : vector<8x8xf32> to vector<8x8xbf16>
    %354 = vector.extract_strided_slice %279 {offsets = [0, 24], sizes = [8, 8], strides = [1, 1]} : vector<8x32xf32> to vector<8x8xf32>
    %355 = arith.truncf %354 : vector<8x8xf32> to vector<8x8xbf16>
    %356 = vector.extract_strided_slice %280 {offsets = [0, 24], sizes = [8, 8], strides = [1, 1]} : vector<8x32xf32> to vector<8x8xf32>
    %357 = arith.truncf %356 : vector<8x8xf32> to vector<8x8xbf16>
    %cst_126 = arith.constant dense<0.000000e+00> : vector<8x8xf32>
    %358 = tpu.matmul %353, %355, %cst_126 {dimension_numbers = #tpu.dot_dimension_numbers<[1], [1], [0], [0], [0, 0, 1, 0], [], []>} : vector<8x8xbf16>, vector<8x8xbf16>, vector<8x8xf32> -> vector<8x8xf32>
    %cst_127 = arith.constant dense<0xFF800000> : vector<8xf32>
    %359 = vector.multi_reduction <maximumf>, %358, %cst_127 [1] : vector<8x8xf32> to vector<8xf32>
    %360 = vector.shape_cast %359 : vector<8xf32> to vector<8x1xf32>
    %361 = vector.broadcast %360 : vector<8x1xf32> to vector<8x8xf32>
    %362 = arith.subf %358, %361 : vector<8x8xf32>
    %363 = math.exp %362 : vector<8x8xf32>
    %cst_128 = arith.constant dense<0.000000e+00> : vector<8xf32>
    %364 = vector.multi_reduction <add>, %363, %cst_128 [1] : vector<8x8xf32> to vector<8xf32>
    %365 = vector.shape_cast %364 : vector<8xf32> to vector<8x1xf32>
    %366 = arith.truncf %363 : vector<8x8xf32> to vector<8x8xbf16>
    %cst_129 = arith.constant dense<0.000000e+00> : vector<8x8xf32>
    %367 = tpu.matmul %366, %357, %cst_129 {dimension_numbers = #tpu.dot_dimension_numbers<[1], [0], [0], [1], [0, 0, 1, 1], [], []>} : vector<8x8xbf16>, vector<8x8xbf16>, vector<8x8xf32> -> vector<8x8xf32>
    %368 = tpu.reciprocal %365 {approx = true} : vector<8x1xf32> -> vector<8x1xf32>
    %369 = vector.broadcast %368 : vector<8x1xf32> to vector<8x8xf32>
    %370 = arith.mulf %367, %369 : vector<8x8xf32>
    %371 = arith.truncf %370 : vector<8x8xf32> to vector<8x8xbf16>
    %372 = vector.extract_strided_slice %272 {offsets = [3, 0, 0], sizes = [1, 8, 32], strides = [1, 1, 1]} : vector<4x8x32xbf16> to vector<1x8x32xbf16>
    %373 = vector.shape_cast %372 : vector<1x8x32xbf16> to vector<8x32xbf16>
    %cst_130 = arith.constant dense<0.000000e+00> : vector<8x32xf32>
    %374 = tpu.matmul %371, %373, %cst_130 {dimension_numbers = #tpu.dot_dimension_numbers<[1], [0], [0], [1], [0, 0, 1, 1], [], []>} : vector<8x8xbf16>, vector<8x32xbf16>, vector<8x32xf32> -> vector<8x32xf32>
    %375 = arith.addf %351, %374 : vector<8x32xf32>
    %376 = vector.broadcast %274 : vector<1x32xf32> to vector<8x32xf32>
    %377 = arith.addf %375, %376 : vector<8x32xf32>
    %378 = arith.addf %242, %377 : vector<8x32xf32>
    %379 = vector.extract_strided_slice %244 {offsets = [2, 0], sizes = [1, 32], strides = [1, 1]} : vector<4x32xf32> to vector<1x32xf32>
    %380 = vector.extract_strided_slice %244 {offsets = [3, 0], sizes = [1, 32], strides = [1, 1]} : vector<4x32xf32> to vector<1x32xf32>
    %cst_131 = arith.constant dense<0.000000e+00> : vector<8xf32>
    %381 = vector.multi_reduction <add>, %378, %cst_131 [1] : vector<8x32xf32> to vector<8xf32>
    %382 = vector.shape_cast %381 : vector<8xf32> to vector<8x1xf32>
    %cst_132 = arith.constant 3.200000e+01 : f32
    %383 = vector.broadcast %cst_132 : f32 to vector<8x1xf32>
    %384 = arith.divf %382, %383 : vector<8x1xf32>
    %385 = vector.broadcast %384 : vector<8x1xf32> to vector<8x32xf32>
    %386 = arith.subf %378, %385 : vector<8x32xf32>
    %387 = arith.mulf %386, %386 : vector<8x32xf32>
    %cst_133 = arith.constant dense<0.000000e+00> : vector<8xf32>
    %388 = vector.multi_reduction <add>, %387, %cst_133 [1] : vector<8x32xf32> to vector<8xf32>
    %389 = vector.shape_cast %388 : vector<8xf32> to vector<8x1xf32>
    %cst_134 = arith.constant 3.200000e+01 : f32
    %390 = vector.broadcast %cst_134 : f32 to vector<8x1xf32>
    %391 = arith.divf %389, %390 : vector<8x1xf32>
    %cst_135 = arith.constant 9.99999974E-6 : f32
    %392 = vector.broadcast %cst_135 : f32 to vector<8x1xf32>
    %393 = arith.addf %391, %392 : vector<8x1xf32>
    %394 = math.rsqrt %393 : vector<8x1xf32>
    %395 = vector.broadcast %394 : vector<8x1xf32> to vector<8x32xf32>
    %396 = arith.mulf %386, %395 : vector<8x32xf32>
    %397 = vector.broadcast %379 : vector<1x32xf32> to vector<8x32xf32>
    %398 = arith.mulf %396, %397 : vector<8x32xf32>
    %399 = vector.broadcast %380 : vector<1x32xf32> to vector<8x32xf32>
    %400 = arith.addf %398, %399 : vector<8x32xf32>
    %c0_136 = arith.constant 0 : index
    %c0_137 = arith.constant 0 : index
    %c0_138 = arith.constant 0 : index
    %401 = vector.load %arg21[%c0_136, %c0_137, %c0_138] : memref<2x32x128xbf16, #tpu.memory_space<vmem>>, vector<1x32x128xbf16>
    %402 = vector.shape_cast %401 : vector<1x32x128xbf16> to vector<32x128xbf16>
    %c0_139 = arith.constant 0 : index
    %c0_140 = arith.constant 0 : index
    %c0_141 = arith.constant 0 : index
    %403 = vector.load %arg22[%c0_139, %c0_140, %c0_141] : memref<2x1x128xf32, #tpu.memory_space<vmem>>, vector<1x1x128xf32>
    %404 = vector.shape_cast %403 : vector<1x1x128xf32> to vector<1x128xf32>
    %c0_142 = arith.constant 0 : index
    %c0_143 = arith.constant 0 : index
    %c0_144 = arith.constant 0 : index
    %405 = vector.load %arg23[%c0_142, %c0_143, %c0_144] : memref<2x128x32xbf16, #tpu.memory_space<vmem>>, vector<1x128x32xbf16>
    %406 = vector.shape_cast %405 : vector<1x128x32xbf16> to vector<128x32xbf16>
    %c0_145 = arith.constant 0 : index
    %c0_146 = arith.constant 0 : index
    %c0_147 = arith.constant 0 : index
    %407 = vector.load %arg24[%c0_145, %c0_146, %c0_147] : memref<2x1x32xf32, #tpu.memory_space<vmem>>, vector<1x1x32xf32>
    %408 = vector.shape_cast %407 : vector<1x1x32xf32> to vector<1x32xf32>
    %409 = arith.truncf %400 : vector<8x32xf32> to vector<8x32xbf16>
    %cst_148 = arith.constant dense<0.000000e+00> : vector<8x128xf32>
    %410 = tpu.matmul %409, %402, %cst_148 {dimension_numbers = #tpu.dot_dimension_numbers<[1], [0], [0], [1], [0, 0, 1, 1], [], []>} : vector<8x32xbf16>, vector<32x128xbf16>, vector<8x128xf32> -> vector<8x128xf32>
    %411 = vector.broadcast %404 : vector<1x128xf32> to vector<8x128xf32>
    %412 = arith.addf %410, %411 : vector<8x128xf32>
    %cst_149 = arith.constant 5.000000e-01 : f32
    %413 = vector.broadcast %cst_149 : f32 to vector<8x128xf32>
    %414 = arith.mulf %413, %412 : vector<8x128xf32>
    %cst_150 = arith.constant 0.707106769 : f32
    %415 = vector.broadcast %cst_150 : f32 to vector<8x128xf32>
    %416 = arith.mulf %412, %415 : vector<8x128xf32>
    %cst_151 = arith.constant 0.000000e+00 : f32
    %417 = vector.broadcast %cst_151 : f32 to vector<8x128xf32>
    %418 = arith.cmpf oge, %416, %417 : vector<8x128xf32>
    %cst_152 = arith.constant 1.000000e+00 : f32
    %cst_153 = arith.constant -1.000000e+00 : f32
    %419 = vector.broadcast %cst_152 : f32 to vector<8x128xf32>
    %420 = vector.broadcast %cst_153 : f32 to vector<8x128xf32>
    %421 = arith.select %418, %419, %420 : vector<8x128xi1>, vector<8x128xf32>
    %422 = math.absf %416 : vector<8x128xf32>
    %cst_154 = arith.constant 0.327591091 : f32
    %423 = vector.broadcast %cst_154 : f32 to vector<8x128xf32>
    %424 = arith.mulf %423, %422 : vector<8x128xf32>
    %cst_155 = arith.constant 1.000000e+00 : f32
    %425 = vector.broadcast %cst_155 : f32 to vector<8x128xf32>
    %426 = arith.addf %425, %424 : vector<8x128xf32>
    %cst_156 = arith.constant 1.000000e+00 : f32
    %427 = vector.broadcast %cst_156 : f32 to vector<8x128xf32>
    %428 = arith.divf %427, %426 : vector<8x128xf32>
    %cst_157 = arith.constant 1.06140542 : f32
    %429 = vector.broadcast %cst_157 : f32 to vector<8x128xf32>
    %430 = arith.mulf %429, %428 : vector<8x128xf32>
    %cst_158 = arith.constant -1.45315206 : f32
    %431 = vector.broadcast %cst_158 : f32 to vector<8x128xf32>
    %432 = arith.addf %430, %431 : vector<8x128xf32>
    %433 = arith.mulf %432, %428 : vector<8x128xf32>
    %cst_159 = arith.constant 1.42141378 : f32
    %434 = vector.broadcast %cst_159 : f32 to vector<8x128xf32>
    %435 = arith.addf %433, %434 : vector<8x128xf32>
    %436 = arith.mulf %435, %428 : vector<8x128xf32>
    %cst_160 = arith.constant -0.284496725 : f32
    %437 = vector.broadcast %cst_160 : f32 to vector<8x128xf32>
    %438 = arith.addf %436, %437 : vector<8x128xf32>
    %439 = arith.mulf %438, %428 : vector<8x128xf32>
    %cst_161 = arith.constant 0.254829586 : f32
    %440 = vector.broadcast %cst_161 : f32 to vector<8x128xf32>
    %441 = arith.addf %439, %440 : vector<8x128xf32>
    %442 = arith.mulf %441, %428 : vector<8x128xf32>
    %cst_162 = arith.constant 0.000000e+00 : f32
    %443 = vector.broadcast %cst_162 : f32 to vector<8x128xf32>
    %444 = arith.subf %443, %422 : vector<8x128xf32>
    %445 = arith.mulf %444, %422 : vector<8x128xf32>
    %446 = math.exp %445 : vector<8x128xf32>
    %447 = arith.mulf %442, %446 : vector<8x128xf32>
    %cst_163 = arith.constant 1.000000e+00 : f32
    %448 = vector.broadcast %cst_163 : f32 to vector<8x128xf32>
    %449 = arith.subf %448, %447 : vector<8x128xf32>
    %450 = arith.mulf %421, %449 : vector<8x128xf32>
    %cst_164 = arith.constant 1.000000e+00 : f32
    %451 = vector.broadcast %cst_164 : f32 to vector<8x128xf32>
    %452 = arith.addf %451, %450 : vector<8x128xf32>
    %453 = arith.mulf %414, %452 : vector<8x128xf32>
    %454 = arith.truncf %453 : vector<8x128xf32> to vector<8x128xbf16>
    %cst_165 = arith.constant dense<0.000000e+00> : vector<8x32xf32>
    %455 = tpu.matmul %454, %406, %cst_165 {dimension_numbers = #tpu.dot_dimension_numbers<[1], [0], [0], [1], [0, 0, 1, 1], [], []>} : vector<8x128xbf16>, vector<128x32xbf16>, vector<8x32xf32> -> vector<8x32xf32>
    %456 = vector.broadcast %408 : vector<1x32xf32> to vector<8x32xf32>
    %457 = arith.addf %455, %456 : vector<8x32xf32>
    %458 = arith.addf %378, %457 : vector<8x32xf32>
    %c1 = arith.constant 1 : index
    %c0_166 = arith.constant 0 : index
    %c0_167 = arith.constant 0 : index
    %459 = vector.load %arg16[%c1, %c0_166, %c0_167] : memref<2x4x32xf32, #tpu.memory_space<vmem>>, vector<1x4x32xf32>
    %460 = vector.shape_cast %459 : vector<1x4x32xf32> to vector<4x32xf32>
    %461 = vector.extract_strided_slice %460 {offsets = [0, 0], sizes = [1, 32], strides = [1, 1]} : vector<4x32xf32> to vector<1x32xf32>
    %462 = vector.extract_strided_slice %460 {offsets = [1, 0], sizes = [1, 32], strides = [1, 1]} : vector<4x32xf32> to vector<1x32xf32>
    %cst_168 = arith.constant dense<0.000000e+00> : vector<8xf32>
    %463 = vector.multi_reduction <add>, %458, %cst_168 [1] : vector<8x32xf32> to vector<8xf32>
    %464 = vector.shape_cast %463 : vector<8xf32> to vector<8x1xf32>
    %cst_169 = arith.constant 3.200000e+01 : f32
    %465 = vector.broadcast %cst_169 : f32 to vector<8x1xf32>
    %466 = arith.divf %464, %465 : vector<8x1xf32>
    %467 = vector.broadcast %466 : vector<8x1xf32> to vector<8x32xf32>
    %468 = arith.subf %458, %467 : vector<8x32xf32>
    %469 = arith.mulf %468, %468 : vector<8x32xf32>
    %cst_170 = arith.constant dense<0.000000e+00> : vector<8xf32>
    %470 = vector.multi_reduction <add>, %469, %cst_170 [1] : vector<8x32xf32> to vector<8xf32>
    %471 = vector.shape_cast %470 : vector<8xf32> to vector<8x1xf32>
    %cst_171 = arith.constant 3.200000e+01 : f32
    %472 = vector.broadcast %cst_171 : f32 to vector<8x1xf32>
    %473 = arith.divf %471, %472 : vector<8x1xf32>
    %cst_172 = arith.constant 9.99999974E-6 : f32
    %474 = vector.broadcast %cst_172 : f32 to vector<8x1xf32>
    %475 = arith.addf %473, %474 : vector<8x1xf32>
    %476 = math.rsqrt %475 : vector<8x1xf32>
    %477 = vector.broadcast %476 : vector<8x1xf32> to vector<8x32xf32>
    %478 = arith.mulf %468, %477 : vector<8x32xf32>
    %479 = vector.broadcast %461 : vector<1x32xf32> to vector<8x32xf32>
    %480 = arith.mulf %478, %479 : vector<8x32xf32>
    %481 = vector.broadcast %462 : vector<1x32xf32> to vector<8x32xf32>
    %482 = arith.addf %480, %481 : vector<8x32xf32>
    %c1_173 = arith.constant 1 : index
    %c0_174 = arith.constant 0 : index
    %c0_175 = arith.constant 0 : index
    %483 = vector.load %arg17[%c1_173, %c0_174, %c0_175] : memref<2x32x32xbf16, #tpu.memory_space<vmem>>, vector<1x32x32xbf16>
    %484 = vector.shape_cast %483 : vector<1x32x32xbf16> to vector<32x32xbf16>
    %c1_176 = arith.constant 1 : index
    %c0_177 = arith.constant 0 : index
    %c0_178 = arith.constant 0 : index
    %485 = vector.load %arg18[%c1_176, %c0_177, %c0_178] : memref<2x32x64xbf16, #tpu.memory_space<vmem>>, vector<1x32x64xbf16>
    %486 = vector.shape_cast %485 : vector<1x32x64xbf16> to vector<32x64xbf16>
    %c1_179 = arith.constant 1 : index
    %c0_180 = arith.constant 0 : index
    %c0_181 = arith.constant 0 : index
    %c0_182 = arith.constant 0 : index
    %487 = vector.load %arg19[%c1_179, %c0_180, %c0_181, %c0_182] : memref<2x4x8x32xbf16, #tpu.memory_space<vmem>>, vector<1x4x8x32xbf16>
    %488 = vector.shape_cast %487 : vector<1x4x8x32xbf16> to vector<4x8x32xbf16>
    %c1_183 = arith.constant 1 : index
    %c0_184 = arith.constant 0 : index
    %c0_185 = arith.constant 0 : index
    %489 = vector.load %arg20[%c1_183, %c0_184, %c0_185] : memref<2x1x32xf32, #tpu.memory_space<vmem>>, vector<1x1x32xf32>
    %490 = vector.shape_cast %489 : vector<1x1x32xf32> to vector<1x32xf32>
    %491 = arith.truncf %482 : vector<8x32xf32> to vector<8x32xbf16>
    %cst_186 = arith.constant dense<0.000000e+00> : vector<8x32xf32>
    %492 = tpu.matmul %491, %484, %cst_186 {dimension_numbers = #tpu.dot_dimension_numbers<[1], [0], [0], [1], [0, 0, 1, 1], [], []>} : vector<8x32xbf16>, vector<32x32xbf16>, vector<8x32xf32> -> vector<8x32xf32>
    %493 = arith.truncf %482 : vector<8x32xf32> to vector<8x32xbf16>
    %cst_187 = arith.constant dense<0.000000e+00> : vector<8x64xf32>
    %494 = tpu.matmul %493, %486, %cst_187 {dimension_numbers = #tpu.dot_dimension_numbers<[1], [0], [0], [1], [0, 0, 1, 1], [], []>} : vector<8x32xbf16>, vector<32x64xbf16>, vector<8x64xf32> -> vector<8x64xf32>
    %495 = vector.extract_strided_slice %494 {offsets = [0, 0], sizes = [8, 32], strides = [1, 1]} : vector<8x64xf32> to vector<8x32xf32>
    %496 = vector.extract_strided_slice %494 {offsets = [0, 32], sizes = [8, 32], strides = [1, 1]} : vector<8x64xf32> to vector<8x32xf32>
    %497 = vector.extract_strided_slice %492 {offsets = [0, 0], sizes = [8, 8], strides = [1, 1]} : vector<8x32xf32> to vector<8x8xf32>
    %498 = arith.truncf %497 : vector<8x8xf32> to vector<8x8xbf16>
    %499 = vector.extract_strided_slice %495 {offsets = [0, 0], sizes = [8, 8], strides = [1, 1]} : vector<8x32xf32> to vector<8x8xf32>
    %500 = arith.truncf %499 : vector<8x8xf32> to vector<8x8xbf16>
    %501 = vector.extract_strided_slice %496 {offsets = [0, 0], sizes = [8, 8], strides = [1, 1]} : vector<8x32xf32> to vector<8x8xf32>
    %502 = arith.truncf %501 : vector<8x8xf32> to vector<8x8xbf16>
    %cst_188 = arith.constant dense<0.000000e+00> : vector<8x8xf32>
    %503 = tpu.matmul %498, %500, %cst_188 {dimension_numbers = #tpu.dot_dimension_numbers<[1], [1], [0], [0], [0, 0, 1, 0], [], []>} : vector<8x8xbf16>, vector<8x8xbf16>, vector<8x8xf32> -> vector<8x8xf32>
    %cst_189 = arith.constant dense<0xFF800000> : vector<8xf32>
    %504 = vector.multi_reduction <maximumf>, %503, %cst_189 [1] : vector<8x8xf32> to vector<8xf32>
    %505 = vector.shape_cast %504 : vector<8xf32> to vector<8x1xf32>
    %506 = vector.broadcast %505 : vector<8x1xf32> to vector<8x8xf32>
    %507 = arith.subf %503, %506 : vector<8x8xf32>
    %508 = math.exp %507 : vector<8x8xf32>
    %cst_190 = arith.constant dense<0.000000e+00> : vector<8xf32>
    %509 = vector.multi_reduction <add>, %508, %cst_190 [1] : vector<8x8xf32> to vector<8xf32>
    %510 = vector.shape_cast %509 : vector<8xf32> to vector<8x1xf32>
    %511 = arith.truncf %508 : vector<8x8xf32> to vector<8x8xbf16>
    %cst_191 = arith.constant dense<0.000000e+00> : vector<8x8xf32>
    %512 = tpu.matmul %511, %502, %cst_191 {dimension_numbers = #tpu.dot_dimension_numbers<[1], [0], [0], [1], [0, 0, 1, 1], [], []>} : vector<8x8xbf16>, vector<8x8xbf16>, vector<8x8xf32> -> vector<8x8xf32>
    %513 = tpu.reciprocal %510 {approx = true} : vector<8x1xf32> -> vector<8x1xf32>
    %514 = vector.broadcast %513 : vector<8x1xf32> to vector<8x8xf32>
    %515 = arith.mulf %512, %514 : vector<8x8xf32>
    %516 = arith.truncf %515 : vector<8x8xf32> to vector<8x8xbf16>
    %517 = vector.extract_strided_slice %488 {offsets = [0, 0, 0], sizes = [1, 8, 32], strides = [1, 1, 1]} : vector<4x8x32xbf16> to vector<1x8x32xbf16>
    %518 = vector.shape_cast %517 : vector<1x8x32xbf16> to vector<8x32xbf16>
    %cst_192 = arith.constant dense<0.000000e+00> : vector<8x32xf32>
    %519 = tpu.matmul %516, %518, %cst_192 {dimension_numbers = #tpu.dot_dimension_numbers<[1], [0], [0], [1], [0, 0, 1, 1], [], []>} : vector<8x8xbf16>, vector<8x32xbf16>, vector<8x32xf32> -> vector<8x32xf32>
    %520 = vector.extract_strided_slice %492 {offsets = [0, 8], sizes = [8, 8], strides = [1, 1]} : vector<8x32xf32> to vector<8x8xf32>
    %521 = arith.truncf %520 : vector<8x8xf32> to vector<8x8xbf16>
    %522 = vector.extract_strided_slice %495 {offsets = [0, 8], sizes = [8, 8], strides = [1, 1]} : vector<8x32xf32> to vector<8x8xf32>
    %523 = arith.truncf %522 : vector<8x8xf32> to vector<8x8xbf16>
    %524 = vector.extract_strided_slice %496 {offsets = [0, 8], sizes = [8, 8], strides = [1, 1]} : vector<8x32xf32> to vector<8x8xf32>
    %525 = arith.truncf %524 : vector<8x8xf32> to vector<8x8xbf16>
    %cst_193 = arith.constant dense<0.000000e+00> : vector<8x8xf32>
    %526 = tpu.matmul %521, %523, %cst_193 {dimension_numbers = #tpu.dot_dimension_numbers<[1], [1], [0], [0], [0, 0, 1, 0], [], []>} : vector<8x8xbf16>, vector<8x8xbf16>, vector<8x8xf32> -> vector<8x8xf32>
    %cst_194 = arith.constant dense<0xFF800000> : vector<8xf32>
    %527 = vector.multi_reduction <maximumf>, %526, %cst_194 [1] : vector<8x8xf32> to vector<8xf32>
    %528 = vector.shape_cast %527 : vector<8xf32> to vector<8x1xf32>
    %529 = vector.broadcast %528 : vector<8x1xf32> to vector<8x8xf32>
    %530 = arith.subf %526, %529 : vector<8x8xf32>
    %531 = math.exp %530 : vector<8x8xf32>
    %cst_195 = arith.constant dense<0.000000e+00> : vector<8xf32>
    %532 = vector.multi_reduction <add>, %531, %cst_195 [1] : vector<8x8xf32> to vector<8xf32>
    %533 = vector.shape_cast %532 : vector<8xf32> to vector<8x1xf32>
    %534 = arith.truncf %531 : vector<8x8xf32> to vector<8x8xbf16>
    %cst_196 = arith.constant dense<0.000000e+00> : vector<8x8xf32>
    %535 = tpu.matmul %534, %525, %cst_196 {dimension_numbers = #tpu.dot_dimension_numbers<[1], [0], [0], [1], [0, 0, 1, 1], [], []>} : vector<8x8xbf16>, vector<8x8xbf16>, vector<8x8xf32> -> vector<8x8xf32>
    %536 = tpu.reciprocal %533 {approx = true} : vector<8x1xf32> -> vector<8x1xf32>
    %537 = vector.broadcast %536 : vector<8x1xf32> to vector<8x8xf32>
    %538 = arith.mulf %535, %537 : vector<8x8xf32>
    %539 = arith.truncf %538 : vector<8x8xf32> to vector<8x8xbf16>
    %540 = vector.extract_strided_slice %488 {offsets = [1, 0, 0], sizes = [1, 8, 32], strides = [1, 1, 1]} : vector<4x8x32xbf16> to vector<1x8x32xbf16>
    %541 = vector.shape_cast %540 : vector<1x8x32xbf16> to vector<8x32xbf16>
    %cst_197 = arith.constant dense<0.000000e+00> : vector<8x32xf32>
    %542 = tpu.matmul %539, %541, %cst_197 {dimension_numbers = #tpu.dot_dimension_numbers<[1], [0], [0], [1], [0, 0, 1, 1], [], []>} : vector<8x8xbf16>, vector<8x32xbf16>, vector<8x32xf32> -> vector<8x32xf32>
    %543 = arith.addf %519, %542 : vector<8x32xf32>
    %544 = vector.extract_strided_slice %492 {offsets = [0, 16], sizes = [8, 8], strides = [1, 1]} : vector<8x32xf32> to vector<8x8xf32>
    %545 = arith.truncf %544 : vector<8x8xf32> to vector<8x8xbf16>
    %546 = vector.extract_strided_slice %495 {offsets = [0, 16], sizes = [8, 8], strides = [1, 1]} : vector<8x32xf32> to vector<8x8xf32>
    %547 = arith.truncf %546 : vector<8x8xf32> to vector<8x8xbf16>
    %548 = vector.extract_strided_slice %496 {offsets = [0, 16], sizes = [8, 8], strides = [1, 1]} : vector<8x32xf32> to vector<8x8xf32>
    %549 = arith.truncf %548 : vector<8x8xf32> to vector<8x8xbf16>
    %cst_198 = arith.constant dense<0.000000e+00> : vector<8x8xf32>
    %550 = tpu.matmul %545, %547, %cst_198 {dimension_numbers = #tpu.dot_dimension_numbers<[1], [1], [0], [0], [0, 0, 1, 0], [], []>} : vector<8x8xbf16>, vector<8x8xbf16>, vector<8x8xf32> -> vector<8x8xf32>
    %cst_199 = arith.constant dense<0xFF800000> : vector<8xf32>
    %551 = vector.multi_reduction <maximumf>, %550, %cst_199 [1] : vector<8x8xf32> to vector<8xf32>
    %552 = vector.shape_cast %551 : vector<8xf32> to vector<8x1xf32>
    %553 = vector.broadcast %552 : vector<8x1xf32> to vector<8x8xf32>
    %554 = arith.subf %550, %553 : vector<8x8xf32>
    %555 = math.exp %554 : vector<8x8xf32>
    %cst_200 = arith.constant dense<0.000000e+00> : vector<8xf32>
    %556 = vector.multi_reduction <add>, %555, %cst_200 [1] : vector<8x8xf32> to vector<8xf32>
    %557 = vector.shape_cast %556 : vector<8xf32> to vector<8x1xf32>
    %558 = arith.truncf %555 : vector<8x8xf32> to vector<8x8xbf16>
    %cst_201 = arith.constant dense<0.000000e+00> : vector<8x8xf32>
    %559 = tpu.matmul %558, %549, %cst_201 {dimension_numbers = #tpu.dot_dimension_numbers<[1], [0], [0], [1], [0, 0, 1, 1], [], []>} : vector<8x8xbf16>, vector<8x8xbf16>, vector<8x8xf32> -> vector<8x8xf32>
    %560 = tpu.reciprocal %557 {approx = true} : vector<8x1xf32> -> vector<8x1xf32>
    %561 = vector.broadcast %560 : vector<8x1xf32> to vector<8x8xf32>
    %562 = arith.mulf %559, %561 : vector<8x8xf32>
    %563 = arith.truncf %562 : vector<8x8xf32> to vector<8x8xbf16>
    %564 = vector.extract_strided_slice %488 {offsets = [2, 0, 0], sizes = [1, 8, 32], strides = [1, 1, 1]} : vector<4x8x32xbf16> to vector<1x8x32xbf16>
    %565 = vector.shape_cast %564 : vector<1x8x32xbf16> to vector<8x32xbf16>
    %cst_202 = arith.constant dense<0.000000e+00> : vector<8x32xf32>
    %566 = tpu.matmul %563, %565, %cst_202 {dimension_numbers = #tpu.dot_dimension_numbers<[1], [0], [0], [1], [0, 0, 1, 1], [], []>} : vector<8x8xbf16>, vector<8x32xbf16>, vector<8x32xf32> -> vector<8x32xf32>
    %567 = arith.addf %543, %566 : vector<8x32xf32>
    %568 = vector.extract_strided_slice %492 {offsets = [0, 24], sizes = [8, 8], strides = [1, 1]} : vector<8x32xf32> to vector<8x8xf32>
    %569 = arith.truncf %568 : vector<8x8xf32> to vector<8x8xbf16>
    %570 = vector.extract_strided_slice %495 {offsets = [0, 24], sizes = [8, 8], strides = [1, 1]} : vector<8x32xf32> to vector<8x8xf32>
    %571 = arith.truncf %570 : vector<8x8xf32> to vector<8x8xbf16>
    %572 = vector.extract_strided_slice %496 {offsets = [0, 24], sizes = [8, 8], strides = [1, 1]} : vector<8x32xf32> to vector<8x8xf32>
    %573 = arith.truncf %572 : vector<8x8xf32> to vector<8x8xbf16>
    %cst_203 = arith.constant dense<0.000000e+00> : vector<8x8xf32>
    %574 = tpu.matmul %569, %571, %cst_203 {dimension_numbers = #tpu.dot_dimension_numbers<[1], [1], [0], [0], [0, 0, 1, 0], [], []>} : vector<8x8xbf16>, vector<8x8xbf16>, vector<8x8xf32> -> vector<8x8xf32>
    %cst_204 = arith.constant dense<0xFF800000> : vector<8xf32>
    %575 = vector.multi_reduction <maximumf>, %574, %cst_204 [1] : vector<8x8xf32> to vector<8xf32>
    %576 = vector.shape_cast %575 : vector<8xf32> to vector<8x1xf32>
    %577 = vector.broadcast %576 : vector<8x1xf32> to vector<8x8xf32>
    %578 = arith.subf %574, %577 : vector<8x8xf32>
    %579 = math.exp %578 : vector<8x8xf32>
    %cst_205 = arith.constant dense<0.000000e+00> : vector<8xf32>
    %580 = vector.multi_reduction <add>, %579, %cst_205 [1] : vector<8x8xf32> to vector<8xf32>
    %581 = vector.shape_cast %580 : vector<8xf32> to vector<8x1xf32>
    %582 = arith.truncf %579 : vector<8x8xf32> to vector<8x8xbf16>
    %cst_206 = arith.constant dense<0.000000e+00> : vector<8x8xf32>
    %583 = tpu.matmul %582, %573, %cst_206 {dimension_numbers = #tpu.dot_dimension_numbers<[1], [0], [0], [1], [0, 0, 1, 1], [], []>} : vector<8x8xbf16>, vector<8x8xbf16>, vector<8x8xf32> -> vector<8x8xf32>
    %584 = tpu.reciprocal %581 {approx = true} : vector<8x1xf32> -> vector<8x1xf32>
    %585 = vector.broadcast %584 : vector<8x1xf32> to vector<8x8xf32>
    %586 = arith.mulf %583, %585 : vector<8x8xf32>
    %587 = arith.truncf %586 : vector<8x8xf32> to vector<8x8xbf16>
    %588 = vector.extract_strided_slice %488 {offsets = [3, 0, 0], sizes = [1, 8, 32], strides = [1, 1, 1]} : vector<4x8x32xbf16> to vector<1x8x32xbf16>
    %589 = vector.shape_cast %588 : vector<1x8x32xbf16> to vector<8x32xbf16>
    %cst_207 = arith.constant dense<0.000000e+00> : vector<8x32xf32>
    %590 = tpu.matmul %587, %589, %cst_207 {dimension_numbers = #tpu.dot_dimension_numbers<[1], [0], [0], [1], [0, 0, 1, 1], [], []>} : vector<8x8xbf16>, vector<8x32xbf16>, vector<8x32xf32> -> vector<8x32xf32>
    %591 = arith.addf %567, %590 : vector<8x32xf32>
    %592 = vector.broadcast %490 : vector<1x32xf32> to vector<8x32xf32>
    %593 = arith.addf %591, %592 : vector<8x32xf32>
    %594 = arith.addf %458, %593 : vector<8x32xf32>
    %595 = vector.extract_strided_slice %460 {offsets = [2, 0], sizes = [1, 32], strides = [1, 1]} : vector<4x32xf32> to vector<1x32xf32>
    %596 = vector.extract_strided_slice %460 {offsets = [3, 0], sizes = [1, 32], strides = [1, 1]} : vector<4x32xf32> to vector<1x32xf32>
    %cst_208 = arith.constant dense<0.000000e+00> : vector<8xf32>
    %597 = vector.multi_reduction <add>, %594, %cst_208 [1] : vector<8x32xf32> to vector<8xf32>
    %598 = vector.shape_cast %597 : vector<8xf32> to vector<8x1xf32>
    %cst_209 = arith.constant 3.200000e+01 : f32
    %599 = vector.broadcast %cst_209 : f32 to vector<8x1xf32>
    %600 = arith.divf %598, %599 : vector<8x1xf32>
    %601 = vector.broadcast %600 : vector<8x1xf32> to vector<8x32xf32>
    %602 = arith.subf %594, %601 : vector<8x32xf32>
    %603 = arith.mulf %602, %602 : vector<8x32xf32>
    %cst_210 = arith.constant dense<0.000000e+00> : vector<8xf32>
    %604 = vector.multi_reduction <add>, %603, %cst_210 [1] : vector<8x32xf32> to vector<8xf32>
    %605 = vector.shape_cast %604 : vector<8xf32> to vector<8x1xf32>
    %cst_211 = arith.constant 3.200000e+01 : f32
    %606 = vector.broadcast %cst_211 : f32 to vector<8x1xf32>
    %607 = arith.divf %605, %606 : vector<8x1xf32>
    %cst_212 = arith.constant 9.99999974E-6 : f32
    %608 = vector.broadcast %cst_212 : f32 to vector<8x1xf32>
    %609 = arith.addf %607, %608 : vector<8x1xf32>
    %610 = math.rsqrt %609 : vector<8x1xf32>
    %611 = vector.broadcast %610 : vector<8x1xf32> to vector<8x32xf32>
    %612 = arith.mulf %602, %611 : vector<8x32xf32>
    %613 = vector.broadcast %595 : vector<1x32xf32> to vector<8x32xf32>
    %614 = arith.mulf %612, %613 : vector<8x32xf32>
    %615 = vector.broadcast %596 : vector<1x32xf32> to vector<8x32xf32>
    %616 = arith.addf %614, %615 : vector<8x32xf32>
    %c1_213 = arith.constant 1 : index
    %c0_214 = arith.constant 0 : index
    %c0_215 = arith.constant 0 : index
    %617 = vector.load %arg21[%c1_213, %c0_214, %c0_215] : memref<2x32x128xbf16, #tpu.memory_space<vmem>>, vector<1x32x128xbf16>
    %618 = vector.shape_cast %617 : vector<1x32x128xbf16> to vector<32x128xbf16>
    %c1_216 = arith.constant 1 : index
    %c0_217 = arith.constant 0 : index
    %c0_218 = arith.constant 0 : index
    %619 = vector.load %arg22[%c1_216, %c0_217, %c0_218] : memref<2x1x128xf32, #tpu.memory_space<vmem>>, vector<1x1x128xf32>
    %620 = vector.shape_cast %619 : vector<1x1x128xf32> to vector<1x128xf32>
    %c1_219 = arith.constant 1 : index
    %c0_220 = arith.constant 0 : index
    %c0_221 = arith.constant 0 : index
    %621 = vector.load %arg23[%c1_219, %c0_220, %c0_221] : memref<2x128x32xbf16, #tpu.memory_space<vmem>>, vector<1x128x32xbf16>
    %622 = vector.shape_cast %621 : vector<1x128x32xbf16> to vector<128x32xbf16>
    %c1_222 = arith.constant 1 : index
    %c0_223 = arith.constant 0 : index
    %c0_224 = arith.constant 0 : index
    %623 = vector.load %arg24[%c1_222, %c0_223, %c0_224] : memref<2x1x32xf32, #tpu.memory_space<vmem>>, vector<1x1x32xf32>
    %624 = vector.shape_cast %623 : vector<1x1x32xf32> to vector<1x32xf32>
    %625 = arith.truncf %616 : vector<8x32xf32> to vector<8x32xbf16>
    %cst_225 = arith.constant dense<0.000000e+00> : vector<8x128xf32>
    %626 = tpu.matmul %625, %618, %cst_225 {dimension_numbers = #tpu.dot_dimension_numbers<[1], [0], [0], [1], [0, 0, 1, 1], [], []>} : vector<8x32xbf16>, vector<32x128xbf16>, vector<8x128xf32> -> vector<8x128xf32>
    %627 = vector.broadcast %620 : vector<1x128xf32> to vector<8x128xf32>
    %628 = arith.addf %626, %627 : vector<8x128xf32>
    %cst_226 = arith.constant 5.000000e-01 : f32
    %629 = vector.broadcast %cst_226 : f32 to vector<8x128xf32>
    %630 = arith.mulf %629, %628 : vector<8x128xf32>
    %cst_227 = arith.constant 0.707106769 : f32
    %631 = vector.broadcast %cst_227 : f32 to vector<8x128xf32>
    %632 = arith.mulf %628, %631 : vector<8x128xf32>
    %cst_228 = arith.constant 0.000000e+00 : f32
    %633 = vector.broadcast %cst_228 : f32 to vector<8x128xf32>
    %634 = arith.cmpf oge, %632, %633 : vector<8x128xf32>
    %cst_229 = arith.constant 1.000000e+00 : f32
    %cst_230 = arith.constant -1.000000e+00 : f32
    %635 = vector.broadcast %cst_229 : f32 to vector<8x128xf32>
    %636 = vector.broadcast %cst_230 : f32 to vector<8x128xf32>
    %637 = arith.select %634, %635, %636 : vector<8x128xi1>, vector<8x128xf32>
    %638 = math.absf %632 : vector<8x128xf32>
    %cst_231 = arith.constant 0.327591091 : f32
    %639 = vector.broadcast %cst_231 : f32 to vector<8x128xf32>
    %640 = arith.mulf %639, %638 : vector<8x128xf32>
    %cst_232 = arith.constant 1.000000e+00 : f32
    %641 = vector.broadcast %cst_232 : f32 to vector<8x128xf32>
    %642 = arith.addf %641, %640 : vector<8x128xf32>
    %cst_233 = arith.constant 1.000000e+00 : f32
    %643 = vector.broadcast %cst_233 : f32 to vector<8x128xf32>
    %644 = arith.divf %643, %642 : vector<8x128xf32>
    %cst_234 = arith.constant 1.06140542 : f32
    %645 = vector.broadcast %cst_234 : f32 to vector<8x128xf32>
    %646 = arith.mulf %645, %644 : vector<8x128xf32>
    %cst_235 = arith.constant -1.45315206 : f32
    %647 = vector.broadcast %cst_235 : f32 to vector<8x128xf32>
    %648 = arith.addf %646, %647 : vector<8x128xf32>
    %649 = arith.mulf %648, %644 : vector<8x128xf32>
    %cst_236 = arith.constant 1.42141378 : f32
    %650 = vector.broadcast %cst_236 : f32 to vector<8x128xf32>
    %651 = arith.addf %649, %650 : vector<8x128xf32>
    %652 = arith.mulf %651, %644 : vector<8x128xf32>
    %cst_237 = arith.constant -0.284496725 : f32
    %653 = vector.broadcast %cst_237 : f32 to vector<8x128xf32>
    %654 = arith.addf %652, %653 : vector<8x128xf32>
    %655 = arith.mulf %654, %644 : vector<8x128xf32>
    %cst_238 = arith.constant 0.254829586 : f32
    %656 = vector.broadcast %cst_238 : f32 to vector<8x128xf32>
    %657 = arith.addf %655, %656 : vector<8x128xf32>
    %658 = arith.mulf %657, %644 : vector<8x128xf32>
    %cst_239 = arith.constant 0.000000e+00 : f32
    %659 = vector.broadcast %cst_239 : f32 to vector<8x128xf32>
    %660 = arith.subf %659, %638 : vector<8x128xf32>
    %661 = arith.mulf %660, %638 : vector<8x128xf32>
    %662 = math.exp %661 : vector<8x128xf32>
    %663 = arith.mulf %658, %662 : vector<8x128xf32>
    %cst_240 = arith.constant 1.000000e+00 : f32
    %664 = vector.broadcast %cst_240 : f32 to vector<8x128xf32>
    %665 = arith.subf %664, %663 : vector<8x128xf32>
    %666 = arith.mulf %637, %665 : vector<8x128xf32>
    %cst_241 = arith.constant 1.000000e+00 : f32
    %667 = vector.broadcast %cst_241 : f32 to vector<8x128xf32>
    %668 = arith.addf %667, %666 : vector<8x128xf32>
    %669 = arith.mulf %630, %668 : vector<8x128xf32>
    %670 = arith.truncf %669 : vector<8x128xf32> to vector<8x128xbf16>
    %cst_242 = arith.constant dense<0.000000e+00> : vector<8x32xf32>
    %671 = tpu.matmul %670, %622, %cst_242 {dimension_numbers = #tpu.dot_dimension_numbers<[1], [0], [0], [1], [0, 0, 1, 1], [], []>} : vector<8x128xbf16>, vector<128x32xbf16>, vector<8x32xf32> -> vector<8x32xf32>
    %672 = vector.broadcast %624 : vector<1x32xf32> to vector<8x32xf32>
    %673 = arith.addf %671, %672 : vector<8x32xf32>
    %674 = arith.addf %594, %673 : vector<8x32xf32>
    %c0_243 = arith.constant 0 : index
    %c0_244 = arith.constant 0 : index
    %675 = vector.load %arg25[%c0_243, %c0_244] : memref<2x32xf32, #tpu.memory_space<vmem>>, vector<2x32xf32>
    %676 = vector.extract_strided_slice %675 {offsets = [0, 0], sizes = [1, 32], strides = [1, 1]} : vector<2x32xf32> to vector<1x32xf32>
    %677 = vector.extract_strided_slice %675 {offsets = [1, 0], sizes = [1, 32], strides = [1, 1]} : vector<2x32xf32> to vector<1x32xf32>
    %cst_245 = arith.constant dense<0.000000e+00> : vector<8xf32>
    %678 = vector.multi_reduction <add>, %674, %cst_245 [1] : vector<8x32xf32> to vector<8xf32>
    %679 = vector.shape_cast %678 : vector<8xf32> to vector<8x1xf32>
    %cst_246 = arith.constant 3.200000e+01 : f32
    %680 = vector.broadcast %cst_246 : f32 to vector<8x1xf32>
    %681 = arith.divf %679, %680 : vector<8x1xf32>
    %682 = vector.broadcast %681 : vector<8x1xf32> to vector<8x32xf32>
    %683 = arith.subf %674, %682 : vector<8x32xf32>
    %684 = arith.mulf %683, %683 : vector<8x32xf32>
    %cst_247 = arith.constant dense<0.000000e+00> : vector<8xf32>
    %685 = vector.multi_reduction <add>, %684, %cst_247 [1] : vector<8x32xf32> to vector<8xf32>
    %686 = vector.shape_cast %685 : vector<8xf32> to vector<8x1xf32>
    %cst_248 = arith.constant 3.200000e+01 : f32
    %687 = vector.broadcast %cst_248 : f32 to vector<8x1xf32>
    %688 = arith.divf %686, %687 : vector<8x1xf32>
    %cst_249 = arith.constant 9.99999974E-6 : f32
    %689 = vector.broadcast %cst_249 : f32 to vector<8x1xf32>
    %690 = arith.addf %688, %689 : vector<8x1xf32>
    %691 = math.rsqrt %690 : vector<8x1xf32>
    %692 = vector.broadcast %691 : vector<8x1xf32> to vector<8x32xf32>
    %693 = arith.mulf %683, %692 : vector<8x32xf32>
    %694 = vector.broadcast %676 : vector<1x32xf32> to vector<8x32xf32>
    %695 = arith.mulf %693, %694 : vector<8x32xf32>
    %696 = vector.broadcast %677 : vector<1x32xf32> to vector<8x32xf32>
    %697 = arith.addf %695, %696 : vector<8x32xf32>
    %c0_250 = arith.constant 0 : index
    %c0_251 = arith.constant 0 : index
    %c0_252 = arith.constant 0 : index
    %698 = vector.load %arg26[%c0_250, %c0_251, %c0_252] : memref<1x8x32xf32, #tpu.memory_space<vmem>>, vector<1x8x32xf32>
    %699 = vector.shape_cast %698 : vector<1x8x32xf32> to vector<8x32xf32>
    %700 = vector.shape_cast %697 : vector<8x32xf32> to vector<1x8x32xf32>
    tpu.vector_store %arg26[%c0_250, %c0_251, %c0_252], %700 {strides = array<i32>} : memref<1x8x32xf32, #tpu.memory_space<vmem>>, vector<1x8x32xf32>,
    return
  }
  func.func @transform_0(%arg0: i32) -> (i32, i32, i32) {
    %c0_i32 = arith.constant 0 : i32
    %c0_i32_0 = arith.constant 0 : i32
    %c0_i32_1 = arith.constant 0 : i32
    return %arg0, %c0_i32, %c0_i32_0 : i32, i32, i32
  }
  func.func @transform_1(%arg0: i32) -> (i32, i32, i32) {
    %c0_i32 = arith.constant 0 : i32
    %c0_i32_0 = arith.constant 0 : i32
    %c0_i32_1 = arith.constant 0 : i32
    return %arg0, %c0_i32, %c0_i32_0 : i32, i32, i32
  }
  func.func @transform_2(%arg0: i32) -> (i32, i32) {
    %c0_i32 = arith.constant 0 : i32
    %c0_i32_0 = arith.constant 0 : i32
    %c0_i32_1 = arith.constant 0 : i32
    return %c0_i32, %c0_i32_0 : i32, i32
  }
  func.func @transform_3(%arg0: i32) -> (i32, i32) {
    %c0_i32 = arith.constant 0 : i32
    %c0_i32_0 = arith.constant 0 : i32
    %c0_i32_1 = arith.constant 0 : i32
    return %c0_i32, %c0_i32_0 : i32, i32
  }
  func.func @transform_4(%arg0: i32) -> (i32, i32) {
    %c0_i32 = arith.constant 0 : i32
    %c0_i32_0 = arith.constant 0 : i32
    %c0_i32_1 = arith.constant 0 : i32
    return %c0_i32, %c0_i32_0 : i32, i32
  }
  func.func @transform_5(%arg0: i32) -> (i32, i32) {
    %c0_i32 = arith.constant 0 : i32
    %c0_i32_0 = arith.constant 0 : i32
    %c0_i32_1 = arith.constant 0 : i32
    return %c0_i32, %c0_i32_0 : i32, i32
  }
  func.func @transform_6(%arg0: i32) -> (i32, i32) {
    %c0_i32 = arith.constant 0 : i32
    %c0_i32_0 = arith.constant 0 : i32
    %c0_i32_1 = arith.constant 0 : i32
    return %c0_i32, %c0_i32_0 : i32, i32
  }
  func.func @transform_7(%arg0: i32) -> (i32, i32) {
    %c0_i32 = arith.constant 0 : i32
    %c0_i32_0 = arith.constant 0 : i32
    %c0_i32_1 = arith.constant 0 : i32
    return %c0_i32, %c0_i32_0 : i32, i32
  }
  func.func @transform_8(%arg0: i32) -> (i32, i32) {
    %c0_i32 = arith.constant 0 : i32
    %c0_i32_0 = arith.constant 0 : i32
    %c0_i32_1 = arith.constant 0 : i32
    return %c0_i32, %c0_i32_0 : i32, i32
  }
  func.func @transform_9(%arg0: i32) -> (i32, i32, i32) {
    %c0_i32 = arith.constant 0 : i32
    %c0_i32_0 = arith.constant 0 : i32
    %c0_i32_1 = arith.constant 0 : i32
    %c0_i32_2 = arith.constant 0 : i32
    return %c0_i32, %c0_i32_0, %c0_i32_1 : i32, i32, i32
  }
  func.func @transform_10(%arg0: i32) -> (i32, i32) {
    %c0_i32 = arith.constant 0 : i32
    %c0_i32_0 = arith.constant 0 : i32
    %c0_i32_1 = arith.constant 0 : i32
    return %c0_i32, %c0_i32_0 : i32, i32
  }
  func.func @transform_11(%arg0: i32) -> (i32, i32) {
    %c0_i32 = arith.constant 0 : i32
    %c0_i32_0 = arith.constant 0 : i32
    %c0_i32_1 = arith.constant 0 : i32
    return %c0_i32, %c0_i32_0 : i32, i32
  }
  func.func @transform_12(%arg0: i32) -> (i32, i32) {
    %c0_i32 = arith.constant 0 : i32
    %c0_i32_0 = arith.constant 0 : i32
    %c0_i32_1 = arith.constant 0 : i32
    return %c0_i32, %c0_i32_0 : i32, i32
  }
  func.func @transform_13(%arg0: i32) -> (i32, i32) {
    %c0_i32 = arith.constant 0 : i32
    %c0_i32_0 = arith.constant 0 : i32
    %c0_i32_1 = arith.constant 0 : i32
    return %c0_i32, %c0_i32_0 : i32, i32
  }
  func.func @transform_14(%arg0: i32) -> (i32, i32) {
    %c0_i32 = arith.constant 0 : i32
    %c0_i32_0 = arith.constant 0 : i32
    %c0_i32_1 = arith.constant 0 : i32
    return %c0_i32, %c0_i32_0 : i32, i32
  }
  func.func @transform_15(%arg0: i32) -> (i32, i32, i32) {
    %c0_i32 = arith.constant 0 : i32
    %c0_i32_0 = arith.constant 0 : i32
    %c0_i32_1 = arith.constant 0 : i32
    %c0_i32_2 = arith.constant 0 : i32
    return %c0_i32, %c0_i32_0, %c0_i32_1 : i32, i32, i32
  }
  func.func @transform_16(%arg0: i32) -> (i32, i32, i32) {
    %c0_i32 = arith.constant 0 : i32
    %c0_i32_0 = arith.constant 0 : i32
    %c0_i32_1 = arith.constant 0 : i32
    %c0_i32_2 = arith.constant 0 : i32
    return %c0_i32, %c0_i32_0, %c0_i32_1 : i32, i32, i32
  }
  func.func @transform_17(%arg0: i32) -> (i32, i32, i32) {
    %c0_i32 = arith.constant 0 : i32
    %c0_i32_0 = arith.constant 0 : i32
    %c0_i32_1 = arith.constant 0 : i32
    %c0_i32_2 = arith.constant 0 : i32
    return %c0_i32, %c0_i32_0, %c0_i32_1 : i32, i32, i32
  }
  func.func @transform_18(%arg0: i32) -> (i32, i32, i32, i32) {
    %c0_i32 = arith.constant 0 : i32
    %c0_i32_0 = arith.constant 0 : i32
    %c0_i32_1 = arith.constant 0 : i32
    %c0_i32_2 = arith.constant 0 : i32
    %c0_i32_3 = arith.constant 0 : i32
    return %c0_i32, %c0_i32_0, %c0_i32_1, %c0_i32_2 : i32, i32, i32, i32
  }
  func.func @transform_19(%arg0: i32) -> (i32, i32, i32) {
    %c0_i32 = arith.constant 0 : i32
    %c0_i32_0 = arith.constant 0 : i32
    %c0_i32_1 = arith.constant 0 : i32
    %c0_i32_2 = arith.constant 0 : i32
    return %c0_i32, %c0_i32_0, %c0_i32_1 : i32, i32, i32
  }
  func.func @transform_20(%arg0: i32) -> (i32, i32, i32) {
    %c0_i32 = arith.constant 0 : i32
    %c0_i32_0 = arith.constant 0 : i32
    %c0_i32_1 = arith.constant 0 : i32
    %c0_i32_2 = arith.constant 0 : i32
    return %c0_i32, %c0_i32_0, %c0_i32_1 : i32, i32, i32
  }
  func.func @transform_21(%arg0: i32) -> (i32, i32, i32) {
    %c0_i32 = arith.constant 0 : i32
    %c0_i32_0 = arith.constant 0 : i32
    %c0_i32_1 = arith.constant 0 : i32
    %c0_i32_2 = arith.constant 0 : i32
    return %c0_i32, %c0_i32_0, %c0_i32_1 : i32, i32, i32
  }
  func.func @transform_22(%arg0: i32) -> (i32, i32, i32) {
    %c0_i32 = arith.constant 0 : i32
    %c0_i32_0 = arith.constant 0 : i32
    %c0_i32_1 = arith.constant 0 : i32
    %c0_i32_2 = arith.constant 0 : i32
    return %c0_i32, %c0_i32_0, %c0_i32_1 : i32, i32, i32
  }
  func.func @transform_23(%arg0: i32) -> (i32, i32, i32) {
    %c0_i32 = arith.constant 0 : i32
    %c0_i32_0 = arith.constant 0 : i32
    %c0_i32_1 = arith.constant 0 : i32
    %c0_i32_2 = arith.constant 0 : i32
    return %c0_i32, %c0_i32_0, %c0_i32_1 : i32, i32, i32
  }
  func.func @transform_24(%arg0: i32) -> (i32, i32) {
    %c0_i32 = arith.constant 0 : i32
    %c0_i32_0 = arith.constant 0 : i32
    %c0_i32_1 = arith.constant 0 : i32
    return %c0_i32, %c0_i32_0 : i32, i32
  }
  func.func @transform_25(%arg0: i32) -> (i32, i32, i32) {
    %c0_i32 = arith.constant 0 : i32
    %c0_i32_0 = arith.constant 0 : i32
    %c0_i32_1 = arith.constant 0 : i32
    return %arg0, %c0_i32, %c0_i32_0 : i32, i32, i32
  }
}

</mosaic_0001>

<llo_original>
// kernel: cross_attention_encoder_forward.1
$region0: #{cross_attention_encoder_forward.1}
  #allocation0 [shape = 'u32[]', space=smem, size = 0x4, offset = 0x4, fixed_abs, tag = 'smem constant byte address 0x4 - core index']
  #allocation1 [shape = 'u32[144,128]{1,0:T(1,128)}', space=vmem, size = 0x12000, scoped, tag = 'internal scratch']
  %s0 = inlined_call_operand.vmem [shape: f32[2,8,128], index: 0, kind: input, shape index: {}]
  %s1 = inlined_call_operand.vmem [shape: f32[2,16,128], index: 1, kind: input, shape index: {}]
  %s2 = inlined_call_operand.vmem [shape: f32[128,32], index: 2, kind: input, shape index: {}]
  %s3 = inlined_call_operand.vmem [shape: f32[1,32], index: 3, kind: input, shape index: {}]
  %s4 = inlined_call_operand.vmem [shape: f32[128,32], index: 4, kind: input, shape index: {}]
  %s5 = inlined_call_operand.vmem [shape: f32[1,32], index: 5, kind: input, shape index: {}]
  %s6 = inlined_call_operand.vmem [shape: f32[6,32], index: 6, kind: input, shape index: {}]
  %s7 = inlined_call_operand.vmem [shape: bf16[32,32], index: 7, kind: input, shape index: {}]
  %s8 = inlined_call_operand.vmem [shape: bf16[32,64], index: 8, kind: input, shape index: {}]
  %s9 = inlined_call_operand.vmem [shape: bf16[4,8,32], index: 9, kind: input, shape index: {}]
  %s10 = inlined_call_operand.vmem [shape: f32[1,32], index: 10, kind: input, shape index: {}]
  %s11 = inlined_call_operand.vmem [shape: bf16[32,128], index: 11, kind: input, shape index: {}]
  %s12 = inlined_call_operand.vmem [shape: f32[1,128], index: 12, kind: input, shape index: {}]
  %s13 = inlined_call_operand.vmem [shape: bf16[128,32], index: 13, kind: input, shape index: {}]
  %s14 = inlined_call_operand.vmem [shape: f32[1,32], index: 14, kind: input, shape index: {}]
  %s15 = inlined_call_operand.vmem [shape: f32[2,4,32], index: 15, kind: input, shape index: {}]
  %s16 = inlined_call_operand.vmem [shape: bf16[2,32,32], index: 16, kind: input, shape index: {}]
  %s17 = inlined_call_operand.vmem [shape: bf16[2,32,64], index: 17, kind: input, shape index: {}]
  %s18 = inlined_call_operand.vmem [shape: bf16[2,4,8,32], index: 18, kind: input, shape index: {}]
  %s19 = inlined_call_operand.vmem [shape: f32[2,1,32], index: 19, kind: input, shape index: {}]
  %s20 = inlined_call_operand.vmem [shape: bf16[2,32,128], index: 20, kind: input, shape index: {}]
  %s21 = inlined_call_operand.vmem [shape: f32[2,1,128], index: 21, kind: input, shape index: {}]
  %s22 = inlined_call_operand.vmem [shape: bf16[2,128,32], index: 22, kind: input, shape index: {}]
  %s23 = inlined_call_operand.vmem [shape: f32[2,1,32], index: 23, kind: input, shape index: {}]
  %s24 = inlined_call_operand.vmem [shape: f32[2,32], index: 24, kind: input, shape index: {}]
  %s25 = inlined_call_operand.hbm [shape: f32[2,8,32], index: 25, kind: output, shape index: {}]
  %s26 = sld [smem:[#allocation0]]
  $region133: #{cross_attention_encoder_forward.1} parent=0
    _
  %s28 = ssub.s32 1, %s26
  %s29 = scalar_select 0, %s28, %s26
  $region1: #{cross_attention_encoder_forward.1} parent=0
    #allocation2 [shape = 'u8[8192]{0}', space=vmem, size = 0x2000, scoped, tag = 'output window, operand 0']
    #allocation3 [shape = 's32[2]{0}', space=sflag, size = 0x8, scoped, tag = 'scoped memory for cross_attention_encoder_forward.1']
    %30 = vsyncpa [#allocation3], 0
    %s31 = scalar_lea.sflag [#allocation3], 1
    %32 = vsyncpa %s31, 0
    loop: start=0, step=1, limit=4
    $region2: #{cross_attention_encoder_forward.1} parent=1 // loop_pre_header
      _
    $region3: #{cross_attention_encoder_forward.1} parent=1 // loop_header
      %s34 = sphi 0, %s38
      %p35 = scmp.ge.s32.totalorder %s34, 4
      %s44 = sphi 0, %s46
      %s47 = sphi 0, %s44
      %s48 = sphi 0, %s47
      %s64 = sphi 0, %s48
      %s70 = sphi 0, %s72
      %s73 = sphi 0, %s70
      %s74 = sphi 0, %s73
      %s90 = sphi 0, %s74
      %s94 = sphi 0, %s94
      %s96 = sphi 0, %s94
      %s97 = sphi 0, %s96
      %s111 = sphi 0, %s97
      %s115 = sphi 0, %s115
      %s117 = sphi 0, %s115
      %s118 = sphi 0, %s117
      %s132 = sphi 0, %s118
      %s136 = sphi 0, %s136
      %s138 = sphi 0, %s136
      %s139 = sphi 0, %s138
      %s153 = sphi 0, %s139
      %s157 = sphi 0, %s157
      %s159 = sphi 0, %s157
      %s160 = sphi 0, %s159
      %s174 = sphi 0, %s160
      %s178 = sphi 0, %s178
      %s180 = sphi 0, %s178
      %s181 = sphi 0, %s180
      %s195 = sphi 0, %s181
      %s199 = sphi 0, %s199
      %s201 = sphi 0, %s199
      %s202 = sphi 0, %s201
      %s216 = sphi 0, %s202
      %s220 = sphi 0, %s220
      %s222 = sphi 0, %s220
      %s223 = sphi 0, %s222
      %s237 = sphi 0, %s223
      %s241 = sphi 0, %s241
      %s243 = sphi 0, %s241
      %s244 = sphi 0, %s243
      %s258 = sphi 0, %s244
      %s262 = sphi 0, %s262
      %s264 = sphi 0, %s262
      %s265 = sphi 0, %s264
      %s279 = sphi 0, %s265
      %s283 = sphi 0, %s283
      %s285 = sphi 0, %s283
      %s286 = sphi 0, %s285
      %s300 = sphi 0, %s286
      %s304 = sphi 0, %s304
      %s306 = sphi 0, %s304
      %s307 = sphi 0, %s306
      %s321 = sphi 0, %s307
      %s325 = sphi 0, %s325
      %s327 = sphi 0, %s325
      %s328 = sphi 0, %s327
      %s342 = sphi 0, %s328
      %s346 = sphi 0, %s346
      %s348 = sphi 0, %s346
      %s349 = sphi 0, %s348
      %s363 = sphi 0, %s349
      %s367 = sphi 0, %s367
      %s369 = sphi 0, %s367
      %s370 = sphi 0, %s369
      %s384 = sphi 0, %s370
      %s388 = sphi 0, %s388
      %s390 = sphi 0, %s388
      %s391 = sphi 0, %s390
      %s405 = sphi 0, %s391
      %s409 = sphi 0, %s409
      %s411 = sphi 0, %s409
      %s412 = sphi 0, %s411
      %s426 = sphi 0, %s412
      %s430 = sphi 0, %s430
      %s432 = sphi 0, %s430
      %s433 = sphi 0, %s432
      %s447 = sphi 0, %s433
      %s451 = sphi 0, %s451
      %s453 = sphi 0, %s451
      %s454 = sphi 0, %s453
      %s468 = sphi 0, %s454
      %s472 = sphi 0, %s472
      %s474 = sphi 0, %s472
      %s475 = sphi 0, %s474
      %s489 = sphi 0, %s475
      %s493 = sphi 0, %s493
      %s495 = sphi 0, %s493
      %s496 = sphi 0, %s495
      %s510 = sphi 0, %s496
      %s514 = sphi 0, %s514
      %s516 = sphi 0, %s514
      %s517 = sphi 0, %s516
      %s531 = sphi 0, %s517
      %s535 = sphi 0, %s535
      %s537 = sphi 0, %s535
      %s538 = sphi 0, %s537
      %s552 = sphi 0, %s538
      %s556 = sphi 0, %s556
      %s558 = sphi 0, %s556
      %s559 = sphi 0, %s558
      %s573 = sphi 0, %s559
      %s579 = sphi 0, %s581
      %s582 = sphi 0, %s579
      %s583 = sphi 0, %s582
      %s599 = sphi 0, %s583
    $region4: #{cross_attention_encoder_forward.1} parent=1 // loop_header_branch
      %37 = sbr.rel (%p35) target = $region8
    $region5: #{cross_attention_encoder_forward.1} parent=1 // loop_body
      %s39 = ssub.s32 %s34, 1
      %s40 = ssub.s32 %s34, 2
      %s41 = sadd.s32 %s34, 1
      %s42 = ssub.s32 %s34, %s41
      %p43 = scmp.eq.s32.totalorder %s42, 0
      %s45 = sadd.s32 %s44, 1
      %s46 = scalar_select %p43, %s44, %s45
      %p49 = pneg %p43
      %p50 = scmp.eq.s32.totalorder %s34, 1
      %p51 = por %p49, %p50
      %p52 = scmp.ne.s32.totalorder %s44, %s47
      %p53 = scmp.eq.s32.totalorder %s34, 0
      %p54 = por %p52, %p53
      %p55 = scmp.ne.s32.totalorder %s44, %s47
      %p56 = scmp.eq.s32.totalorder %s39, 1
      %p57 = por %p55, %p56
      %p58 = scmp.ne.s32.totalorder %s47, %s48
      %p59 = scmp.eq.s32.totalorder %s39, 0
      %p60 = por %p58, %p59
      %p61 = scmp.ne.s32.totalorder %s47, %s48
      %p62 = scmp.eq.s32.totalorder %s40, 1
      %p63 = por %p61, %p62
      %p65 = scmp.ne.s32.totalorder %s48, %s64
      %p66 = scmp.eq.s32.totalorder %s40, 0
      %p67 = por %p65, %p66
      %s68 = ssub.s32 %s34, %s41
      %p69 = scmp.eq.s32.totalorder %s68, 0
      %s71 = sadd.s32 %s70, 1
      %s72 = scalar_select %p69, %s70, %s71
      %p75 = pneg %p69
      %p76 = scmp.eq.s32.totalorder %s34, 1
      %p77 = por %p75, %p76
      %p78 = scmp.ne.s32.totalorder %s70, %s73
      %p79 = scmp.eq.s32.totalorder %s34, 0
      %p80 = por %p78, %p79
      %p81 = scmp.ne.s32.totalorder %s70, %s73
      %p82 = scmp.eq.s32.totalorder %s39, 1
      %p83 = por %p81, %p82
      %p84 = scmp.ne.s32.totalorder %s73, %s74
      %p85 = scmp.eq.s32.totalorder %s39, 0
      %p86 = por %p84, %p85
      %p87 = scmp.ne.s32.totalorder %s73, %s74
      %p88 = scmp.eq.s32.totalorder %s40, 1
      %p89 = por %p87, %p88
      %p91 = scmp.ne.s32.totalorder %s74, %s90
      %p92 = scmp.eq.s32.totalorder %s40, 0
      %p93 = por %p91, %p92
      %s95 = sadd.s32 %s94, 1
      %p98 = scmp.eq.s32.totalorder %s34, 1
      %p99 = scmp.ne.s32.totalorder %s94, %s96
      %p100 = scmp.eq.s32.totalorder %s34, 0
      %p101 = por %p99, %p100
      %p102 = scmp.ne.s32.totalorder %s94, %s96
      %p103 = scmp.eq.s32.totalorder %s39, 1
      %p104 = por %p102, %p103
      %p105 = scmp.ne.s32.totalorder %s96, %s97
      %p106 = scmp.eq.s32.totalorder %s39, 0
      %p107 = por %p105, %p106
      %p108 = scmp.ne.s32.totalorder %s96, %s97
      %p109 = scmp.eq.s32.totalorder %s40, 1
      %p110 = por %p108, %p109
      %p112 = scmp.ne.s32.totalorder %s97, %s111
      %p113 = scmp.eq.s32.totalorder %s40, 0
      %p114 = por %p112, %p113
      %s116 = sadd.s32 %s115, 1
      %p119 = scmp.eq.s32.totalorder %s34, 1
      %p120 = scmp.ne.s32.totalorder %s115, %s117
      %p121 = scmp.eq.s32.totalorder %s34, 0
      %p122 = por %p120, %p121
      %p123 = scmp.ne.s32.totalorder %s115, %s117
      %p124 = scmp.eq.s32.totalorder %s39, 1
      %p125 = por %p123, %p124
      %p126 = scmp.ne.s32.totalorder %s117, %s118
      %p127 = scmp.eq.s32.totalorder %s39, 0
      %p128 = por %p126, %p127
      %p129 = scmp.ne.s32.totalorder %s117, %s118
      %p130 = scmp.eq.s32.totalorder %s40, 1
      %p131 = por %p129, %p130
      %p133 = scmp.ne.s32.totalorder %s118, %s132
      %p134 = scmp.eq.s32.totalorder %s40, 0
      %p135 = por %p133, %p134
      %s137 = sadd.s32 %s136, 1
      %p140 = scmp.eq.s32.totalorder %s34, 1
      %p141 = scmp.ne.s32.totalorder %s136, %s138
      %p142 = scmp.eq.s32.totalorder %s34, 0
      %p143 = por %p141, %p142
      %p144 = scmp.ne.s32.totalorder %s136, %s138
      %p145 = scmp.eq.s32.totalorder %s39, 1
      %p146 = por %p144, %p145
      %p147 = scmp.ne.s32.totalorder %s138, %s139
      %p148 = scmp.eq.s32.totalorder %s39, 0
      %p149 = por %p147, %p148
      %p150 = scmp.ne.s32.totalorder %s138, %s139
      %p151 = scmp.eq.s32.totalorder %s40, 1
      %p152 = por %p150, %p151
      %p154 = scmp.ne.s32.totalorder %s139, %s153
      %p155 = scmp.eq.s32.totalorder %s40, 0
      %p156 = por %p154, %p155
      %s158 = sadd.s32 %s157, 1
      %p161 = scmp.eq.s32.totalorder %s34, 1
      %p162 = scmp.ne.s32.totalorder %s157, %s159
      %p163 = scmp.eq.s32.totalorder %s34, 0
      %p164 = por %p162, %p163
      %p165 = scmp.ne.s32.totalorder %s157, %s159
      %p166 = scmp.eq.s32.totalorder %s39, 1
      %p167 = por %p165, %p166
      %p168 = scmp.ne.s32.totalorder %s159, %s160
      %p169 = scmp.eq.s32.totalorder %s39, 0
      %p170 = por %p168, %p169
      %p171 = scmp.ne.s32.totalorder %s159, %s160
      %p172 = scmp.eq.s32.totalorder %s40, 1
      %p173 = por %p171, %p172
      %p175 = scmp.ne.s32.totalorder %s160, %s174
      %p176 = scmp.eq.s32.totalorder %s40, 0
      %p177 = por %p175, %p176
      %s179 = sadd.s32 %s178, 1
      %p182 = scmp.eq.s32.totalorder %s34, 1
      %p183 = scmp.ne.s32.totalorder %s178, %s180
      %p184 = scmp.eq.s32.totalorder %s34, 0
      %p185 = por %p183, %p184
      %p186 = scmp.ne.s32.totalorder %s178, %s180
      %p187 = scmp.eq.s32.totalorder %s39, 1
      %p188 = por %p186, %p187
      %p189 = scmp.ne.s32.totalorder %s180, %s181
      %p190 = scmp.eq.s32.totalorder %s39, 0
      %p191 = por %p189, %p190
      %p192 = scmp.ne.s32.totalorder %s180, %s181
      %p193 = scmp.eq.s32.totalorder %s40, 1
      %p194 = por %p192, %p193
      %p196 = scmp.ne.s32.totalorder %s181, %s195
      %p197 = scmp.eq.s32.totalorder %s40, 0
      %p198 = por %p196, %p197
      %s200 = sadd.s32 %s199, 1
      %p203 = scmp.eq.s32.totalorder %s34, 1
      %p204 = scmp.ne.s32.totalorder %s199, %s201
      %p205 = scmp.eq.s32.totalorder %s34, 0
      %p206 = por %p204, %p205
      %p207 = scmp.ne.s32.totalorder %s199, %s201
      %p208 = scmp.eq.s32.totalorder %s39, 1
      %p209 = por %p207, %p208
      %p210 = scmp.ne.s32.totalorder %s201, %s202
      %p211 = scmp.eq.s32.totalorder %s39, 0
      %p212 = por %p210, %p211
      %p213 = scmp.ne.s32.totalorder %s201, %s202
      %p214 = scmp.eq.s32.totalorder %s40, 1
      %p215 = por %p213, %p214
      %p217 = scmp.ne.s32.totalorder %s202, %s216
      %p218 = scmp.eq.s32.totalorder %s40, 0
      %p219 = por %p217, %p218
      %s221 = sadd.s32 %s220, 1
      %p224 = scmp.eq.s32.totalorder %s34, 1
      %p225 = scmp.ne.s32.totalorder %s220, %s222
      %p226 = scmp.eq.s32.totalorder %s34, 0
      %p227 = por %p225, %p226
      %p228 = scmp.ne.s32.totalorder %s220, %s222
      %p229 = scmp.eq.s32.totalorder %s39, 1
      %p230 = por %p228, %p229
      %p231 = scmp.ne.s32.totalorder %s222, %s223
      %p232 = scmp.eq.s32.totalorder %s39, 0
      %p233 = por %p231, %p232
      %p234 = scmp.ne.s32.totalorder %s222, %s223
      %p235 = scmp.eq.s32.totalorder %s40, 1
      %p236 = por %p234, %p235
      %p238 = scmp.ne.s32.totalorder %s223, %s237
      %p239 = scmp.eq.s32.totalorder %s40, 0
      %p240 = por %p238, %p239
      %s242 = sadd.s32 %s241, 1
      %p245 = scmp.eq.s32.totalorder %s34, 1
      %p246 = scmp.ne.s32.totalorder %s241, %s243
      %p247 = scmp.eq.s32.totalorder %s34, 0
      %p248 = por %p246, %p247
      %p249 = scmp.ne.s32.totalorder %s241, %s243
      %p250 = scmp.eq.s32.totalorder %s39, 1
      %p251 = por %p249, %p250
      %p252 = scmp.ne.s32.totalorder %s243, %s244
      %p253 = scmp.eq.s32.totalorder %s39, 0
      %p254 = por %p252, %p253
      %p255 = scmp.ne.s32.totalorder %s243, %s244
      %p256 = scmp.eq.s32.totalorder %s40, 1
      %p257 = por %p255, %p256
      %p259 = scmp.ne.s32.totalorder %s244, %s258
      %p260 = scmp.eq.s32.totalorder %s40, 0
      %p261 = por %p259, %p260
      %s263 = sadd.s32 %s262, 1
      %p266 = scmp.eq.s32.totalorder %s34, 1
      %p267 = scmp.ne.s32.totalorder %s262, %s264
      %p268 = scmp.eq.s32.totalorder %s34, 0
      %p269 = por %p267, %p268
      %p270 = scmp.ne.s32.totalorder %s262, %s264
      %p271 = scmp.eq.s32.totalorder %s39, 1
      %p272 = por %p270, %p271
      %p273 = scmp.ne.s32.totalorder %s264, %s265
      %p274 = scmp.eq.s32.totalorder %s39, 0
      %p275 = por %p273, %p274
      %p276 = scmp.ne.s32.totalorder %s264, %s265
      %p277 = scmp.eq.s32.totalorder %s40, 1
      %p278 = por %p276, %p277
      %p280 = scmp.ne.s32.totalorder %s265, %s279
      %p281 = scmp.eq.s32.totalorder %s40, 0
      %p282 = por %p280, %p281
      %s284 = sadd.s32 %s283, 1
      %p287 = scmp.eq.s32.totalorder %s34, 1
      %p288 = scmp.ne.s32.totalorder %s283, %s285
      %p289 = scmp.eq.s32.totalorder %s34, 0
      %p290 = por %p288, %p289
      %p291 = scmp.ne.s32.totalorder %s283, %s285
      %p292 = scmp.eq.s32.totalorder %s39, 1
      %p293 = por %p291, %p292
      %p294 = scmp.ne.s32.totalorder %s285, %s286
      %p295 = scmp.eq.s32.totalorder %s39, 0
      %p296 = por %p294, %p295
      %p297 = scmp.ne.s32.totalorder %s285, %s286
      %p298 = scmp.eq.s32.totalorder %s40, 1
      %p299 = por %p297, %p298
      %p301 = scmp.ne.s32.totalorder %s286, %s300
      %p302 = scmp.eq.s32.totalorder %s40, 0
      %p303 = por %p301, %p302
      %s305 = sadd.s32 %s304, 1
      %p308 = scmp.eq.s32.totalorder %s34, 1
      %p309 = scmp.ne.s32.totalorder %s304, %s306
      %p310 = scmp.eq.s32.totalorder %s34, 0
      %p311 = por %p309, %p310
      %p312 = scmp.ne.s32.totalorder %s304, %s306
      %p313 = scmp.eq.s32.totalorder %s39, 1
      %p314 = por %p312, %p313
      %p315 = scmp.ne.s32.totalorder %s306, %s307
      %p316 = scmp.eq.s32.totalorder %s39, 0
      %p317 = por %p315, %p316
      %p318 = scmp.ne.s32.totalorder %s306, %s307
      %p319 = scmp.eq.s32.totalorder %s40, 1
      %p320 = por %p318, %p319
      %p322 = scmp.ne.s32.totalorder %s307, %s321
      %p323 = scmp.eq.s32.totalorder %s40, 0
      %p324 = por %p322, %p323
      %s326 = sadd.s32 %s325, 1
      %p329 = scmp.eq.s32.totalorder %s34, 1
      %p330 = scmp.ne.s32.totalorder %s325, %s327
      %p331 = scmp.eq.s32.totalorder %s34, 0
      %p332 = por %p330, %p331
      %p333 = scmp.ne.s32.totalorder %s325, %s327
      %p334 = scmp.eq.s32.totalorder %s39, 1
      %p335 = por %p333, %p334
      %p336 = scmp.ne.s32.totalorder %s327, %s328
      %p337 = scmp.eq.s32.totalorder %s39, 0
      %p338 = por %p336, %p337
      %p339 = scmp.ne.s32.totalorder %s327, %s328
      %p340 = scmp.eq.s32.totalorder %s40, 1
      %p341 = por %p339, %p340
      %p343 = scmp.ne.s32.totalorder %s328, %s342
      %p344 = scmp.eq.s32.totalorder %s40, 0
      %p345 = por %p343, %p344
      %s347 = sadd.s32 %s346, 1
      %p350 = scmp.eq.s32.totalorder %s34, 1
      %p351 = scmp.ne.s32.totalorder %s346, %s348
      %p352 = scmp.eq.s32.totalorder %s34, 0
      %p353 = por %p351, %p352
      %p354 = scmp.ne.s32.totalorder %s346, %s348
      %p355 = scmp.eq.s32.totalorder %s39, 1
      %p356 = por %p354, %p355
      %p357 = scmp.ne.s32.totalorder %s348, %s349
      %p358 = scmp.eq.s32.totalorder %s39, 0
      %p359 = por %p357, %p358
      %p360 = scmp.ne.s32.totalorder %s348, %s349
      %p361 = scmp.eq.s32.totalorder %s40, 1
      %p362 = por %p360, %p361
      %p364 = scmp.ne.s32.totalorder %s349, %s363
      %p365 = scmp.eq.s32.totalorder %s40, 0
      %p366 = por %p364, %p365
      %s368 = sadd.s32 %s367, 1
      %p371 = scmp.eq.s32.totalorder %s34, 1
      %p372 = scmp.ne.s32.totalorder %s367, %s369
      %p373 = scmp.eq.s32.totalorder %s34, 0
      %p374 = por %p372, %p373
      %p375 = scmp.ne.s32.totalorder %s367, %s369
      %p376 = scmp.eq.s32.totalorder %s39, 1
      %p377 = por %p375, %p376
      %p378 = scmp.ne.s32.totalorder %s369, %s370
      %p379 = scmp.eq.s32.totalorder %s39, 0
      %p380 = por %p378, %p379
      %p381 = scmp.ne.s32.totalorder %s369, %s370
      %p382 = scmp.eq.s32.totalorder %s40, 1
      %p383 = por %p381, %p382
      %p385 = scmp.ne.s32.totalorder %s370, %s384
      %p386 = scmp.eq.s32.totalorder %s40, 0
      %p387 = por %p385, %p386
      %s389 = sadd.s32 %s388, 1
      %p392 = scmp.eq.s32.totalorder %s34, 1
      %p393 = scmp.ne.s32.totalorder %s388, %s390
      %p394 = scmp.eq.s32.totalorder %s34, 0
      %p395 = por %p393, %p394
      %p396 = scmp.ne.s32.totalorder %s388, %s390
      %p397 = scmp.eq.s32.totalorder %s39, 1
      %p398 = por %p396, %p397
      %p399 = scmp.ne.s32.totalorder %s390, %s391
      %p400 = scmp.eq.s32.totalorder %s39, 0
      %p401 = por %p399, %p400
      %p402 = scmp.ne.s32.totalorder %s390, %s391
      %p403 = scmp.eq.s32.totalorder %s40, 1
      %p404 = por %p402, %p403
      %p406 = scmp.ne.s32.totalorder %s391, %s405
      %p407 = scmp.eq.s32.totalorder %s40, 0
      %p408 = por %p406, %p407
      %s410 = sadd.s32 %s409, 1
      %p413 = scmp.eq.s32.totalorder %s34, 1
      %p414 = scmp.ne.s32.totalorder %s409, %s411
      %p415 = scmp.eq.s32.totalorder %s34, 0
      %p416 = por %p414, %p415
      %p417 = scmp.ne.s32.totalorder %s409, %s411
      %p418 = scmp.eq.s32.totalorder %s39, 1
      %p419 = por %p417, %p418
      %p420 = scmp.ne.s32.totalorder %s411, %s412
      %p421 = scmp.eq.s32.totalorder %s39, 0
      %p422 = por %p420, %p421
      %p423 = scmp.ne.s32.totalorder %s411, %s412
      %p424 = scmp.eq.s32.totalorder %s40, 1
      %p425 = por %p423, %p424
      %p427 = scmp.ne.s32.totalorder %s412, %s426
      %p428 = scmp.eq.s32.totalorder %s40, 0
      %p429 = por %p427, %p428
      %s431 = sadd.s32 %s430, 1
      %p434 = scmp.eq.s32.totalorder %s34, 1
      %p435 = scmp.ne.s32.totalorder %s430, %s432
      %p436 = scmp.eq.s32.totalorder %s34, 0
      %p437 = por %p435, %p436
      %p438 = scmp.ne.s32.totalorder %s430, %s432
      %p439 = scmp.eq.s32.totalorder %s39, 1
      %p440 = por %p438, %p439
      %p441 = scmp.ne.s32.totalorder %s432, %s433
      %p442 = scmp.eq.s32.totalorder %s39, 0
      %p443 = por %p441, %p442
      %p444 = scmp.ne.s32.totalorder %s432, %s433
      %p445 = scmp.eq.s32.totalorder %s40, 1
      %p446 = por %p444, %p445
      %p448 = scmp.ne.s32.totalorder %s433, %s447
      %p449 = scmp.eq.s32.totalorder %s40, 0
      %p450 = por %p448, %p449
      %s452 = sadd.s32 %s451, 1
      %p455 = scmp.eq.s32.totalorder %s34, 1
      %p456 = scmp.ne.s32.totalorder %s451, %s453
      %p457 = scmp.eq.s32.totalorder %s34, 0
      %p458 = por %p456, %p457
      %p459 = scmp.ne.s32.totalorder %s451, %s453
      %p460 = scmp.eq.s32.totalorder %s39, 1
      %p461 = por %p459, %p460
      %p462 = scmp.ne.s32.totalorder %s453, %s454
      %p463 = scmp.eq.s32.totalorder %s39, 0
      %p464 = por %p462, %p463
      %p465 = scmp.ne.s32.totalorder %s453, %s454
      %p466 = scmp.eq.s32.totalorder %s40, 1
      %p467 = por %p465, %p466
      %p469 = scmp.ne.s32.totalorder %s454, %s468
      %p470 = scmp.eq.s32.totalorder %s40, 0
      %p471 = por %p469, %p470
      %s473 = sadd.s32 %s472, 1
      %p476 = scmp.eq.s32.totalorder %s34, 1
      %p477 = scmp.ne.s32.totalorder %s472, %s474
      %p478 = scmp.eq.s32.totalorder %s34, 0
      %p479 = por %p477, %p478
      %p480 = scmp.ne.s32.totalorder %s472, %s474
      %p481 = scmp.eq.s32.totalorder %s39, 1
      %p482 = por %p480, %p481
      %p483 = scmp.ne.s32.totalorder %s474, %s475
      %p484 = scmp.eq.s32.totalorder %s39, 0
      %p485 = por %p483, %p484
      %p486 = scmp.ne.s32.totalorder %s474, %s475
      %p487 = scmp.eq.s32.totalorder %s40, 1
      %p488 = por %p486, %p487
      %p490 = scmp.ne.s32.totalorder %s475, %s489
      %p491 = scmp.eq.s32.totalorder %s40, 0
      %p492 = por %p490, %p491
      %s494 = sadd.s32 %s493, 1
      %p497 = scmp.eq.s32.totalorder %s34, 1
      %p498 = scmp.ne.s32.totalorder %s493, %s495
      %p499 = scmp.eq.s32.totalorder %s34, 0
      %p500 = por %p498, %p499
      %p501 = scmp.ne.s32.totalorder %s493, %s495
      %p502 = scmp.eq.s32.totalorder %s39, 1
      %p503 = por %p501, %p502
      %p504 = scmp.ne.s32.totalorder %s495, %s496
      %p505 = scmp.eq.s32.totalorder %s39, 0
      %p506 = por %p504, %p505
      %p507 = scmp.ne.s32.totalorder %s495, %s496
      %p508 = scmp.eq.s32.totalorder %s40, 1
      %p509 = por %p507, %p508
      %p511 = scmp.ne.s32.totalorder %s496, %s510
      %p512 = scmp.eq.s32.totalorder %s40, 0
      %p513 = por %p511, %p512
      %s515 = sadd.s32 %s514, 1
      %p518 = scmp.eq.s32.totalorder %s34, 1
      %p519 = scmp.ne.s32.totalorder %s514, %s516
      %p520 = scmp.eq.s32.totalorder %s34, 0
      %p521 = por %p519, %p520
      %p522 = scmp.ne.s32.totalorder %s514, %s516
      %p523 = scmp.eq.s32.totalorder %s39, 1
      %p524 = por %p522, %p523
      %p525 = scmp.ne.s32.totalorder %s516, %s517
      %p526 = scmp.eq.s32.totalorder %s39, 0
      %p527 = por %p525, %p526
      %p528 = scmp.ne.s32.totalorder %s516, %s517
      %p529 = scmp.eq.s32.totalorder %s40, 1
      %p530 = por %p528, %p529
      %p532 = scmp.ne.s32.totalorder %s517, %s531
      %p533 = scmp.eq.s32.totalorder %s40, 0
      %p534 = por %p532, %p533
      %s536 = sadd.s32 %s535, 1
      %p539 = scmp.eq.s32.totalorder %s34, 1
      %p540 = scmp.ne.s32.totalorder %s535, %s537
      %p541 = scmp.eq.s32.totalorder %s34, 0
      %p542 = por %p540, %p541
      %p543 = scmp.ne.s32.totalorder %s535, %s537
      %p544 = scmp.eq.s32.totalorder %s39, 1
      %p545 = por %p543, %p544
      %p546 = scmp.ne.s32.totalorder %s537, %s538
      %p547 = scmp.eq.s32.totalorder %s39, 0
      %p548 = por %p546, %p547
      %p549 = scmp.ne.s32.totalorder %s537, %s538
      %p550 = scmp.eq.s32.totalorder %s40, 1
      %p551 = por %p549, %p550
      %p553 = scmp.ne.s32.totalorder %s538, %s552
      %p554 = scmp.eq.s32.totalorder %s40, 0
      %p555 = por %p553, %p554
      %s557 = sadd.s32 %s556, 1
      %p560 = scmp.eq.s32.totalorder %s34, 1
      %p561 = scmp.ne.s32.totalorder %s556, %s558
      %p562 = scmp.eq.s32.totalorder %s34, 0
      %p563 = por %p561, %p562
      %p564 = scmp.ne.s32.totalorder %s556, %s558
      %p565 = scmp.eq.s32.totalorder %s39, 1
      %p566 = por %p564, %p565
      %p567 = scmp.ne.s32.totalorder %s558, %s559
      %p568 = scmp.eq.s32.totalorder %s39, 0
      %p569 = por %p567, %p568
      %p570 = scmp.ne.s32.totalorder %s558, %s559
      %p571 = scmp.eq.s32.totalorder %s40, 1
      %p572 = por %p570, %p571
      %p574 = scmp.ne.s32.totalorder %s559, %s573
      %p575 = scmp.eq.s32.totalorder %s40, 0
      %p576 = por %p574, %p575
      %s577 = ssub.s32 %s34, %s41
      %p578 = scmp.eq.s32.totalorder %s577, 0
      %s580 = sadd.s32 %s579, 1
      %s581 = scalar_select %p578, %s579, %s580
      %p584 = pneg %p578
      %p585 = scmp.eq.s32.totalorder %s34, 1
      %p586 = por %p584, %p585
      %p587 = scmp.ne.s32.totalorder %s579, %s582
      %p588 = scmp.eq.s32.totalorder %s34, 0
      %p589 = por %p587, %p588
      %p590 = scmp.ne.s32.totalorder %s579, %s582
      %p591 = scmp.eq.s32.totalorder %s39, 1
      %p592 = por %p590, %p591
      %p593 = scmp.ne.s32.totalorder %s582, %s583
      %p594 = scmp.eq.s32.totalorder %s39, 0
      %p595 = por %p593, %p594
      %p596 = scmp.ne.s32.totalorder %s582, %s583
      %p597 = scmp.eq.s32.totalorder %s40, 1
      %p598 = por %p596, %p597
      %p600 = scmp.ne.s32.totalorder %s583, %s599
      %p601 = scmp.eq.s32.totalorder %s40, 0
      %p602 = por %p600, %p601
      %p603 = scmp.le.s32.totalorder 1, %s34
      %p604 = scmp.lt.s32.totalorder %s34, 3
      %p605 = pnand %p603, %p604
      %p606 = pneg %p605
      // Predicated region
      $region9: #{cross_attention_encoder_forward.1} parent=5 // pred_check
        _
      $region10: #{cross_attention_encoder_forward.1} parent=5 // pred_check_branch
        %608 = sbr.rel (%p605) target = $region12
      $region11: #{cross_attention_encoder_forward.1} parent=5 // pred_region
        %s609 = ssub.s32 %s34, 1
        // Predicated region
        $region13: #{cross_attention_encoder_forward.1} parent=11 // pred_check
          %p610 = pneg %p107
        $region14: #{cross_attention_encoder_forward.1} parent=11 // pred_check_branch
          %612 = sbr.rel (%p610) target = $region16
        $region15: #{cross_attention_encoder_forward.1} parent=11 // pred_region
          _
        $region16: #{cross_attention_encoder_forward.1} parent=11 // pred_fallthru
          _
        // Predicated region
        $region17: #{cross_attention_encoder_forward.1} parent=11 // pred_check
          %p613 = pneg %p128
        $region18: #{cross_attention_encoder_forward.1} parent=11 // pred_check_branch
          %615 = sbr.rel (%p613) target = $region20
        $region19: #{cross_attention_encoder_forward.1} parent=11 // pred_region
          _
        $region20: #{cross_attention_encoder_forward.1} parent=11 // pred_fallthru
          _
        // Predicated region
        $region21: #{cross_attention_encoder_forward.1} parent=11 // pred_check
          %p616 = pneg %p149
        $region22: #{cross_attention_encoder_forward.1} parent=11 // pred_check_branch
          %618 = sbr.rel (%p616) target = $region24
        $region23: #{cross_attention_encoder_forward.1} parent=11 // pred_region
          _
        $region24: #{cross_attention_encoder_forward.1} parent=11 // pred_fallthru
          _
        // Predicated region
        $region25: #{cross_attention_encoder_forward.1} parent=11 // pred_check
          %p619 = pneg %p170
        $region26: #{cross_attention_encoder_forward.1} parent=11 // pred_check_branch
          %621 = sbr.rel (%p619) target = $region28
        $region27: #{cross_attention_encoder_forward.1} parent=11 // pred_region
          _
        $region28: #{cross_attention_encoder_forward.1} parent=11 // pred_fallthru
          _
        // Predicated region
        $region29: #{cross_attention_encoder_forward.1} parent=11 // pred_check
          %p622 = pneg %p191
        $region30: #{cross_attention_encoder_forward.1} parent=11 // pred_check_branch
          %624 = sbr.rel (%p622) target = $region32
        $region31: #{cross_attention_encoder_forward.1} parent=11 // pred_region
          _
        $region32: #{cross_attention_encoder_forward.1} parent=11 // pred_fallthru
          _
        // Predicated region
        $region33: #{cross_attention_encoder_forward.1} parent=11 // pred_check
          %p625 = pneg %p212
        $region34: #{cross_attention_encoder_forward.1} parent=11 // pred_check_branch
          %627 = sbr.rel (%p625) target = $region36
        $region35: #{cross_attention_encoder_forward.1} parent=11 // pred_region
          _
        $region36: #{cross_attention_encoder_forward.1} parent=11 // pred_fallthru
          _
        // Predicated region
        $region37: #{cross_attention_encoder_forward.1} parent=11 // pred_check
          %p628 = pneg %p233
        $region38: #{cross_attention_encoder_forward.1} parent=11 // pred_check_branch
          %630 = sbr.rel (%p628) target = $region40
        $region39: #{cross_attention_encoder_forward.1} parent=11 // pred_region
          _
        $region40: #{cross_attention_encoder_forward.1} parent=11 // pred_fallthru
          _
        // Predicated region
        $region41: #{cross_attention_encoder_forward.1} parent=11 // pred_check
          %p631 = pneg %p254
        $region42: #{cross_attention_encoder_forward.1} parent=11 // pred_check_branch
          %633 = sbr.rel (%p631) target = $region44
        $region43: #{cross_attention_encoder_forward.1} parent=11 // pred_region
          _
        $region44: #{cross_attention_encoder_forward.1} parent=11 // pred_fallthru
          _
        // Predicated region
        $region45: #{cross_attention_encoder_forward.1} parent=11 // pred_check
          %p634 = pneg %p275
        $region46: #{cross_attention_encoder_forward.1} parent=11 // pred_check_branch
          %636 = sbr.rel (%p634) target = $region48
        $region47: #{cross_attention_encoder_forward.1} parent=11 // pred_region
          _
        $region48: #{cross_attention_encoder_forward.1} parent=11 // pred_fallthru
          _
        // Predicated region
        $region49: #{cross_attention_encoder_forward.1} parent=11 // pred_check
          %p637 = pneg %p296
        $region50: #{cross_attention_encoder_forward.1} parent=11 // pred_check_branch
          %639 = sbr.rel (%p637) target = $region52
        $region51: #{cross_attention_encoder_forward.1} parent=11 // pred_region
          _
        $region52: #{cross_attention_encoder_forward.1} parent=11 // pred_fallthru
          _
        // Predicated region
        $region53: #{cross_attention_encoder_forward.1} parent=11 // pred_check
          %p640 = pneg %p317
        $region54: #{cross_attention_encoder_forward.1} parent=11 // pred_check_branch
          %642 = sbr.rel (%p640) target = $region56
        $region55: #{cross_attention_encoder_forward.1} parent=11 // pred_region
          _
        $region56: #{cross_attention_encoder_forward.1} parent=11 // pred_fallthru
          _
        // Predicated region
        $region57: #{cross_attention_encoder_forward.1} parent=11 // pred_check
          %p643 = pneg %p338
        $region58: #{cross_attention_encoder_forward.1} parent=11 // pred_check_branch
          %645 = sbr.rel (%p643) target = $region60
        $region59: #{cross_attention_encoder_forward.1} parent=11 // pred_region
          _
        $region60: #{cross_attention_encoder_forward.1} parent=11 // pred_fallthru
          _
        // Predicated region
        $region61: #{cross_attention_encoder_forward.1} parent=11 // pred_check
          %p646 = pneg %p359
        $region62: #{cross_attention_encoder_forward.1} parent=11 // pred_check_branch
          %648 = sbr.rel (%p646) target = $region64
        $region63: #{cross_attention_encoder_forward.1} parent=11 // pred_region
          _
        $region64: #{cross_attention_encoder_forward.1} parent=11 // pred_fallthru
          _
        // Predicated region
        $region65: #{cross_attention_encoder_forward.1} parent=11 // pred_check
          %p649 = pneg %p380
        $region66: #{cross_attention_encoder_forward.1} parent=11 // pred_check_branch
          %651 = sbr.rel (%p649) target = $region68
        $region67: #{cross_attention_encoder_forward.1} parent=11 // pred_region
          _
        $region68: #{cross_attention_encoder_forward.1} parent=11 // pred_fallthru
          _
        // Predicated region
        $region69: #{cross_attention_encoder_forward.1} parent=11 // pred_check
          %p652 = pneg %p401
        $region70: #{cross_attention_encoder_forward.1} parent=11 // pred_check_branch
          %654 = sbr.rel (%p652) target = $region72
        $region71: #{cross_attention_encoder_forward.1} parent=11 // pred_region
          _
        $region72: #{cross_attention_encoder_forward.1} parent=11 // pred_fallthru
          _
        // Predicated region
        $region73: #{cross_attention_encoder_forward.1} parent=11 // pred_check
          %p655 = pneg %p422
        $region74: #{cross_attention_encoder_forward.1} parent=11 // pred_check_branch
          %657 = sbr.rel (%p655) target = $region76
        $region75: #{cross_attention_encoder_forward.1} parent=11 // pred_region
          _
        $region76: #{cross_attention_encoder_forward.1} parent=11 // pred_fallthru
          _
        // Predicated region
        $region77: #{cross_attention_encoder_forward.1} parent=11 // pred_check
          %p658 = pneg %p443
        $region78: #{cross_attention_encoder_forward.1} parent=11 // pred_check_branch
          %660 = sbr.rel (%p658) target = $region80
        $region79: #{cross_attention_encoder_forward.1} parent=11 // pred_region
          _
        $region80: #{cross_attention_encoder_forward.1} parent=11 // pred_fallthru
          _
        // Predicated region
        $region81: #{cross_attention_encoder_forward.1} parent=11 // pred_check
          %p661 = pneg %p464
        $region82: #{cross_attention_encoder_forward.1} parent=11 // pred_check_branch
          %663 = sbr.rel (%p661) target = $region84
        $region83: #{cross_attention_encoder_forward.1} parent=11 // pred_region
          _
        $region84: #{cross_attention_encoder_forward.1} parent=11 // pred_fallthru
          _
        // Predicated region
        $region85: #{cross_attention_encoder_forward.1} parent=11 // pred_check
          %p664 = pneg %p485
        $region86: #{cross_attention_encoder_forward.1} parent=11 // pred_check_branch
          %666 = sbr.rel (%p664) target = $region88
        $region87: #{cross_attention_encoder_forward.1} parent=11 // pred_region
          _
        $region88: #{cross_attention_encoder_forward.1} parent=11 // pred_fallthru
          _
        // Predicated region
        $region89: #{cross_attention_encoder_forward.1} parent=11 // pred_check
          %p667 = pneg %p506
        $region90: #{cross_attention_encoder_forward.1} parent=11 // pred_check_branch
          %669 = sbr.rel (%p667) target = $region92
        $region91: #{cross_attention_encoder_forward.1} parent=11 // pred_region
          _
        $region92: #{cross_attention_encoder_forward.1} parent=11 // pred_fallthru
          _
        // Predicated region
        $region93: #{cross_attention_encoder_forward.1} parent=11 // pred_check
          %p670 = pneg %p527
        $region94: #{cross_attention_encoder_forward.1} parent=11 // pred_check_branch
          %672 = sbr.rel (%p670) target = $region96
        $region95: #{cross_attention_encoder_forward.1} parent=11 // pred_region
          _
        $region96: #{cross_attention_encoder_forward.1} parent=11 // pred_fallthru
          _
        // Predicated region
        $region97: #{cross_attention_encoder_forward.1} parent=11 // pred_check
          %p673 = pneg %p548
        $region98: #{cross_attention_encoder_forward.1} parent=11 // pred_check_branch
          %675 = sbr.rel (%p673) target = $region100
        $region99: #{cross_attention_encoder_forward.1} parent=11 // pred_region
          _
        $region100: #{cross_attention_encoder_forward.1} parent=11 // pred_fallthru
          _
        // Predicated region
        $region101: #{cross_attention_encoder_forward.1} parent=11 // pred_check
          %p676 = pneg %p569
        $region102: #{cross_attention_encoder_forward.1} parent=11 // pred_check_branch
          %678 = sbr.rel (%p676) target = $region104
        $region103: #{cross_attention_encoder_forward.1} parent=11 // pred_region
          _
        $region104: #{cross_attention_encoder_forward.1} parent=11 // pred_fallthru
          _
      $region12: #{cross_attention_encoder_forward.1} parent=5 // pred_fallthru
        _
      %p679 = scmp.lt.s32.totalorder %s34, 2
      // Predicated region
      $region105: #{cross_attention_encoder_forward.1} parent=5 // pred_check
        %p680 = pneg %p679
      $region106: #{cross_attention_encoder_forward.1} parent=5 // pred_check_branch
        %682 = sbr.rel (%p680) target = $region108
      $region107: #{cross_attention_encoder_forward.1} parent=5 // pred_region
        // Predicated region
        $region109: #{cross_attention_encoder_forward.1} parent=107 // pred_check
          %p683 = pneg %p54
        $region110: #{cross_attention_encoder_forward.1} parent=107 // pred_check_branch
          %685 = sbr.rel (%p683) target = $region112
        $region111: #{cross_attention_encoder_forward.1} parent=107 // pred_region
          %p686 = scmp.lt.s32.totalorder %s34, 1
          %s687 = scalar_select %p686, %s34, 1
          %s688 = smul.addr %s687, 8
          %s689 = scalar_lea.vmem %s0, %s688
        $region112: #{cross_attention_encoder_forward.1} parent=107 // pred_fallthru
          _
        // Predicated region
        $region113: #{cross_attention_encoder_forward.1} parent=107 // pred_check
          %p690 = pneg %p80
        $region114: #{cross_attention_encoder_forward.1} parent=107 // pred_check_branch
          %692 = sbr.rel (%p690) target = $region116
        $region115: #{cross_attention_encoder_forward.1} parent=107 // pred_region
          %p693 = scmp.lt.s32.totalorder %s34, 1
          %s694 = scalar_select %p693, %s34, 1
          %s695 = smul.addr %s694, 2
          %s696 = smul.addr %s695, 8
          %s697 = scalar_lea.vmem %s1, %s696
        $region116: #{cross_attention_encoder_forward.1} parent=107 // pred_fallthru
          _
      $region108: #{cross_attention_encoder_forward.1} parent=5 // pred_fallthru
        _
      %p698 = scmp.le.s32.totalorder 1, %s34
      %p699 = scmp.lt.s32.totalorder %s34, 3
      %p700 = pnand %p698, %p699
      %p701 = pneg %p700
      // Predicated region
      $region117: #{cross_attention_encoder_forward.1} parent=5 // pred_check
        _
      $region118: #{cross_attention_encoder_forward.1} parent=5 // pred_check_branch
        %703 = sbr.rel (%p700) target = $region120
      $region119: #{cross_attention_encoder_forward.1} parent=5 // pred_region
        %s704 = ssub.s32 %s34, 1
        %p705 = scmp.lt.s32.totalorder %s39, 1
        %s706 = scalar_select %p705, %s39, 1
        %s707 = smul.addr %s706, 8
        %s708 = scalar_lea.vmem %s0, %s707
        %p709 = pneg %p60
        %p710 = pneg %p57
        %p711 = scmp.lt.s32.totalorder %s39, 1
        %s712 = scalar_select %p711, %s39, 1
        %s713 = smul.addr %s712, 2
        %s714 = smul.addr %s713, 8
        %s715 = scalar_lea.vmem %s1, %s714
        %p716 = pneg %p86
        %p717 = pneg %p83
        %p718 = pneg %p107
        %p719 = pneg %p104
        %p720 = pneg %p128
        %p721 = pneg %p125
        %p722 = pneg %p149
        %p723 = pneg %p146
        %p724 = pneg %p170
        %p725 = pneg %p167
        %p726 = pneg %p191
        %p727 = pneg %p188
        %p728 = pneg %p212
        %p729 = pneg %p209
        %p730 = pneg %p233
        %p731 = pneg %p230
        %p732 = pneg %p254
        %p733 = pneg %p251
        %p734 = pneg %p275
        %p735 = pneg %p272
        %p736 = pneg %p296
        %p737 = pneg %p293
        %p738 = pneg %p317
        %p739 = pneg %p314
        %p740 = pneg %p338
        %p741 = pneg %p335
        %p742 = pneg %p359
        %p743 = pneg %p356
        %p744 = pneg %p380
        %p745 = pneg %p377
        %p746 = pneg %p401
        %p747 = pneg %p398
        %p748 = pneg %p422
        %p749 = pneg %p419
        %p750 = pneg %p443
        %p751 = pneg %p440
        %p752 = pneg %p464
        %p753 = pneg %p461
        %p754 = pneg %p485
        %p755 = pneg %p482
        %p756 = pneg %p506
        %p757 = pneg %p503
        %p758 = pneg %p527
        %p759 = pneg %p524
        %p760 = pneg %p548
        %p761 = pneg %p545
        %p762 = pneg %p569
        %p763 = pneg %p566
        %p764 = pneg %p595
        %p765 = pneg %p592
        %s766 = sand.u32 %s582, 1
        %s767 = scalar_lea.sflag [#allocation3], %s766
        %s768 = sand.u32 %s582, 1
        %s769 = smul.addr %s768, 8
        %s770 = scalar_lea.vmem [#allocation2], %s769
        %p771 = scmp.lt.s32.totalorder %s39, 1
        %s772 = scalar_select %p771, %s39, 1
        %s773 = smul.addr %s772, 8
        %s774 = scalar_lea.vmem %s0, %s773
        %p775 = scmp.lt.s32.totalorder %s39, 1
        %s776 = scalar_select %p775, %s39, 1
        %s777 = smul.addr %s776, 2
        %s778 = smul.addr %s777, 8
        %s779 = scalar_lea.vmem %s1, %s778
        %v781 = vld [vmem:[%s774] sm:$0xff]
        %v782 = vld [vmem:[%s2] sm:$0xff]
        %v783 = vld [vmem:[%s2 + $0x8] sm:$0xff]
        %v784 = vld [vmem:[%s2 + $0x10] sm:$0xff]
        %v785 = vld [vmem:[%s2 + $0x18] sm:$0xff]
        %v786 = vld [vmem:[%s2 + $0x20] sm:$0xff]
        %v787 = vld [vmem:[%s2 + $0x28] sm:$0xff]
        %v788 = vld [vmem:[%s2 + $0x30] sm:$0xff]
        %v789 = vld [vmem:[%s2 + $0x38] sm:$0xff]
        %v790 = vld [vmem:[%s2 + $0x40] sm:$0xff]
        %v791 = vld [vmem:[%s2 + $0x48] sm:$0xff]
        %v792 = vld [vmem:[%s2 + $0x50] sm:$0xff]
        %v793 = vld [vmem:[%s2 + $0x58] sm:$0xff]
        %v794 = vld [vmem:[%s2 + $0x60] sm:$0xff]
        %v795 = vld [vmem:[%s2 + $0x68] sm:$0xff]
        %v796 = vld [vmem:[%s2 + $0x70] sm:$0xff]
        %v797 = vld [vmem:[%s2 + $0x78] sm:$0xff]
        %v798 = vld [vmem:[%s3] sm:$0x1]
        %v800 = vlaneseq
        %v801 = vshrl.u32 %v800, 7
        %v802 = vsub.s32 0, %v801
        %v803 = vrot.slane %v798, %v802
        %805 = vmatprep.subr.mxu0 0.0
        %806 = vmatpush1.msra.mxu0 %v797
        %807 = vmatprep.subr.mxu0 0.0
        %808 = vmatpush1.msra.mxu0 %v796
        %809 = vmatprep.subr.mxu0 0.0
        %810 = vmatpush1.msra.mxu0 %v795
        %811 = vmatprep.subr.mxu0 0.0
        %812 = vmatpush1.msra.mxu0 %v794
        %813 = vmatprep.subr.mxu0 0.0
        %814 = vmatpush1.msra.mxu0 %v793
        %815 = vmatprep.subr.mxu0 0.0
        %816 = vmatpush1.msra.mxu0 %v792
        %817 = vmatprep.subr.mxu0 0.0
        %818 = vmatpush1.msra.mxu0 %v791
        %819 = vmatprep.subr.mxu0 0.0
        %820 = vmatpush1.msra.mxu0 %v790
        %821 = vmatprep.subr.mxu0 0.0
        %822 = vmatpush1.msra.mxu0 %v789
        %823 = vmatprep.subr.mxu0 0.0
        %824 = vmatpush1.msra.mxu0 %v788
        %825 = vmatprep.subr.mxu0 0.0
        %826 = vmatpush1.msra.mxu0 %v787
        %827 = vmatprep.subr.mxu0 0.0
        %828 = vmatpush1.msra.mxu0 %v786
        %829 = vmatprep.subr.mxu0 0.0
        %830 = vmatpush1.msra.mxu0 %v785
        %831 = vmatprep.subr.mxu0 0.0
        %832 = vmatpush1.msra.mxu0 %v784
        %833 = vmatprep.subr.mxu0 0.0
        %834 = vmatpush1.msra.mxu0 %v783
        %835 = vmatprep.subr.mxu0 0.0
        %836 = vmatpush1.msra.mxu0 %v782
        %837 = vmatprep.subr.mxu0 0.0
        %838 = vmatpush2.msra.mxu0 0.0
        %839 = vmatprep.subr.mxu0 0.0
        %840 = vmatpush2.msra.mxu0 0.0
        %841 = vmatprep.subr.mxu0 0.0
        %842 = vmatpush2.msra.mxu0 0.0
        %843 = vmatprep.subr.mxu0 0.0
        %844 = vmatpush2.msra.mxu0 0.0
        %845 = vmatprep.subr.mxu0 0.0
        %846 = vmatpush2.msra.mxu0 0.0
        %847 = vmatprep.subr.mxu0 0.0
        %848 = vmatpush2.msra.mxu0 0.0
        %849 = vmatprep.subr.mxu0 0.0
        %850 = vmatpush2.msra.mxu0 0.0
        %851 = vmatprep.subr.mxu0 0.0
        %852 = vmatpush2.msra.mxu0 0.0
        %853 = vmatprep.subr.mxu0 0.0
        %854 = vmatpush2.msra.mxu0 0.0
        %855 = vmatprep.subr.mxu0 0.0
        %856 = vmatpush2.msra.mxu0 0.0
        %857 = vmatprep.subr.mxu0 0.0
        %858 = vmatpush2.msra.mxu0 0.0
        %859 = vmatprep.subr.mxu0 0.0
        %860 = vmatpush2.msra.mxu0 0.0
        %861 = vmatprep.subr.mxu0 0.0
        %862 = vmatpush2.msra.mxu0 0.0
        %863 = vmatprep.subr.mxu0 0.0
        %864 = vmatpush2.msra.mxu0 0.0
        %865 = vmatprep.subr.mxu0 0.0
        %866 = vmatpush2.msra.mxu0 0.0
        %867 = vmatprep.subr.mxu0 0.0
        %868 = vmatpush2.msra.mxu0 0.0
        %869 = vmatprep.mubr.f32.mxu0 0.0
        %870 = vmatmul.mubr.f32.gmra.mxu0 %v781
        %v871 = vpop.f32.mrf.mxu0
        %v872 = vadd.f32 %v803, %v871
        %v873 = vpop.f32.mrf.mxu0
        %874 = vdwg.mxu0
        %v875 = vld [vmem:[%s779] sm:$0xff]
        %v876 = vld [vmem:[%s779 + $0x8] sm:$0xff]
        %v877 = vld [vmem:[%s4] sm:$0xff]
        %v878 = vld [vmem:[%s4 + $0x8] sm:$0xff]
        %v879 = vld [vmem:[%s4 + $0x10] sm:$0xff]
        %v880 = vld [vmem:[%s4 + $0x18] sm:$0xff]
        %v881 = vld [vmem:[%s4 + $0x20] sm:$0xff]
        %v882 = vld [vmem:[%s4 + $0x28] sm:$0xff]
        %v883 = vld [vmem:[%s4 + $0x30] sm:$0xff]
        %v884 = vld [vmem:[%s4 + $0x38] sm:$0xff]
        %v885 = vld [vmem:[%s4 + $0x40] sm:$0xff]
        %v886 = vld [vmem:[%s4 + $0x48] sm:$0xff]
        %v887 = vld [vmem:[%s4 + $0x50] sm:$0xff]
        %v888 = vld [vmem:[%s4 + $0x58] sm:$0xff]
        %v889 = vld [vmem:[%s4 + $0x60] sm:$0xff]
        %v890 = vld [vmem:[%s4 + $0x68] sm:$0xff]
        %v891 = vld [vmem:[%s4 + $0x70] sm:$0xff]
        %v892 = vld [vmem:[%s4 + $0x78] sm:$0xff]
        %v893 = vld [vmem:[%s5] sm:$0x1]
        %v895 = vlaneseq
        %v896 = vshrl.u32 %v895, 7
        %v897 = vsub.s32 0, %v896
        %v898 = vrot.slane %v893, %v897
        %900 = vmatprep.subr.mxu0 0.0
        %901 = vmatpush1.msra.mxu0 %v892
        %902 = vmatprep.subr.mxu0 0.0
        %903 = vmatpush1.msra.mxu0 %v891
        %904 = vmatprep.subr.mxu0 0.0
        %905 = vmatpush1.msra.mxu0 %v890
        %906 = vmatprep.subr.mxu0 0.0
        %907 = vmatpush1.msra.mxu0 %v889
        %908 = vmatprep.subr.mxu0 0.0
        %909 = vmatpush1.msra.mxu0 %v888
        %910 = vmatprep.subr.mxu0 0.0
        %911 = vmatpush1.msra.mxu0 %v887
        %912 = vmatprep.subr.mxu0 0.0
        %913 = vmatpush1.msra.mxu0 %v886
        %914 = vmatprep.subr.mxu0 0.0
        %915 = vmatpush1.msra.mxu0 %v885
        %916 = vmatprep.subr.mxu0 0.0
        %917 = vmatpush1.msra.mxu0 %v884
        %918 = vmatprep.subr.mxu0 0.0
        %919 = vmatpush1.msra.mxu0 %v883
        %920 = vmatprep.subr.mxu0 0.0
        %921 = vmatpush1.msra.mxu0 %v882
        %922 = vmatprep.subr.mxu0 0.0
        %923 = vmatpush1.msra.mxu0 %v881
        %924 = vmatprep.subr.mxu0 0.0
        %925 = vmatpush1.msra.mxu0 %v880
        %926 = vmatprep.subr.mxu0 0.0
        %927 = vmatpush1.msra.mxu0 %v879
        %928 = vmatprep.subr.mxu0 0.0
        %929 = vmatpush1.msra.mxu0 %v878
        %930 = vmatprep.subr.mxu0 0.0
        %931 = vmatpush1.msra.mxu0 %v877
        %932 = vmatprep.subr.mxu0 0.0
        %933 = vmatpush2.msra.mxu0 0.0
        %934 = vmatprep.subr.mxu0 0.0
        %935 = vmatpush2.msra.mxu0 0.0
        %936 = vmatprep.subr.mxu0 0.0
        %937 = vmatpush2.msra.mxu0 0.0
        %938 = vmatprep.subr.mxu0 0.0
        %939 = vmatpush2.msra.mxu0 0.0
        %940 = vmatprep.subr.mxu0 0.0
        %941 = vmatpush2.msra.mxu0 0.0
        %942 = vmatprep.subr.mxu0 0.0
        %943 = vmatpush2.msra.mxu0 0.0
        %944 = vmatprep.subr.mxu0 0.0
        %945 = vmatpush2.msra.mxu0 0.0
        %946 = vmatprep.subr.mxu0 0.0
        %947 = vmatpush2.msra.mxu0 0.0
        %948 = vmatprep.subr.mxu0 0.0
        %949 = vmatpush2.msra.mxu0 0.0
        %950 = vmatprep.subr.mxu0 0.0
        %951 = vmatpush2.msra.mxu0 0.0
        %952 = vmatprep.subr.mxu0 0.0
        %953 = vmatpush2.msra.mxu0 0.0
        %954 = vmatprep.subr.mxu0 0.0
        %955 = vmatpush2.msra.mxu0 0.0
        %956 = vmatprep.subr.mxu0 0.0
        %957 = vmatpush2.msra.mxu0 0.0
        %958 = vmatprep.subr.mxu0 0.0
        %959 = vmatpush2.msra.mxu0 0.0
        %960 = vmatprep.subr.mxu0 0.0
        %961 = vmatpush2.msra.mxu0 0.0
        %962 = vmatprep.subr.mxu0 0.0
        %963 = vmatpush2.msra.mxu0 0.0
        %964 = vmatprep.mubr.f32.mxu0 0.0
        %965 = vmatmul.mubr.f32.gmra.mxu0 %v875
        %v966 = vpop.f32.mrf.mxu0
        %v967 = vadd.f32 %v898, %v966
        %v968 = vpop.f32.mrf.mxu0
        %969 = vmatprep.mubr.f32.mxu0 0.0
        %970 = vmatmul.mubr.f32.gmra.mxu0 %v876
        %v971 = vpop.f32.mrf.mxu0
        %v972 = vadd.f32 %v898, %v971
        %v973 = vpop.f32.mrf.mxu0
        %974 = vdwg.mxu0
        %v975 = vld [vmem:[%s6] sm:$0x3f]
        %vm976 = vcmask 261120
        %v977 = vsel %vm976, %v872, 0.0
        %978 = vadd.xlane.f32.xlu0 %v977
        %v979 = vpop.xlane.xlu0 %978
        %v980 = vrcp.pop 32.0
        %v981 = vmul.f32 %v979, %v980
        %v982 = vsub.f32 %v872, %v981
        %v983 = vmul.f32 %v982, %v982
        %v984 = vsel %vm976, %v983, 0.0
        %985 = vadd.xlane.f32.xlu0 %v984
        %v986 = vpop.xlane.xlu0 %985
        %v987 = vmul.f32 %v986, %v980
        %v988 = vadd.f32 %v987, 1e-05
        %v989 = vrsqrt.pop %v988
        %v990 = vmul.f32 %v982, %v989
        %v991 = vlaneseq
        %v992 = vshrl.u32 %v991, 7
        %v993 = vsub.s32 0, %v992
        %v994 = vrot.slane %v975, %v993
        %v995 = vmul.f32 %v990, %v994
        %v996 = vlaneseq
        %v997 = vshrl.u32 %v996, 7
        %v998 = vsub.s32 1, %v997
        %v999 = vrot.slane %v975, %v998
        %v1000 = vadd.f32 %v995, %v999
        %v1001 = vsel %vm976, %v967, 0.0
        %1002 = vadd.xlane.f32.xlu0 %v1001
        %v1003 = vpop.xlane.xlu0 %1002
        %v1004 = vsel %vm976, %v972, 0.0
        %1005 = vadd.xlane.f32.xlu0 %v1004
        %v1006 = vpop.xlane.xlu0 %1005
        %v1007 = vmul.f32 %v1003, %v980
        %v1008 = vmul.f32 %v1006, %v980
        %v1009 = vsub.f32 %v967, %v1007
        %v1010 = vsub.f32 %v972, %v1008
        %v1011 = vmul.f32 %v1009, %v1009
        %v1012 = vmul.f32 %v1010, %v1010
        %v1013 = vsel %vm976, %v1011, 0.0
        %1014 = vadd.xlane.f32.xlu0 %v1013
        %v1015 = vpop.xlane.xlu0 %1014
        %v1016 = vsel %vm976, %v1012, 0.0
        %1017 = vadd.xlane.f32.xlu0 %v1016
        %v1018 = vpop.xlane.xlu0 %1017
        %v1019 = vmul.f32 %v1015, %v980
        %v1020 = vmul.f32 %v1018, %v980
        %v1021 = vadd.f32 %v1019, 1e-05
        %v1022 = vadd.f32 %v1020, 1e-05
        %v1023 = vrsqrt.pop %v1021
        %v1024 = vrsqrt.pop %v1022
        %v1025 = vmul.f32 %v1009, %v1023
        %v1026 = vmul.f32 %v1010, %v1024
        %v1027 = vlaneseq
        %v1028 = vshrl.u32 %v1027, 7
        %v1029 = vsub.s32 2, %v1028
        %v1030 = vrot.slane %v975, %v1029
        %v1031 = vmul.f32 %v1025, %v1030
        %v1032 = vmul.f32 %v1026, %v1030
        %v1033 = vlaneseq
        %v1034 = vshrl.u32 %v1033, 7
        %v1035 = vsub.s32 3, %v1034
        %v1036 = vrot.slane %v975, %v1035
        %v1037 = vadd.f32 %v1031, %v1036
        %v1038 = vadd.f32 %v1032, %v1036
        %v1039 = vld [vmem:[%s7] sm:$0xf]
        %v1040 = vld [vmem:[%s7 + $0x4] sm:$0xf]
        %v1041 = vld [vmem:[%s7 + $0x8] sm:$0xf]
        %v1042 = vld [vmem:[%s7 + $0xc] sm:$0xf]
        %v1043 = vld [vmem:[%s8] sm:$0xf]
        %v1044 = vld [vmem:[%s8 + $0x4] sm:$0xf]
        %v1045 = vld [vmem:[%s8 + $0x8] sm:$0xf]
        %v1046 = vld [vmem:[%s8 + $0xc] sm:$0xf]
        %v1047 = vld [vmem:[%s9] sm:$0xf]
        %v1048 = vld [vmem:[%s9 + $0x4] sm:$0xf]
        %v1049 = vld [vmem:[%s9 + $0x8] sm:$0xf]
        %v1050 = vld [vmem:[%s9 + $0xc] sm:$0xf]
        %v1051 = vld [vmem:[%s10] sm:$0x1]
        %v1052 = vpack.c.bf16 %v1000, %v1000
        %v1057 = vunpack.c.l.b16 %v1039
        %v1058 = vunpack.c.l.b16 %v1040
        %v1059 = vunpack.c.l.b16 %v1041
        %v1060 = vunpack.c.l.b16 %v1042
        %v1061 = vpack.c.b16 %v1058, %v1057
        %v1062 = vpack.c.b16 %v1060, %v1059
        %v1066 = vsel %vm976, %v1052, 0
        %1068 = vmatprep.subr.bf16.mxu0 0
        %1069 = vmatpush1.bf16.msra.mxu0 0
        %1070 = vmatprep.subr.bf16.mxu0 0
        %1071 = vmatpush1.bf16.msra.mxu0 0
        %1072 = vmatprep.subr.bf16.mxu0 0
        %1073 = vmatpush1.bf16.msra.mxu0 0
        %1074 = vmatprep.subr.bf16.mxu0 0
        %1075 = vmatpush1.bf16.msra.mxu0 0
        %1076 = vmatprep.subr.bf16.mxu0 0
        %1077 = vmatpush1.bf16.msra.mxu0 0
        %1078 = vmatprep.subr.bf16.mxu0 0
        %1079 = vmatpush1.bf16.msra.mxu0 0
        %1080 = vmatprep.subr.bf16.mxu0 0
        %1081 = vmatpush1.bf16.msra.mxu0 %v1062
        %1082 = vmatprep.subr.bf16.mxu0 0
        %1083 = vmatpush1.bf16.msra.mxu0 %v1061
        %1084 = vmatprep.subr.bf16.mxu0 0
        %1085 = vmatpush2.bf16.msra.mxu0 0
        %1086 = vmatprep.subr.bf16.mxu0 0
        %1087 = vmatpush2.bf16.msra.mxu0 0
        %1088 = vmatprep.subr.bf16.mxu0 0
        %1089 = vmatpush2.bf16.msra.mxu0 0
        %1090 = vmatprep.subr.bf16.mxu0 0
        %1091 = vmatpush2.bf16.msra.mxu0 0
        %1092 = vmatprep.subr.bf16.mxu0 0
        %1093 = vmatpush2.bf16.msra.mxu0 0
        %1094 = vmatprep.subr.bf16.mxu0 0
        %1095 = vmatpush2.bf16.msra.mxu0 0
        %1096 = vmatprep.subr.bf16.mxu0 0
        %1097 = vmatpush2.bf16.msra.mxu0 0
        %1098 = vmatprep.subr.bf16.mxu0 0
        %1099 = vmatpush2.bf16.msra.mxu0 0
        %1100 = vmatprep.mubr.bf16.mxu0 0
        %1101 = vmatmul.mubr.bf16.gmra.mxu0 %v1066
        %v1102 = vpop.f32.mrf.mxu0
        %v1103 = vadd.f32 0.0, %v1102
        %v1104 = vpop.f32.mrf.mxu0
        %v1105 = vpop.f32.mrf.mxu0
        %v1106 = vpop.f32.mrf.mxu0
        %1107 = vdwg.mxu0
        %v1108 = vpack.c.bf16 %v1038, %v1037
        %v1113 = vunpack.c.l.b16 %v1043
        %v1114 = vunpack.c.l.b16 %v1044
        %v1115 = vunpack.c.l.b16 %v1045
        %v1116 = vunpack.c.l.b16 %v1046
        %v1117 = vpack.c.b16 %v1114, %v1113
        %v1118 = vpack.c.b16 %v1116, %v1115
        %v1122 = vsel %vm976, %v1108, 0
        %1124 = vmatprep.subr.bf16.mxu0 0
        %1125 = vmatpush1.bf16.msra.mxu0 0
        %1126 = vmatprep.subr.bf16.mxu0 0
        %1127 = vmatpush1.bf16.msra.mxu0 0
        %1128 = vmatprep.subr.bf16.mxu0 0
        %1129 = vmatpush1.bf16.msra.mxu0 0
        %1130 = vmatprep.subr.bf16.mxu0 0
        %1131 = vmatpush1.bf16.msra.mxu0 0
        %1132 = vmatprep.subr.bf16.mxu0 0
        %1133 = vmatpush1.bf16.msra.mxu0 0
        %1134 = vmatprep.subr.bf16.mxu0 0
        %1135 = vmatpush1.bf16.msra.mxu0 0
        %1136 = vmatprep.subr.bf16.mxu0 0
        %1137 = vmatpush1.bf16.msra.mxu0 %v1118
        %1138 = vmatprep.subr.bf16.mxu0 0
        %1139 = vmatpush1.bf16.msra.mxu0 %v1117
        %1140 = vmatprep.subr.bf16.mxu0 0
        %1141 = vmatpush2.bf16.msra.mxu0 0
        %1142 = vmatprep.subr.bf16.mxu0 0
        %1143 = vmatpush2.bf16.msra.mxu0 0
        %1144 = vmatprep.subr.bf16.mxu0 0
        %1145 = vmatpush2.bf16.msra.mxu0 0
        %1146 = vmatprep.subr.bf16.mxu0 0
        %1147 = vmatpush2.bf16.msra.mxu0 0
        %1148 = vmatprep.subr.bf16.mxu0 0
        %1149 = vmatpush2.bf16.msra.mxu0 0
        %1150 = vmatprep.subr.bf16.mxu0 0
        %1151 = vmatpush2.bf16.msra.mxu0 0
        %1152 = vmatprep.subr.bf16.mxu0 0
        %1153 = vmatpush2.bf16.msra.mxu0 0
        %1154 = vmatprep.subr.bf16.mxu0 0
        %1155 = vmatpush2.bf16.msra.mxu0 0
        %1156 = vmatprep.mubr.bf16.mxu0 0
        %1157 = vmatmul.mubr.bf16.gmra.mxu0 %v1122
        %v1158 = vpop.f32.mrf.mxu0
        %v1159 = vadd.f32 0.0, %v1158
        %v1160 = vpop.f32.mrf.mxu0
        %v1161 = vpop.f32.mrf.mxu0
        %v1162 = vadd.f32 0.0, %v1161
        %v1163 = vpop.f32.mrf.mxu0
        %1164 = vdwg.mxu0
        %v1165 = vpack.c.bf16 %v1103, %v1103
        %v1166 = vpack.c.bf16 %v1162, %v1159
        %vm1167 = vcmask 64512
        %v1169 = vsel %vm1167, %v1165, 0
        %v1172 = vsel %vm1167, %v1166, 0
        %1174 = vmatprep.subr.bf16.mxu0 0
        %1175 = vmatpush1.bf16.xpose.msra.mxu0 0
        %1176 = vmatprep.subr.bf16.mxu0 0
        %1177 = vmatpush1.bf16.xpose.msra.mxu0 0
        %1178 = vmatprep.subr.bf16.mxu0 0
        %1179 = vmatpush1.bf16.xpose.msra.mxu0 0
        %1180 = vmatprep.subr.bf16.mxu0 0
        %1181 = vmatpush1.bf16.xpose.msra.mxu0 0
        %1182 = vmatprep.subr.bf16.mxu0 0
        %1183 = vmatpush1.bf16.xpose.msra.mxu0 0
        %1184 = vmatprep.subr.bf16.mxu0 0
        %1185 = vmatpush1.bf16.xpose.msra.mxu0 0
        %1186 = vmatprep.subr.bf16.mxu0 0
        %1187 = vmatpush1.bf16.xpose.msra.mxu0 0
        %1188 = vmatprep.subr.bf16.mxu0 0
        %1189 = vmatpush1.bf16.xpose.msra.mxu0 %v1172
        %1190 = vmatprep.subr.bf16.mxu0 0
        %1191 = vmatpush2.bf16.xpose.msra.mxu0 0
        %1192 = vmatprep.subr.bf16.mxu0 0
        %1193 = vmatpush2.bf16.xpose.msra.mxu0 0
        %1194 = vmatprep.subr.bf16.mxu0 0
        %1195 = vmatpush2.bf16.xpose.msra.mxu0 0
        %1196 = vmatprep.subr.bf16.mxu0 0
        %1197 = vmatpush2.bf16.xpose.msra.mxu0 0
        %1198 = vmatprep.subr.bf16.mxu0 0
        %1199 = vmatpush2.bf16.xpose.msra.mxu0 0
        %1200 = vmatprep.subr.bf16.mxu0 0
        %1201 = vmatpush2.bf16.xpose.msra.mxu0 0
        %1202 = vmatprep.subr.bf16.mxu0 0
        %1203 = vmatpush2.bf16.xpose.msra.mxu0 0
        %1204 = vmatprep.subr.bf16.mxu0 0
        %1205 = vmatpush2.bf16.xpose.msra.mxu0 0
        %1206 = vmatprep.mubr.bf16.mxu0 0
        %1207 = vmatmul.mubr.bf16.gmra.mxu0 %v1169
        %v1208 = vpop.f32.mrf.mxu0
        %v1209 = vadd.f32 0.0, %v1208
        %v1210 = vpop.f32.mrf.mxu0
        %v1211 = vpop.f32.mrf.mxu0
        %v1212 = vpop.f32.mrf.mxu0
        %1213 = vdwg.mxu0
        %vm1214 = vcmask 130048
        %v1215 = vsel %vm1214, %v1209, -inf
        %1216 = vmax.xlane.f32.xlu0 %v1215
        %v1217 = vpop.xlane.xlu0 %1216
        %v1218 = vsub.f32 %v1209, %v1217
        %v1219 = vmul.f32 %v1218, 1.442695
        %v1220 = vpow.pop %v1219
        %v1221 = vsel %vm1214, %v1220, 0.0
        %1222 = vadd.xlane.f32.xlu0 %v1221
        %v1223 = vpop.xlane.xlu0 %1222
        %v1224 = vpack.c.bf16 %v1220, %v1220
        %1226 = vrot.lane.b32.xlu0 %v1166, 96
        %v1227 = vpop.permute.xlu0 %1226
        %v1230 = vsel %vm1214, %v1224, 0
        %1232 = vmatprep.subr.bf16.mxu0 0
        %1233 = vmatpush1.bf16.msra.mxu0 0
        %1234 = vmatprep.subr.bf16.mxu0 0
        %1235 = vmatpush1.bf16.msra.mxu0 0
        %1236 = vmatprep.subr.bf16.mxu0 0
        %1237 = vmatpush1.bf16.msra.mxu0 0
        %1238 = vmatprep.subr.bf16.mxu0 0
        %1239 = vmatpush1.bf16.msra.mxu0 0
        %1240 = vmatprep.subr.bf16.mxu0 0
        %1241 = vmatpush1.bf16.msra.mxu0 0
        %1242 = vmatprep.subr.bf16.mxu0 0
        %1243 = vmatpush1.bf16.msra.mxu0 0
        %1244 = vmatprep.subr.bf16.mxu0 0
        %1245 = vmatpush1.bf16.msra.mxu0 0
        %1246 = vmatprep.subr.bf16.mxu0 0
        %1247 = vmatpush1.bf16.msra.mxu0 %v1227
        %1248 = vmatprep.subr.bf16.mxu0 0
        %1249 = vmatpush2.bf16.msra.mxu0 0
        %1250 = vmatprep.subr.bf16.mxu0 0
        %1251 = vmatpush2.bf16.msra.mxu0 0
        %1252 = vmatprep.subr.bf16.mxu0 0
        %1253 = vmatpush2.bf16.msra.mxu0 0
        %1254 = vmatprep.subr.bf16.mxu0 0
        %1255 = vmatpush2.bf16.msra.mxu0 0
        %1256 = vmatprep.subr.bf16.mxu0 0
        %1257 = vmatpush2.bf16.msra.mxu0 0
        %1258 = vmatprep.subr.bf16.mxu0 0
        %1259 = vmatpush2.bf16.msra.mxu0 0
        %1260 = vmatprep.subr.bf16.mxu0 0
        %1261 = vmatpush2.bf16.msra.mxu0 0
        %1262 = vmatprep.subr.bf16.mxu0 0
        %1263 = vmatpush2.bf16.msra.mxu0 0
        %1264 = vmatprep.mubr.bf16.mxu0 0
        %1265 = vmatmul.mubr.bf16.gmra.mxu0 %v1230
        %v1266 = vpop.f32.mrf.mxu0
        %v1267 = vadd.f32 0.0, %v1266
        %v1268 = vpop.f32.mrf.mxu0
        %v1269 = vpop.f32.mrf.mxu0
        %v1270 = vpop.f32.mrf.mxu0
        %1271 = vdwg.mxu0
        %v1272 = vrcp.pop %v1223
        %v1273 = vmul.f32 %v1267, %v1272
        %v1274 = vpack.c.bf16 %v1273, %v1273
        %1276 = vrot.lane.b32.xlu0 %v1165, 120
        %v1277 = vpop.permute.xlu0 %1276
        %1278 = vrot.lane.b32.xlu0 %v1166, 120
        %v1279 = vpop.permute.xlu0 %1278
        %v1281 = vsel %vm1167, %v1277, 0
        %v1284 = vsel %vm1167, %v1279, 0
        %1286 = vmatprep.subr.bf16.mxu0 0
        %1287 = vmatpush1.bf16.xpose.msra.mxu0 0
        %1288 = vmatprep.subr.bf16.mxu0 0
        %1289 = vmatpush1.bf16.xpose.msra.mxu0 0
        %1290 = vmatprep.subr.bf16.mxu0 0
        %1291 = vmatpush1.bf16.xpose.msra.mxu0 0
        %1292 = vmatprep.subr.bf16.mxu0 0
        %1293 = vmatpush1.bf16.xpose.msra.mxu0 0
        %1294 = vmatprep.subr.bf16.mxu0 0
        %1295 = vmatpush1.bf16.xpose.msra.mxu0 0
        %1296 = vmatprep.subr.bf16.mxu0 0
        %1297 = vmatpush1.bf16.xpose.msra.mxu0 0
        %1298 = vmatprep.subr.bf16.mxu0 0
        %1299 = vmatpush1.bf16.xpose.msra.mxu0 0
        %1300 = vmatprep.subr.bf16.mxu0 0
        %1301 = vmatpush1.bf16.xpose.msra.mxu0 %v1284
        %1302 = vmatprep.subr.bf16.mxu0 0
        %1303 = vmatpush2.bf16.xpose.msra.mxu0 0
        %1304 = vmatprep.subr.bf16.mxu0 0
        %1305 = vmatpush2.bf16.xpose.msra.mxu0 0
        %1306 = vmatprep.subr.bf16.mxu0 0
        %1307 = vmatpush2.bf16.xpose.msra.mxu0 0
        %1308 = vmatprep.subr.bf16.mxu0 0
        %1309 = vmatpush2.bf16.xpose.msra.mxu0 0
        %1310 = vmatprep.subr.bf16.mxu0 0
        %1311 = vmatpush2.bf16.xpose.msra.mxu0 0
        %1312 = vmatprep.subr.bf16.mxu0 0
        %1313 = vmatpush2.bf16.xpose.msra.mxu0 0
        %1314 = vmatprep.subr.bf16.mxu0 0
        %1315 = vmatpush2.bf16.xpose.msra.mxu0 0
        %1316 = vmatprep.subr.bf16.mxu0 0
        %1317 = vmatpush2.bf16.xpose.msra.mxu0 0
        %1318 = vmatprep.mubr.bf16.mxu0 0
        %1319 = vmatmul.mubr.bf16.gmra.mxu0 %v1281
        %v1320 = vpop.f32.mrf.mxu0
        %v1321 = vadd.f32 0.0, %v1320
        %v1322 = vpop.f32.mrf.mxu0
        %v1323 = vpop.f32.mrf.mxu0
        %v1324 = vpop.f32.mrf.mxu0
        %1325 = vdwg.mxu0
        %v1326 = vsel %vm1214, %v1321, -inf
        %1327 = vmax.xlane.f32.xlu0 %v1326
        %v1328 = vpop.xlane.xlu0 %1327
        %v1329 = vsub.f32 %v1321, %v1328
        %v1330 = vmul.f32 %v1329, 1.442695
        %v1331 = vpow.pop %v1330
        %v1332 = vsel %vm1214, %v1331, 0.0
        %1333 = vadd.xlane.f32.xlu0 %v1332
        %v1334 = vpop.xlane.xlu0 %1333
        %v1335 = vpack.c.bf16 %v1331, %v1331
        %1336 = vrot.lane.b32.xlu0 %v1166, 88
        %v1337 = vpop.permute.xlu0 %1336
        %v1340 = vsel %vm1214, %v1335, 0
        %1342 = vmatprep.subr.bf16.mxu0 0
        %1343 = vmatpush1.bf16.msra.mxu0 0
        %1344 = vmatprep.subr.bf16.mxu0 0
        %1345 = vmatpush1.bf16.msra.mxu0 0
        %1346 = vmatprep.subr.bf16.mxu0 0
        %1347 = vmatpush1.bf16.msra.mxu0 0
        %1348 = vmatprep.subr.bf16.mxu0 0
        %1349 = vmatpush1.bf16.msra.mxu0 0
        %1350 = vmatprep.subr.bf16.mxu0 0
        %1351 = vmatpush1.bf16.msra.mxu0 0
        %1352 = vmatprep.subr.bf16.mxu0 0
        %1353 = vmatpush1.bf16.msra.mxu0 0
        %1354 = vmatprep.subr.bf16.mxu0 0
        %1355 = vmatpush1.bf16.msra.mxu0 0
        %1356 = vmatprep.subr.bf16.mxu0 0
        %1357 = vmatpush1.bf16.msra.mxu0 %v1337
        %1358 = vmatprep.subr.bf16.mxu0 0
        %1359 = vmatpush2.bf16.msra.mxu0 0
        %1360 = vmatprep.subr.bf16.mxu0 0
        %1361 = vmatpush2.bf16.msra.mxu0 0
        %1362 = vmatprep.subr.bf16.mxu0 0
        %1363 = vmatpush2.bf16.msra.mxu0 0
        %1364 = vmatprep.subr.bf16.mxu0 0
        %1365 = vmatpush2.bf16.msra.mxu0 0
        %1366 = vmatprep.subr.bf16.mxu0 0
        %1367 = vmatpush2.bf16.msra.mxu0 0
        %1368 = vmatprep.subr.bf16.mxu0 0
        %1369 = vmatpush2.bf16.msra.mxu0 0
        %1370 = vmatprep.subr.bf16.mxu0 0
        %1371 = vmatpush2.bf16.msra.mxu0 0
        %1372 = vmatprep.subr.bf16.mxu0 0
        %1373 = vmatpush2.bf16.msra.mxu0 0
        %1374 = vmatprep.mubr.bf16.mxu0 0
        %1375 = vmatmul.mubr.bf16.gmra.mxu0 %v1340
        %v1376 = vpop.f32.mrf.mxu0
        %v1377 = vadd.f32 0.0, %v1376
        %v1378 = vpop.f32.mrf.mxu0
        %v1379 = vpop.f32.mrf.mxu0
        %v1380 = vpop.f32.mrf.mxu0
        %1381 = vdwg.mxu0
        %v1382 = vrcp.pop %v1334
        %v1383 = vmul.f32 %v1377, %v1382
        %v1384 = vpack.c.bf16 %v1383, %v1383
        %v1386 = vsel %vm1167, %v1384, 0
        %vm1388 = vcmask 1043456
        %v1390 = vsel %vm1388, %v1048, 0
        %1392 = vmatprep.subr.bf16.mxu0 0
        %1393 = vmatpush1.bf16.msra.mxu0 0
        %1394 = vmatprep.subr.bf16.mxu0 0
        %1395 = vmatpush1.bf16.msra.mxu0 0
        %1396 = vmatprep.subr.bf16.mxu0 0
        %1397 = vmatpush1.bf16.msra.mxu0 0
        %1398 = vmatprep.subr.bf16.mxu0 0
        %1399 = vmatpush1.bf16.msra.mxu0 0
        %1400 = vmatprep.subr.bf16.mxu0 0
        %1401 = vmatpush1.bf16.msra.mxu0 0
        %1402 = vmatprep.subr.bf16.mxu0 0
        %1403 = vmatpush1.bf16.msra.mxu0 0
        %1404 = vmatprep.subr.bf16.mxu0 0
        %1405 = vmatpush1.bf16.msra.mxu0 0
        %1406 = vmatprep.subr.bf16.mxu0 0
        %1407 = vmatpush1.bf16.msra.mxu0 %v1390
        %1408 = vmatprep.subr.bf16.mxu0 0
        %1409 = vmatpush2.bf16.msra.mxu0 0
        %1410 = vmatprep.subr.bf16.mxu0 0
        %1411 = vmatpush2.bf16.msra.mxu0 0
        %1412 = vmatprep.subr.bf16.mxu0 0
        %1413 = vmatpush2.bf16.msra.mxu0 0
        %1414 = vmatprep.subr.bf16.mxu0 0
        %1415 = vmatpush2.bf16.msra.mxu0 0
        %1416 = vmatprep.subr.bf16.mxu0 0
        %1417 = vmatpush2.bf16.msra.mxu0 0
        %1418 = vmatprep.subr.bf16.mxu0 0
        %1419 = vmatpush2.bf16.msra.mxu0 0
        %1420 = vmatprep.subr.bf16.mxu0 0
        %1421 = vmatpush2.bf16.msra.mxu0 0
        %1422 = vmatprep.subr.bf16.mxu0 0
        %1423 = vmatpush2.bf16.msra.mxu0 0
        %1424 = vmatprep.mubr.bf16.mxu0 0
        %1425 = vmatmul.mubr.bf16.gmra.mxu0 %v1386
        %v1426 = vpop.f32.mrf.mxu0
        %v1427 = vadd.f32 0.0, %v1426
        %v1428 = vpop.f32.mrf.mxu0
        %v1429 = vpop.f32.mrf.mxu0
        %v1430 = vpop.f32.mrf.mxu0
        %1431 = vdwg.mxu0
        %v1433 = vsel %vm1167, %v1274, 0
        %v1436 = vsel %vm1388, %v1047, 0
        %1438 = vmatprep.subr.bf16.mxu0 0
        %1439 = vmatpush1.bf16.msra.mxu0 0
        %1440 = vmatprep.subr.bf16.mxu0 0
        %1441 = vmatpush1.bf16.msra.mxu0 0
        %1442 = vmatprep.subr.bf16.mxu0 0
        %1443 = vmatpush1.bf16.msra.mxu0 0
        %1444 = vmatprep.subr.bf16.mxu0 0
        %1445 = vmatpush1.bf16.msra.mxu0 0
        %1446 = vmatprep.subr.bf16.mxu0 0
        %1447 = vmatpush1.bf16.msra.mxu0 0
        %1448 = vmatprep.subr.bf16.mxu0 0
        %1449 = vmatpush1.bf16.msra.mxu0 0
        %1450 = vmatprep.subr.bf16.mxu0 0
        %1451 = vmatpush1.bf16.msra.mxu0 0
        %1452 = vmatprep.subr.bf16.mxu0 0
        %1453 = vmatpush1.bf16.msra.mxu0 %v1436
        %1454 = vmatprep.subr.bf16.mxu0 0
        %1455 = vmatpush2.bf16.msra.mxu0 0
        %1456 = vmatprep.subr.bf16.mxu0 0
        %1457 = vmatpush2.bf16.msra.mxu0 0
        %1458 = vmatprep.subr.bf16.mxu0 0
        %1459 = vmatpush2.bf16.msra.mxu0 0
        %1460 = vmatprep.subr.bf16.mxu0 0
        %1461 = vmatpush2.bf16.msra.mxu0 0
        %1462 = vmatprep.subr.bf16.mxu0 0
        %1463 = vmatpush2.bf16.msra.mxu0 0
        %1464 = vmatprep.subr.bf16.mxu0 0
        %1465 = vmatpush2.bf16.msra.mxu0 0
        %1466 = vmatprep.subr.bf16.mxu0 0
        %1467 = vmatpush2.bf16.msra.mxu0 0
        %1468 = vmatprep.subr.bf16.mxu0 0
        %1469 = vmatpush2.bf16.msra.mxu0 0
        %1470 = vmatprep.mubr.bf16.mxu0 0
        %1471 = vmatmul.mubr.bf16.gmra.mxu0 %v1433
        %v1472 = vpop.f32.mrf.mxu0
        %v1473 = vadd.f32 %v1427, %v1472
        %v1474 = vpop.f32.mrf.mxu0
        %v1475 = vpop.f32.mrf.mxu0
        %v1476 = vpop.f32.mrf.mxu0
        %1477 = vdwg.mxu0
        %1478 = vrot.lane.b32.xlu0 %v1165, 112
        %v1479 = vpop.permute.xlu0 %1478
        %1480 = vrot.lane.b32.xlu0 %v1166, 112
        %v1481 = vpop.permute.xlu0 %1480
        %v1483 = vsel %vm1167, %v1479, 0
        %v1486 = vsel %vm1167, %v1481, 0
        %1488 = vmatprep.subr.bf16.mxu0 0
        %1489 = vmatpush1.bf16.xpose.msra.mxu0 0
        %1490 = vmatprep.subr.bf16.mxu0 0
        %1491 = vmatpush1.bf16.xpose.msra.mxu0 0
        %1492 = vmatprep.subr.bf16.mxu0 0
        %1493 = vmatpush1.bf16.xpose.msra.mxu0 0
        %1494 = vmatprep.subr.bf16.mxu0 0
        %1495 = vmatpush1.bf16.xpose.msra.mxu0 0
        %1496 = vmatprep.subr.bf16.mxu0 0
        %1497 = vmatpush1.bf16.xpose.msra.mxu0 0
        %1498 = vmatprep.subr.bf16.mxu0 0
        %1499 = vmatpush1.bf16.xpose.msra.mxu0 0
        %1500 = vmatprep.subr.bf16.mxu0 0
        %1501 = vmatpush1.bf16.xpose.msra.mxu0 0
        %1502 = vmatprep.subr.bf16.mxu0 0
        %1503 = vmatpush1.bf16.xpose.msra.mxu0 %v1486
        %1504 = vmatprep.subr.bf16.mxu0 0
        %1505 = vmatpush2.bf16.xpose.msra.mxu0 0
        %1506 = vmatprep.subr.bf16.mxu0 0
        %1507 = vmatpush2.bf16.xpose.msra.mxu0 0
        %1508 = vmatprep.subr.bf16.mxu0 0
        %1509 = vmatpush2.bf16.xpose.msra.mxu0 0
        %1510 = vmatprep.subr.bf16.mxu0 0
        %1511 = vmatpush2.bf16.xpose.msra.mxu0 0
        %1512 = vmatprep.subr.bf16.mxu0 0
        %1513 = vmatpush2.bf16.xpose.msra.mxu0 0
        %1514 = vmatprep.subr.bf16.mxu0 0
        %1515 = vmatpush2.bf16.xpose.msra.mxu0 0
        %1516 = vmatprep.subr.bf16.mxu0 0
        %1517 = vmatpush2.bf16.xpose.msra.mxu0 0
        %1518 = vmatprep.subr.bf16.mxu0 0
        %1519 = vmatpush2.bf16.xpose.msra.mxu0 0
        %1520 = vmatprep.mubr.bf16.mxu0 0
        %1521 = vmatmul.mubr.bf16.gmra.mxu0 %v1483
        %v1522 = vpop.f32.mrf.mxu0
        %v1523 = vadd.f32 0.0, %v1522
        %v1524 = vpop.f32.mrf.mxu0
        %v1525 = vpop.f32.mrf.mxu0
        %v1526 = vpop.f32.mrf.mxu0
        %1527 = vdwg.mxu0
        %v1528 = vsel %vm1214, %v1523, -inf
        %1529 = vmax.xlane.f32.xlu0 %v1528
        %v1530 = vpop.xlane.xlu0 %1529
        %v1531 = vsub.f32 %v1523, %v1530
        %v1532 = vmul.f32 %v1531, 1.442695
        %v1533 = vpow.pop %v1532
        %v1534 = vsel %vm1214, %v1533, 0.0
        %1535 = vadd.xlane.f32.xlu0 %v1534
        %v1536 = vpop.xlane.xlu0 %1535
        %v1537 = vpack.c.bf16 %v1533, %v1533
        %1538 = vrot.lane.b32.xlu0 %v1166, 80
        %v1539 = vpop.permute.xlu0 %1538
        %v1542 = vsel %vm1214, %v1537, 0
        %1544 = vmatprep.subr.bf16.mxu0 0
        %1545 = vmatpush1.bf16.msra.mxu0 0
        %1546 = vmatprep.subr.bf16.mxu0 0
        %1547 = vmatpush1.bf16.msra.mxu0 0
        %1548 = vmatprep.subr.bf16.mxu0 0
        %1549 = vmatpush1.bf16.msra.mxu0 0
        %1550 = vmatprep.subr.bf16.mxu0 0
        %1551 = vmatpush1.bf16.msra.mxu0 0
        %1552 = vmatprep.subr.bf16.mxu0 0
        %1553 = vmatpush1.bf16.msra.mxu0 0
        %1554 = vmatprep.subr.bf16.mxu0 0
        %1555 = vmatpush1.bf16.msra.mxu0 0
        %1556 = vmatprep.subr.bf16.mxu0 0
        %1557 = vmatpush1.bf16.msra.mxu0 0
        %1558 = vmatprep.subr.bf16.mxu0 0
        %1559 = vmatpush1.bf16.msra.mxu0 %v1539
        %1560 = vmatprep.subr.bf16.mxu0 0
        %1561 = vmatpush2.bf16.msra.mxu0 0
        %1562 = vmatprep.subr.bf16.mxu0 0
        %1563 = vmatpush2.bf16.msra.mxu0 0
        %1564 = vmatprep.subr.bf16.mxu0 0
        %1565 = vmatpush2.bf16.msra.mxu0 0
        %1566 = vmatprep.subr.bf16.mxu0 0
        %1567 = vmatpush2.bf16.msra.mxu0 0
        %1568 = vmatprep.subr.bf16.mxu0 0
        %1569 = vmatpush2.bf16.msra.mxu0 0
        %1570 = vmatprep.subr.bf16.mxu0 0
        %1571 = vmatpush2.bf16.msra.mxu0 0
        %1572 = vmatprep.subr.bf16.mxu0 0
        %1573 = vmatpush2.bf16.msra.mxu0 0
        %1574 = vmatprep.subr.bf16.mxu0 0
        %1575 = vmatpush2.bf16.msra.mxu0 0
        %1576 = vmatprep.mubr.bf16.mxu0 0
        %1577 = vmatmul.mubr.bf16.gmra.mxu0 %v1542
        %v1578 = vpop.f32.mrf.mxu0
        %v1579 = vadd.f32 0.0, %v1578
        %v1580 = vpop.f32.mrf.mxu0
        %v1581 = vpop.f32.mrf.mxu0
        %v1582 = vpop.f32.mrf.mxu0
        %1583 = vdwg.mxu0
        %v1584 = vrcp.pop %v1536
        %v1585 = vmul.f32 %v1579, %v1584
        %v1586 = vpack.c.bf16 %v1585, %v1585
        %v1588 = vsel %vm1167, %v1586, 0
        %v1591 = vsel %vm1388, %v1049, 0
        %1593 = vmatprep.subr.bf16.mxu0 0
        %1594 = vmatpush1.bf16.msra.mxu0 0
        %1595 = vmatprep.subr.bf16.mxu0 0
        %1596 = vmatpush1.bf16.msra.mxu0 0
        %1597 = vmatprep.subr.bf16.mxu0 0
        %1598 = vmatpush1.bf16.msra.mxu0 0
        %1599 = vmatprep.subr.bf16.mxu0 0
        %1600 = vmatpush1.bf16.msra.mxu0 0
        %1601 = vmatprep.subr.bf16.mxu0 0
        %1602 = vmatpush1.bf16.msra.mxu0 0
        %1603 = vmatprep.subr.bf16.mxu0 0
        %1604 = vmatpush1.bf16.msra.mxu0 0
        %1605 = vmatprep.subr.bf16.mxu0 0
        %1606 = vmatpush1.bf16.msra.mxu0 0
        %1607 = vmatprep.subr.bf16.mxu0 0
        %1608 = vmatpush1.bf16.msra.mxu0 %v1591
        %1609 = vmatprep.subr.bf16.mxu0 0
        %1610 = vmatpush2.bf16.msra.mxu0 0
        %1611 = vmatprep.subr.bf16.mxu0 0
        %1612 = vmatpush2.bf16.msra.mxu0 0
        %1613 = vmatprep.subr.bf16.mxu0 0
        %1614 = vmatpush2.bf16.msra.mxu0 0
        %1615 = vmatprep.subr.bf16.mxu0 0
        %1616 = vmatpush2.bf16.msra.mxu0 0
        %1617 = vmatprep.subr.bf16.mxu0 0
        %1618 = vmatpush2.bf16.msra.mxu0 0
        %1619 = vmatprep.subr.bf16.mxu0 0
        %1620 = vmatpush2.bf16.msra.mxu0 0
        %1621 = vmatprep.subr.bf16.mxu0 0
        %1622 = vmatpush2.bf16.msra.mxu0 0
        %1623 = vmatprep.subr.bf16.mxu0 0
        %1624 = vmatpush2.bf16.msra.mxu0 0
        %1625 = vmatprep.mubr.bf16.mxu0 0
        %1626 = vmatmul.mubr.bf16.gmra.mxu0 %v1588
        %v1627 = vpop.f32.mrf.mxu0
        %v1628 = vadd.f32 0.0, %v1627
        %v1629 = vpop.f32.mrf.mxu0
        %v1630 = vpop.f32.mrf.mxu0
        %v1631 = vpop.f32.mrf.mxu0
        %1632 = vdwg.mxu0
        %v1633 = vadd.f32 %v1473, %v1628
        %1634 = vrot.lane.b32.xlu0 %v1165, 104
        %v1635 = vpop.permute.xlu0 %1634
        %1636 = vrot.lane.b32.xlu0 %v1166, 104
        %v1637 = vpop.permute.xlu0 %1636
        %v1639 = vsel %vm1167, %v1635, 0
        %v1642 = vsel %vm1167, %v1637, 0
        %1644 = vmatprep.subr.bf16.mxu0 0
        %1645 = vmatpush1.bf16.xpose.msra.mxu0 0
        %1646 = vmatprep.subr.bf16.mxu0 0
        %1647 = vmatpush1.bf16.xpose.msra.mxu0 0
        %1648 = vmatprep.subr.bf16.mxu0 0
        %1649 = vmatpush1.bf16.xpose.msra.mxu0 0
        %1650 = vmatprep.subr.bf16.mxu0 0
        %1651 = vmatpush1.bf16.xpose.msra.mxu0 0
        %1652 = vmatprep.subr.bf16.mxu0 0
        %1653 = vmatpush1.bf16.xpose.msra.mxu0 0
        %1654 = vmatprep.subr.bf16.mxu0 0
        %1655 = vmatpush1.bf16.xpose.msra.mxu0 0
        %1656 = vmatprep.subr.bf16.mxu0 0
        %1657 = vmatpush1.bf16.xpose.msra.mxu0 0
        %1658 = vmatprep.subr.bf16.mxu0 0
        %1659 = vmatpush1.bf16.xpose.msra.mxu0 %v1642
        %1660 = vmatprep.subr.bf16.mxu0 0
        %1661 = vmatpush2.bf16.xpose.msra.mxu0 0
        %1662 = vmatprep.subr.bf16.mxu0 0
        %1663 = vmatpush2.bf16.xpose.msra.mxu0 0
        %1664 = vmatprep.subr.bf16.mxu0 0
        %1665 = vmatpush2.bf16.xpose.msra.mxu0 0
        %1666 = vmatprep.subr.bf16.mxu0 0
        %1667 = vmatpush2.bf16.xpose.msra.mxu0 0
        %1668 = vmatprep.subr.bf16.mxu0 0
        %1669 = vmatpush2.bf16.xpose.msra.mxu0 0
        %1670 = vmatprep.subr.bf16.mxu0 0
        %1671 = vmatpush2.bf16.xpose.msra.mxu0 0
        %1672 = vmatprep.subr.bf16.mxu0 0
        %1673 = vmatpush2.bf16.xpose.msra.mxu0 0
        %1674 = vmatprep.subr.bf16.mxu0 0
        %1675 = vmatpush2.bf16.xpose.msra.mxu0 0
        %1676 = vmatprep.mubr.bf16.mxu0 0
        %1677 = vmatmul.mubr.bf16.gmra.mxu0 %v1639
        %v1678 = vpop.f32.mrf.mxu0
        %v1679 = vadd.f32 0.0, %v1678
        %v1680 = vpop.f32.mrf.mxu0
        %v1681 = vpop.f32.mrf.mxu0
        %v1682 = vpop.f32.mrf.mxu0
        %1683 = vdwg.mxu0
        %v1684 = vsel %vm1214, %v1679, -inf
        %1685 = vmax.xlane.f32.xlu0 %v1684
        %v1686 = vpop.xlane.xlu0 %1685
        %v1687 = vsub.f32 %v1679, %v1686
        %v1688 = vmul.f32 %v1687, 1.442695
        %v1689 = vpow.pop %v1688
        %v1690 = vsel %vm1214, %v1689, 0.0
        %1691 = vadd.xlane.f32.xlu0 %v1690
        %v1692 = vpop.xlane.xlu0 %1691
        %v1693 = vpack.c.bf16 %v1689, %v1689
        %1694 = vrot.lane.b32.xlu0 %v1166, 72
        %v1695 = vpop.permute.xlu0 %1694
        %v1698 = vsel %vm1214, %v1693, 0
        %1700 = vmatprep.subr.bf16.mxu0 0
        %1701 = vmatpush1.bf16.msra.mxu0 0
        %1702 = vmatprep.subr.bf16.mxu0 0
        %1703 = vmatpush1.bf16.msra.mxu0 0
        %1704 = vmatprep.subr.bf16.mxu0 0
        %1705 = vmatpush1.bf16.msra.mxu0 0
        %1706 = vmatprep.subr.bf16.mxu0 0
        %1707 = vmatpush1.bf16.msra.mxu0 0
        %1708 = vmatprep.subr.bf16.mxu0 0
        %1709 = vmatpush1.bf16.msra.mxu0 0
        %1710 = vmatprep.subr.bf16.mxu0 0
        %1711 = vmatpush1.bf16.msra.mxu0 0
        %1712 = vmatprep.subr.bf16.mxu0 0
        %1713 = vmatpush1.bf16.msra.mxu0 0
        %1714 = vmatprep.subr.bf16.mxu0 0
        %1715 = vmatpush1.bf16.msra.mxu0 %v1695
        %1716 = vmatprep.subr.bf16.mxu0 0
        %1717 = vmatpush2.bf16.msra.mxu0 0
        %1718 = vmatprep.subr.bf16.mxu0 0
        %1719 = vmatpush2.bf16.msra.mxu0 0
        %1720 = vmatprep.subr.bf16.mxu0 0
        %1721 = vmatpush2.bf16.msra.mxu0 0
        %1722 = vmatprep.subr.bf16.mxu0 0
        %1723 = vmatpush2.bf16.msra.mxu0 0
        %1724 = vmatprep.subr.bf16.mxu0 0
        %1725 = vmatpush2.bf16.msra.mxu0 0
        %1726 = vmatprep.subr.bf16.mxu0 0
        %1727 = vmatpush2.bf16.msra.mxu0 0
        %1728 = vmatprep.subr.bf16.mxu0 0
        %1729 = vmatpush2.bf16.msra.mxu0 0
        %1730 = vmatprep.subr.bf16.mxu0 0
        %1731 = vmatpush2.bf16.msra.mxu0 0
        %1732 = vmatprep.mubr.bf16.mxu0 0
        %1733 = vmatmul.mubr.bf16.gmra.mxu0 %v1698
        %v1734 = vpop.f32.mrf.mxu0
        %v1735 = vadd.f32 0.0, %v1734
        %v1736 = vpop.f32.mrf.mxu0
        %v1737 = vpop.f32.mrf.mxu0
        %v1738 = vpop.f32.mrf.mxu0
        %1739 = vdwg.mxu0
        %v1740 = vrcp.pop %v1692
        %v1741 = vmul.f32 %v1735, %v1740
        %v1742 = vpack.c.bf16 %v1741, %v1741
        %v1744 = vsel %vm1167, %v1742, 0
        %v1747 = vsel %vm1388, %v1050, 0
        %1749 = vmatprep.subr.bf16.mxu0 0
        %1750 = vmatpush1.bf16.msra.mxu0 0
        %1751 = vmatprep.subr.bf16.mxu0 0
        %1752 = vmatpush1.bf16.msra.mxu0 0
        %1753 = vmatprep.subr.bf16.mxu0 0
        %1754 = vmatpush1.bf16.msra.mxu0 0
        %1755 = vmatprep.subr.bf16.mxu0 0
        %1756 = vmatpush1.bf16.msra.mxu0 0
        %1757 = vmatprep.subr.bf16.mxu0 0
        %1758 = vmatpush1.bf16.msra.mxu0 0
        %1759 = vmatprep.subr.bf16.mxu0 0
        %1760 = vmatpush1.bf16.msra.mxu0 0
        %1761 = vmatprep.subr.bf16.mxu0 0
        %1762 = vmatpush1.bf16.msra.mxu0 0
        %1763 = vmatprep.subr.bf16.mxu0 0
        %1764 = vmatpush1.bf16.msra.mxu0 %v1747
        %1765 = vmatprep.subr.bf16.mxu0 0
        %1766 = vmatpush2.bf16.msra.mxu0 0
        %1767 = vmatprep.subr.bf16.mxu0 0
        %1768 = vmatpush2.bf16.msra.mxu0 0
        %1769 = vmatprep.subr.bf16.mxu0 0
        %1770 = vmatpush2.bf16.msra.mxu0 0
        %1771 = vmatprep.subr.bf16.mxu0 0
        %1772 = vmatpush2.bf16.msra.mxu0 0
        %1773 = vmatprep.subr.bf16.mxu0 0
        %1774 = vmatpush2.bf16.msra.mxu0 0
        %1775 = vmatprep.subr.bf16.mxu0 0
        %1776 = vmatpush2.bf16.msra.mxu0 0
        %1777 = vmatprep.subr.bf16.mxu0 0
        %1778 = vmatpush2.bf16.msra.mxu0 0
        %1779 = vmatprep.subr.bf16.mxu0 0
        %1780 = vmatpush2.bf16.msra.mxu0 0
        %1781 = vmatprep.mubr.bf16.mxu0 0
        %1782 = vmatmul.mubr.bf16.gmra.mxu0 %v1744
        %v1783 = vpop.f32.mrf.mxu0
        %v1784 = vadd.f32 0.0, %v1783
        %v1785 = vpop.f32.mrf.mxu0
        %v1786 = vpop.f32.mrf.mxu0
        %v1787 = vpop.f32.mrf.mxu0
        %1788 = vdwg.mxu0
        %v1789 = vadd.f32 %v1633, %v1784
        %v1791 = vlaneseq
        %v1792 = vshrl.u32 %v1791, 7
        %v1793 = vsub.s32 0, %v1792
        %v1794 = vrot.slane %v1051, %v1793
        %v1796 = vadd.f32 %v1789, %v1794
        %v1797 = vadd.f32 %v872, %v1796
        %v1798 = vsel %vm976, %v1797, 0.0
        %1799 = vadd.xlane.f32.xlu0 %v1798
        %v1800 = vpop.xlane.xlu0 %1799
        %v1801 = vmul.f32 %v1800, %v980
        %v1802 = vsub.f32 %v1797, %v1801
        %v1803 = vmul.f32 %v1802, %v1802
        %v1804 = vsel %vm976, %v1803, 0.0
        %1805 = vadd.xlane.f32.xlu0 %v1804
        %v1806 = vpop.xlane.xlu0 %1805
        %v1807 = vmul.f32 %v1806, %v980
        %v1808 = vadd.f32 %v1807, 1e-05
        %v1809 = vrsqrt.pop %v1808
        %v1810 = vmul.f32 %v1802, %v1809
        %v1811 = vlaneseq
        %v1812 = vshrl.u32 %v1811, 7
        %v1813 = vsub.s32 4, %v1812
        %v1814 = vrot.slane %v975, %v1813
        %v1815 = vmul.f32 %v1810, %v1814
        %v1816 = vlaneseq
        %v1817 = vshrl.u32 %v1816, 7
        %v1818 = vsub.s32 5, %v1817
        %v1819 = vrot.slane %v975, %v1818
        %v1820 = vadd.f32 %v1815, %v1819
        %v1821 = vld [vmem:[%s11] sm:$0xf]
        %v1822 = vld [vmem:[%s11 + $0x4] sm:$0xf]
        %v1823 = vld [vmem:[%s11 + $0x8] sm:$0xf]
        %v1824 = vld [vmem:[%s11 + $0xc] sm:$0xf]
        %v1825 = vld [vmem:[%s12] sm:$0x1]
        %v1826 = vld [vmem:[%s13] sm:$0xf]
        %v1827 = vld [vmem:[%s13 + $0x4] sm:$0xf]
        %v1828 = vld [vmem:[%s13 + $0x8] sm:$0xf]
        %v1829 = vld [vmem:[%s13 + $0xc] sm:$0xf]
        %v1830 = vld [vmem:[%s13 + $0x10] sm:$0xf]
        %v1831 = vld [vmem:[%s13 + $0x14] sm:$0xf]
        %v1832 = vld [vmem:[%s13 + $0x18] sm:$0xf]
        %v1833 = vld [vmem:[%s13 + $0x1c] sm:$0xf]
        %v1834 = vld [vmem:[%s13 + $0x20] sm:$0xf]
        %v1835 = vld [vmem:[%s13 + $0x24] sm:$0xf]
        %v1836 = vld [vmem:[%s13 + $0x28] sm:$0xf]
        %v1837 = vld [vmem:[%s13 + $0x2c] sm:$0xf]
        %v1838 = vld [vmem:[%s13 + $0x30] sm:$0xf]
        %v1839 = vld [vmem:[%s13 + $0x34] sm:$0xf]
        %v1840 = vld [vmem:[%s13 + $0x38] sm:$0xf]
        %v1841 = vld [vmem:[%s13 + $0x3c] sm:$0xf]
        %v1842 = vld [vmem:[%s14] sm:$0x1]
        %v1843 = vpack.c.bf16 %v1820, %v1820
        %v1845 = vlaneseq
        %v1846 = vshrl.u32 %v1845, 7
        %v1847 = vsub.s32 0, %v1846
        %v1848 = vrot.slane %v1825, %v1847
        %v1854 = vunpack.c.l.b16 %v1821
        %v1855 = vunpack.c.l.b16 %v1822
        %v1856 = vunpack.c.l.b16 %v1823
        %v1857 = vunpack.c.l.b16 %v1824
        %v1858 = vpack.c.b16 %v1855, %v1854
        %v1859 = vpack.c.b16 %v1857, %v1856
        %v1863 = vsel %vm976, %v1843, 0
        %1865 = vmatprep.subr.bf16.mxu0 0
        %1866 = vmatpush1.bf16.msra.mxu0 0
        %1867 = vmatprep.subr.bf16.mxu0 0
        %1868 = vmatpush1.bf16.msra.mxu0 0
        %1869 = vmatprep.subr.bf16.mxu0 0
        %1870 = vmatpush1.bf16.msra.mxu0 0
        %1871 = vmatprep.subr.bf16.mxu0 0
        %1872 = vmatpush1.bf16.msra.mxu0 0
        %1873 = vmatprep.subr.bf16.mxu0 0
        %1874 = vmatpush1.bf16.msra.mxu0 0
        %1875 = vmatprep.subr.bf16.mxu0 0
        %1876 = vmatpush1.bf16.msra.mxu0 0
        %1877 = vmatprep.subr.bf16.mxu0 0
        %1878 = vmatpush1.bf16.msra.mxu0 %v1859
        %1879 = vmatprep.subr.bf16.mxu0 0
        %1880 = vmatpush1.bf16.msra.mxu0 %v1858
        %1881 = vmatprep.subr.bf16.mxu0 0
        %1882 = vmatpush2.bf16.msra.mxu0 0
        %1883 = vmatprep.subr.bf16.mxu0 0
        %1884 = vmatpush2.bf16.msra.mxu0 0
        %1885 = vmatprep.subr.bf16.mxu0 0
        %1886 = vmatpush2.bf16.msra.mxu0 0
        %1887 = vmatprep.subr.bf16.mxu0 0
        %1888 = vmatpush2.bf16.msra.mxu0 0
        %1889 = vmatprep.subr.bf16.mxu0 0
        %1890 = vmatpush2.bf16.msra.mxu0 0
        %1891 = vmatprep.subr.bf16.mxu0 0
        %1892 = vmatpush2.bf16.msra.mxu0 0
        %1893 = vmatprep.subr.bf16.mxu0 0
        %1894 = vmatpush2.bf16.msra.mxu0 0
        %1895 = vmatprep.subr.bf16.mxu0 0
        %1896 = vmatpush2.bf16.msra.mxu0 0
        %1897 = vmatprep.mubr.bf16.mxu0 0
        %1898 = vmatmul.mubr.bf16.gmra.mxu0 %v1863
        %v1899 = vpop.f32.mrf.mxu0
        %v1900 = vadd.f32 %v1848, %v1899
        %v1901 = vpop.f32.mrf.mxu0
        %v1902 = vpop.f32.mrf.mxu0
        %v1903 = vpop.f32.mrf.mxu0
        %1904 = vdwg.mxu0
        %v1905 = vmul.f32 %v1900, 0.5
        %v1906 = vmul.f32 %v1900, 0.70710677
        %vm1907 = vcmp.ge.f32.partialorder %v1906, 0.0
        %v1908 = vsel %vm1907, 1.0, -1.0
        %v1909 = vand.u32 2147483647, %v1906
        %v1910 = vmul.f32 %v1909, 0.3275911
        %v1911 = vadd.f32 %v1910, 1.0
        %v1912 = vrcp.pop %v1911
        %v1913 = vmul.f32 1.0, %v1912
        %v1914 = vmul.f32 %v1913, 1.0614054
        %v1915 = vadd.f32 %v1914, -1.4531521
        %v1916 = vmul.f32 %v1915, %v1913
        %v1917 = vadd.f32 %v1916, 1.4214138
        %v1918 = vmul.f32 %v1917, %v1913
        %v1919 = vadd.f32 %v1918, -0.28449672
        %v1920 = vmul.f32 %v1919, %v1913
        %v1921 = vadd.f32 %v1920, 0.2548296
        %v1922 = vmul.f32 %v1921, %v1913
        %v1923 = vsub.f32 0.0, %v1909
        %v1924 = vmul.f32 %v1923, %v1909
        %v1925 = vmul.f32 %v1924, 1.442695
        %v1926 = vpow.pop %v1925
        %v1927 = vmul.f32 %v1922, %v1926
        %v1928 = vsub.f32 1.0, %v1927
        %v1929 = vmul.f32 %v1908, %v1928
        %v1930 = vadd.f32 %v1929, 1.0
        %v1931 = vmul.f32 %v1905, %v1930
        %v1932 = vpack.c.bf16 %v1931, %v1931
        %v1934 = vlaneseq
        %v1935 = vshrl.u32 %v1934, 7
        %v1936 = vsub.s32 0, %v1935
        %v1937 = vrot.slane %v1842, %v1936
        %v1955 = vunpack.c.l.b16 %v1826
        %v1956 = vunpack.c.l.b16 %v1827
        %v1957 = vunpack.c.l.b16 %v1828
        %v1958 = vunpack.c.l.b16 %v1829
        %v1959 = vunpack.c.l.b16 %v1830
        %v1960 = vunpack.c.l.b16 %v1831
        %v1961 = vunpack.c.l.b16 %v1832
        %v1962 = vunpack.c.l.b16 %v1833
        %v1963 = vunpack.c.l.b16 %v1834
        %v1964 = vunpack.c.l.b16 %v1835
        %v1965 = vunpack.c.l.b16 %v1836
        %v1966 = vunpack.c.l.b16 %v1837
        %v1967 = vunpack.c.l.b16 %v1838
        %v1968 = vunpack.c.l.b16 %v1839
        %v1969 = vunpack.c.l.b16 %v1840
        %v1970 = vunpack.c.l.b16 %v1841
        %v1971 = vpack.c.b16 %v1956, %v1955
        %v1972 = vpack.c.b16 %v1958, %v1957
        %v1973 = vpack.c.b16 %v1960, %v1959
        %v1974 = vpack.c.b16 %v1962, %v1961
        %v1975 = vpack.c.b16 %v1964, %v1963
        %v1976 = vpack.c.b16 %v1966, %v1965
        %v1977 = vpack.c.b16 %v1968, %v1967
        %v1978 = vpack.c.b16 %v1970, %v1969
        %1987 = vmatprep.subr.bf16.mxu0 0
        %1988 = vmatpush1.bf16.msra.mxu0 %v1978
        %1989 = vmatprep.subr.bf16.mxu0 0
        %1990 = vmatpush1.bf16.msra.mxu0 %v1977
        %1991 = vmatprep.subr.bf16.mxu0 0
        %1992 = vmatpush1.bf16.msra.mxu0 %v1976
        %1993 = vmatprep.subr.bf16.mxu0 0
        %1994 = vmatpush1.bf16.msra.mxu0 %v1975
        %1995 = vmatprep.subr.bf16.mxu0 0
        %1996 = vmatpush1.bf16.msra.mxu0 %v1974
        %1997 = vmatprep.subr.bf16.mxu0 0
        %1998 = vmatpush1.bf16.msra.mxu0 %v1973
        %1999 = vmatprep.subr.bf16.mxu0 0
        %2000 = vmatpush1.bf16.msra.mxu0 %v1972
        %2001 = vmatprep.subr.bf16.mxu0 0
        %2002 = vmatpush1.bf16.msra.mxu0 %v1971
        %2003 = vmatprep.subr.bf16.mxu0 0
        %2004 = vmatpush2.bf16.msra.mxu0 0
        %2005 = vmatprep.subr.bf16.mxu0 0
        %2006 = vmatpush2.bf16.msra.mxu0 0
        %2007 = vmatprep.subr.bf16.mxu0 0
        %2008 = vmatpush2.bf16.msra.mxu0 0
        %2009 = vmatprep.subr.bf16.mxu0 0
        %2010 = vmatpush2.bf16.msra.mxu0 0
        %2011 = vmatprep.subr.bf16.mxu0 0
        %2012 = vmatpush2.bf16.msra.mxu0 0
        %2013 = vmatprep.subr.bf16.mxu0 0
        %2014 = vmatpush2.bf16.msra.mxu0 0
        %2015 = vmatprep.subr.bf16.mxu0 0
        %2016 = vmatpush2.bf16.msra.mxu0 0
        %2017 = vmatprep.subr.bf16.mxu0 0
        %2018 = vmatpush2.bf16.msra.mxu0 0
        %2019 = vmatprep.mubr.bf16.mxu0 0
        %2020 = vmatmul.mubr.bf16.gmra.mxu0 %v1932
        %v2021 = vpop.f32.mrf.mxu0
        %v2022 = vadd.f32 %v1937, %v2021
        %v2023 = vpop.f32.mrf.mxu0
        %v2024 = vpop.f32.mrf.mxu0
        %v2025 = vpop.f32.mrf.mxu0
        %2026 = vdwg.mxu0
        %v2027 = vadd.f32 %v1797, %v2022
        %v2028 = vld [vmem:[%s15] sm:$0xf]
        %v2029 = vsel %vm976, %v2027, 0.0
        %2030 = vadd.xlane.f32.xlu0 %v2029
        %v2031 = vpop.xlane.xlu0 %2030
        %v2032 = vmul.f32 %v2031, %v980
        %v2033 = vsub.f32 %v2027, %v2032
        %v2034 = vmul.f32 %v2033, %v2033
        %v2035 = vsel %vm976, %v2034, 0.0
        %2036 = vadd.xlane.f32.xlu0 %v2035
        %v2037 = vpop.xlane.xlu0 %2036
        %v2038 = vmul.f32 %v2037, %v980
        %v2039 = vadd.f32 %v2038, 1e-05
        %v2040 = vrsqrt.pop %v2039
        %v2041 = vmul.f32 %v2033, %v2040
        %v2042 = vlaneseq
        %v2043 = vshrl.u32 %v2042, 7
        %v2044 = vsub.s32 0, %v2043
        %v2045 = vrot.slane %v2028, %v2044
        %v2046 = vmul.f32 %v2041, %v2045
        %v2047 = vlaneseq
        %v2048 = vshrl.u32 %v2047, 7
        %v2049 = vsub.s32 1, %v2048
        %v2050 = vrot.slane %v2028, %v2049
        %v2051 = vadd.f32 %v2046, %v2050
        %v2052 = vld [vmem:[%s16] sm:$0xf]
        %v2053 = vld [vmem:[%s16 + $0x4] sm:$0xf]
        %v2054 = vld [vmem:[%s16 + $0x8] sm:$0xf]
        %v2055 = vld [vmem:[%s16 + $0xc] sm:$0xf]
        %v2056 = vld [vmem:[%s17] sm:$0xf]
        %v2057 = vld [vmem:[%s17 + $0x4] sm:$0xf]
        %v2058 = vld [vmem:[%s17 + $0x8] sm:$0xf]
        %v2059 = vld [vmem:[%s17 + $0xc] sm:$0xf]
        %v2060 = vld [vmem:[%s18] sm:$0xf]
        %v2061 = vld [vmem:[%s18 + $0x4] sm:$0xf]
        %v2062 = vld [vmem:[%s18 + $0x8] sm:$0xf]
        %v2063 = vld [vmem:[%s18 + $0xc] sm:$0xf]
        %v2064 = vld [vmem:[%s19] sm:$0x1]
        %v2065 = vpack.c.bf16 %v2051, %v2051
        %v2070 = vunpack.c.l.b16 %v2052
        %v2071 = vunpack.c.l.b16 %v2053
        %v2072 = vunpack.c.l.b16 %v2054
        %v2073 = vunpack.c.l.b16 %v2055
        %v2074 = vpack.c.b16 %v2071, %v2070
        %v2075 = vpack.c.b16 %v2073, %v2072
        %v2079 = vsel %vm976, %v2065, 0
        %2081 = vmatprep.subr.bf16.mxu0 0
        %2082 = vmatpush1.bf16.msra.mxu0 0
        %2083 = vmatprep.subr.bf16.mxu0 0
        %2084 = vmatpush1.bf16.msra.mxu0 0
        %2085 = vmatprep.subr.bf16.mxu0 0
        %2086 = vmatpush1.bf16.msra.mxu0 0
        %2087 = vmatprep.subr.bf16.mxu0 0
        %2088 = vmatpush1.bf16.msra.mxu0 0
        %2089 = vmatprep.subr.bf16.mxu0 0
        %2090 = vmatpush1.bf16.msra.mxu0 0
        %2091 = vmatprep.subr.bf16.mxu0 0
        %2092 = vmatpush1.bf16.msra.mxu0 0
        %2093 = vmatprep.subr.bf16.mxu0 0
        %2094 = vmatpush1.bf16.msra.mxu0 %v2075
        %2095 = vmatprep.subr.bf16.mxu0 0
        %2096 = vmatpush1.bf16.msra.mxu0 %v2074
        %2097 = vmatprep.subr.bf16.mxu0 0
        %2098 = vmatpush2.bf16.msra.mxu0 0
        %2099 = vmatprep.subr.bf16.mxu0 0
        %2100 = vmatpush2.bf16.msra.mxu0 0
        %2101 = vmatprep.subr.bf16.mxu0 0
        %2102 = vmatpush2.bf16.msra.mxu0 0
        %2103 = vmatprep.subr.bf16.mxu0 0
        %2104 = vmatpush2.bf16.msra.mxu0 0
        %2105 = vmatprep.subr.bf16.mxu0 0
        %2106 = vmatpush2.bf16.msra.mxu0 0
        %2107 = vmatprep.subr.bf16.mxu0 0
        %2108 = vmatpush2.bf16.msra.mxu0 0
        %2109 = vmatprep.subr.bf16.mxu0 0
        %2110 = vmatpush2.bf16.msra.mxu0 0
        %2111 = vmatprep.subr.bf16.mxu0 0
        %2112 = vmatpush2.bf16.msra.mxu0 0
        %2113 = vmatprep.mubr.bf16.mxu0 0
        %2114 = vmatmul.mubr.bf16.gmra.mxu0 %v2079
        %v2115 = vpop.f32.mrf.mxu0
        %v2116 = vadd.f32 0.0, %v2115
        %v2117 = vpop.f32.mrf.mxu0
        %v2118 = vpop.f32.mrf.mxu0
        %v2119 = vpop.f32.mrf.mxu0
        %2120 = vdwg.mxu0
        %v2125 = vunpack.c.l.b16 %v2056
        %v2126 = vunpack.c.l.b16 %v2057
        %v2127 = vunpack.c.l.b16 %v2058
        %v2128 = vunpack.c.l.b16 %v2059
        %v2129 = vpack.c.b16 %v2126, %v2125
        %v2130 = vpack.c.b16 %v2128, %v2127
        %2133 = vmatprep.subr.bf16.mxu0 0
        %2134 = vmatpush1.bf16.msra.mxu0 0
        %2135 = vmatprep.subr.bf16.mxu0 0
        %2136 = vmatpush1.bf16.msra.mxu0 0
        %2137 = vmatprep.subr.bf16.mxu0 0
        %2138 = vmatpush1.bf16.msra.mxu0 0
        %2139 = vmatprep.subr.bf16.mxu0 0
        %2140 = vmatpush1.bf16.msra.mxu0 0
        %2141 = vmatprep.subr.bf16.mxu0 0
        %2142 = vmatpush1.bf16.msra.mxu0 0
        %2143 = vmatprep.subr.bf16.mxu0 0
        %2144 = vmatpush1.bf16.msra.mxu0 0
        %2145 = vmatprep.subr.bf16.mxu0 0
        %2146 = vmatpush1.bf16.msra.mxu0 %v2130
        %2147 = vmatprep.subr.bf16.mxu0 0
        %2148 = vmatpush1.bf16.msra.mxu0 %v2129
        %2149 = vmatprep.subr.bf16.mxu0 0
        %2150 = vmatpush2.bf16.msra.mxu0 0
        %2151 = vmatprep.subr.bf16.mxu0 0
        %2152 = vmatpush2.bf16.msra.mxu0 0
        %2153 = vmatprep.subr.bf16.mxu0 0
        %2154 = vmatpush2.bf16.msra.mxu0 0
        %2155 = vmatprep.subr.bf16.mxu0 0
        %2156 = vmatpush2.bf16.msra.mxu0 0
        %2157 = vmatprep.subr.bf16.mxu0 0
        %2158 = vmatpush2.bf16.msra.mxu0 0
        %2159 = vmatprep.subr.bf16.mxu0 0
        %2160 = vmatpush2.bf16.msra.mxu0 0
        %2161 = vmatprep.subr.bf16.mxu0 0
        %2162 = vmatpush2.bf16.msra.mxu0 0
        %2163 = vmatprep.subr.bf16.mxu0 0
        %2164 = vmatpush2.bf16.msra.mxu0 0
        %2165 = vmatprep.mubr.bf16.mxu0 0
        %2166 = vmatmul.mubr.bf16.gmra.mxu0 %v2079
        %v2167 = vpop.f32.mrf.mxu0
        %v2168 = vadd.f32 0.0, %v2167
        %v2169 = vpop.f32.mrf.mxu0
        %v2170 = vpop.f32.mrf.mxu0
        %v2171 = vpop.f32.mrf.mxu0
        %2172 = vdwg.mxu0
        %v2173 = vpack.c.bf16 %v2116, %v2116
        %v2174 = vpack.c.bf16 %v2168, %v2168
        %v2176 = vsel %vm1167, %v2173, 0
        %v2179 = vsel %vm1167, %v2174, 0
        %2181 = vmatprep.subr.bf16.mxu0 0
        %2182 = vmatpush1.bf16.xpose.msra.mxu0 0
        %2183 = vmatprep.subr.bf16.mxu0 0
        %2184 = vmatpush1.bf16.xpose.msra.mxu0 0
        %2185 = vmatprep.subr.bf16.mxu0 0
        %2186 = vmatpush1.bf16.xpose.msra.mxu0 0
        %2187 = vmatprep.subr.bf16.mxu0 0
        %2188 = vmatpush1.bf16.xpose.msra.mxu0 0
        %2189 = vmatprep.subr.bf16.mxu0 0
        %2190 = vmatpush1.bf16.xpose.msra.mxu0 0
        %2191 = vmatprep.subr.bf16.mxu0 0
        %2192 = vmatpush1.bf16.xpose.msra.mxu0 0
        %2193 = vmatprep.subr.bf16.mxu0 0
        %2194 = vmatpush1.bf16.xpose.msra.mxu0 0
        %2195 = vmatprep.subr.bf16.mxu0 0
        %2196 = vmatpush1.bf16.xpose.msra.mxu0 %v2179
        %2197 = vmatprep.subr.bf16.mxu0 0
        %2198 = vmatpush2.bf16.xpose.msra.mxu0 0
        %2199 = vmatprep.subr.bf16.mxu0 0
        %2200 = vmatpush2.bf16.xpose.msra.mxu0 0
        %2201 = vmatprep.subr.bf16.mxu0 0
        %2202 = vmatpush2.bf16.xpose.msra.mxu0 0
        %2203 = vmatprep.subr.bf16.mxu0 0
        %2204 = vmatpush2.bf16.xpose.msra.mxu0 0
        %2205 = vmatprep.subr.bf16.mxu0 0
        %2206 = vmatpush2.bf16.xpose.msra.mxu0 0
        %2207 = vmatprep.subr.bf16.mxu0 0
        %2208 = vmatpush2.bf16.xpose.msra.mxu0 0
        %2209 = vmatprep.subr.bf16.mxu0 0
        %2210 = vmatpush2.bf16.xpose.msra.mxu0 0
        %2211 = vmatprep.subr.bf16.mxu0 0
        %2212 = vmatpush2.bf16.xpose.msra.mxu0 0
        %2213 = vmatprep.mubr.bf16.mxu0 0
        %2214 = vmatmul.mubr.bf16.gmra.mxu0 %v2176
        %v2215 = vpop.f32.mrf.mxu0
        %v2216 = vadd.f32 0.0, %v2215
        %v2217 = vpop.f32.mrf.mxu0
        %v2218 = vpop.f32.mrf.mxu0
        %v2219 = vpop.f32.mrf.mxu0
        %2220 = vdwg.mxu0
        %v2221 = vsel %vm1167, %v2216, -inf
        %2222 = vmax.xlane.f32.xlu0 %v2221
        %v2223 = vpop.xlane.xlu0 %2222
        %v2224 = vsub.f32 %v2216, %v2223
        %v2225 = vmul.f32 %v2224, 1.442695
        %v2226 = vpow.pop %v2225
        %v2227 = vsel %vm1167, %v2226, 0.0
        %2228 = vadd.xlane.f32.xlu0 %v2227
        %v2229 = vpop.xlane.xlu0 %2228
        %v2230 = vpack.c.bf16 %v2226, %v2226
        %2232 = vrot.lane.b32.xlu0 %v2174, 96
        %v2233 = vpop.permute.xlu0 %2232
        %v2235 = vsel %vm1167, %v2230, 0
        %v2238 = vsel %vm1388, %v2233, 0
        %2240 = vmatprep.subr.bf16.mxu0 0
        %2241 = vmatpush1.bf16.msra.mxu0 0
        %2242 = vmatprep.subr.bf16.mxu0 0
        %2243 = vmatpush1.bf16.msra.mxu0 0
        %2244 = vmatprep.subr.bf16.mxu0 0
        %2245 = vmatpush1.bf16.msra.mxu0 0
        %2246 = vmatprep.subr.bf16.mxu0 0
        %2247 = vmatpush1.bf16.msra.mxu0 0
        %2248 = vmatprep.subr.bf16.mxu0 0
        %2249 = vmatpush1.bf16.msra.mxu0 0
        %2250 = vmatprep.subr.bf16.mxu0 0
        %2251 = vmatpush1.bf16.msra.mxu0 0
        %2252 = vmatprep.subr.bf16.mxu0 0
        %2253 = vmatpush1.bf16.msra.mxu0 0
        %2254 = vmatprep.subr.bf16.mxu0 0
        %2255 = vmatpush1.bf16.msra.mxu0 %v2238
        %2256 = vmatprep.subr.bf16.mxu0 0
        %2257 = vmatpush2.bf16.msra.mxu0 0
        %2258 = vmatprep.subr.bf16.mxu0 0
        %2259 = vmatpush2.bf16.msra.mxu0 0
        %2260 = vmatprep.subr.bf16.mxu0 0
        %2261 = vmatpush2.bf16.msra.mxu0 0
        %2262 = vmatprep.subr.bf16.mxu0 0
        %2263 = vmatpush2.bf16.msra.mxu0 0
        %2264 = vmatprep.subr.bf16.mxu0 0
        %2265 = vmatpush2.bf16.msra.mxu0 0
        %2266 = vmatprep.subr.bf16.mxu0 0
        %2267 = vmatpush2.bf16.msra.mxu0 0
        %2268 = vmatprep.subr.bf16.mxu0 0
        %2269 = vmatpush2.bf16.msra.mxu0 0
        %2270 = vmatprep.subr.bf16.mxu0 0
        %2271 = vmatpush2.bf16.msra.mxu0 0
        %2272 = vmatprep.mubr.bf16.mxu0 0
        %2273 = vmatmul.mubr.bf16.gmra.mxu0 %v2235
        %v2274 = vpop.f32.mrf.mxu0
        %v2275 = vadd.f32 0.0, %v2274
        %v2276 = vpop.f32.mrf.mxu0
        %v2277 = vpop.f32.mrf.mxu0
        %v2278 = vpop.f32.mrf.mxu0
        %2279 = vdwg.mxu0
        %v2280 = vrcp.pop %v2229
        %v2281 = vmul.f32 %v2275, %v2280
        %v2282 = vpack.c.bf16 %v2281, %v2281
        %2284 = vrot.lane.b32.xlu0 %v2173, 120
        %v2285 = vpop.permute.xlu0 %2284
        %2286 = vrot.lane.b32.xlu0 %v2174, 120
        %v2287 = vpop.permute.xlu0 %2286
        %v2289 = vsel %vm1167, %v2285, 0
        %v2292 = vsel %vm1167, %v2287, 0
        %2294 = vmatprep.subr.bf16.mxu0 0
        %2295 = vmatpush1.bf16.xpose.msra.mxu0 0
        %2296 = vmatprep.subr.bf16.mxu0 0
        %2297 = vmatpush1.bf16.xpose.msra.mxu0 0
        %2298 = vmatprep.subr.bf16.mxu0 0
        %2299 = vmatpush1.bf16.xpose.msra.mxu0 0
        %2300 = vmatprep.subr.bf16.mxu0 0
        %2301 = vmatpush1.bf16.xpose.msra.mxu0 0
        %2302 = vmatprep.subr.bf16.mxu0 0
        %2303 = vmatpush1.bf16.xpose.msra.mxu0 0
        %2304 = vmatprep.subr.bf16.mxu0 0
        %2305 = vmatpush1.bf16.xpose.msra.mxu0 0
        %2306 = vmatprep.subr.bf16.mxu0 0
        %2307 = vmatpush1.bf16.xpose.msra.mxu0 0
        %2308 = vmatprep.subr.bf16.mxu0 0
        %2309 = vmatpush1.bf16.xpose.msra.mxu0 %v2292
        %2310 = vmatprep.subr.bf16.mxu0 0
        %2311 = vmatpush2.bf16.xpose.msra.mxu0 0
        %2312 = vmatprep.subr.bf16.mxu0 0
        %2313 = vmatpush2.bf16.xpose.msra.mxu0 0
        %2314 = vmatprep.subr.bf16.mxu0 0
        %2315 = vmatpush2.bf16.xpose.msra.mxu0 0
        %2316 = vmatprep.subr.bf16.mxu0 0
        %2317 = vmatpush2.bf16.xpose.msra.mxu0 0
        %2318 = vmatprep.subr.bf16.mxu0 0
        %2319 = vmatpush2.bf16.xpose.msra.mxu0 0
        %2320 = vmatprep.subr.bf16.mxu0 0
        %2321 = vmatpush2.bf16.xpose.msra.mxu0 0
        %2322 = vmatprep.subr.bf16.mxu0 0
        %2323 = vmatpush2.bf16.xpose.msra.mxu0 0
        %2324 = vmatprep.subr.bf16.mxu0 0
        %2325 = vmatpush2.bf16.xpose.msra.mxu0 0
        %2326 = vmatprep.mubr.bf16.mxu0 0
        %2327 = vmatmul.mubr.bf16.gmra.mxu0 %v2289
        %v2328 = vpop.f32.mrf.mxu0
        %v2329 = vadd.f32 0.0, %v2328
        %v2330 = vpop.f32.mrf.mxu0
        %v2331 = vpop.f32.mrf.mxu0
        %v2332 = vpop.f32.mrf.mxu0
        %2333 = vdwg.mxu0
        %v2334 = vsel %vm1167, %v2329, -inf
        %2335 = vmax.xlane.f32.xlu0 %v2334
        %v2336 = vpop.xlane.xlu0 %2335
        %v2337 = vsub.f32 %v2329, %v2336
        %v2338 = vmul.f32 %v2337, 1.442695
        %v2339 = vpow.pop %v2338
        %v2340 = vsel %vm1167, %v2339, 0.0
        %2341 = vadd.xlane.f32.xlu0 %v2340
        %v2342 = vpop.xlane.xlu0 %2341
        %v2343 = vpack.c.bf16 %v2339, %v2339
        %2344 = vrot.lane.b32.xlu0 %v2174, 88
        %v2345 = vpop.permute.xlu0 %2344
        %v2347 = vsel %vm1167, %v2343, 0
        %v2350 = vsel %vm1388, %v2345, 0
        %2352 = vmatprep.subr.bf16.mxu0 0
        %2353 = vmatpush1.bf16.msra.mxu0 0
        %2354 = vmatprep.subr.bf16.mxu0 0
        %2355 = vmatpush1.bf16.msra.mxu0 0
        %2356 = vmatprep.subr.bf16.mxu0 0
        %2357 = vmatpush1.bf16.msra.mxu0 0
        %2358 = vmatprep.subr.bf16.mxu0 0
        %2359 = vmatpush1.bf16.msra.mxu0 0
        %2360 = vmatprep.subr.bf16.mxu0 0
        %2361 = vmatpush1.bf16.msra.mxu0 0
        %2362 = vmatprep.subr.bf16.mxu0 0
        %2363 = vmatpush1.bf16.msra.mxu0 0
        %2364 = vmatprep.subr.bf16.mxu0 0
        %2365 = vmatpush1.bf16.msra.mxu0 0
        %2366 = vmatprep.subr.bf16.mxu0 0
        %2367 = vmatpush1.bf16.msra.mxu0 %v2350
        %2368 = vmatprep.subr.bf16.mxu0 0
        %2369 = vmatpush2.bf16.msra.mxu0 0
        %2370 = vmatprep.subr.bf16.mxu0 0
        %2371 = vmatpush2.bf16.msra.mxu0 0
        %2372 = vmatprep.subr.bf16.mxu0 0
        %2373 = vmatpush2.bf16.msra.mxu0 0
        %2374 = vmatprep.subr.bf16.mxu0 0
        %2375 = vmatpush2.bf16.msra.mxu0 0
        %2376 = vmatprep.subr.bf16.mxu0 0
        %2377 = vmatpush2.bf16.msra.mxu0 0
        %2378 = vmatprep.subr.bf16.mxu0 0
        %2379 = vmatpush2.bf16.msra.mxu0 0
        %2380 = vmatprep.subr.bf16.mxu0 0
        %2381 = vmatpush2.bf16.msra.mxu0 0
        %2382 = vmatprep.subr.bf16.mxu0 0
        %2383 = vmatpush2.bf16.msra.mxu0 0
        %2384 = vmatprep.mubr.bf16.mxu0 0
        %2385 = vmatmul.mubr.bf16.gmra.mxu0 %v2347
        %v2386 = vpop.f32.mrf.mxu0
        %v2387 = vadd.f32 0.0, %v2386
        %v2388 = vpop.f32.mrf.mxu0
        %v2389 = vpop.f32.mrf.mxu0
        %v2390 = vpop.f32.mrf.mxu0
        %2391 = vdwg.mxu0
        %v2392 = vrcp.pop %v2342
        %v2393 = vmul.f32 %v2387, %v2392
        %v2394 = vpack.c.bf16 %v2393, %v2393
        %v2396 = vsel %vm1167, %v2394, 0
        %v2399 = vsel %vm1388, %v2061, 0
        %2401 = vmatprep.subr.bf16.mxu0 0
        %2402 = vmatpush1.bf16.msra.mxu0 0
        %2403 = vmatprep.subr.bf16.mxu0 0
        %2404 = vmatpush1.bf16.msra.mxu0 0
        %2405 = vmatprep.subr.bf16.mxu0 0
        %2406 = vmatpush1.bf16.msra.mxu0 0
        %2407 = vmatprep.subr.bf16.mxu0 0
        %2408 = vmatpush1.bf16.msra.mxu0 0
        %2409 = vmatprep.subr.bf16.mxu0 0
        %2410 = vmatpush1.bf16.msra.mxu0 0
        %2411 = vmatprep.subr.bf16.mxu0 0
        %2412 = vmatpush1.bf16.msra.mxu0 0
        %2413 = vmatprep.subr.bf16.mxu0 0
        %2414 = vmatpush1.bf16.msra.mxu0 0
        %2415 = vmatprep.subr.bf16.mxu0 0
        %2416 = vmatpush1.bf16.msra.mxu0 %v2399
        %2417 = vmatprep.subr.bf16.mxu0 0
        %2418 = vmatpush2.bf16.msra.mxu0 0
        %2419 = vmatprep.subr.bf16.mxu0 0
        %2420 = vmatpush2.bf16.msra.mxu0 0
        %2421 = vmatprep.subr.bf16.mxu0 0
        %2422 = vmatpush2.bf16.msra.mxu0 0
        %2423 = vmatprep.subr.bf16.mxu0 0
        %2424 = vmatpush2.bf16.msra.mxu0 0
        %2425 = vmatprep.subr.bf16.mxu0 0
        %2426 = vmatpush2.bf16.msra.mxu0 0
        %2427 = vmatprep.subr.bf16.mxu0 0
        %2428 = vmatpush2.bf16.msra.mxu0 0
        %2429 = vmatprep.subr.bf16.mxu0 0
        %2430 = vmatpush2.bf16.msra.mxu0 0
        %2431 = vmatprep.subr.bf16.mxu0 0
        %2432 = vmatpush2.bf16.msra.mxu0 0
        %2433 = vmatprep.mubr.bf16.mxu0 0
        %2434 = vmatmul.mubr.bf16.gmra.mxu0 %v2396
        %v2435 = vpop.f32.mrf.mxu0
        %v2436 = vadd.f32 0.0, %v2435
        %v2437 = vpop.f32.mrf.mxu0
        %v2438 = vpop.f32.mrf.mxu0
        %v2439 = vpop.f32.mrf.mxu0
        %2440 = vdwg.mxu0
        %v2442 = vsel %vm1167, %v2282, 0
        %v2445 = vsel %vm1388, %v2060, 0
        %2447 = vmatprep.subr.bf16.mxu0 0
        %2448 = vmatpush1.bf16.msra.mxu0 0
        %2449 = vmatprep.subr.bf16.mxu0 0
        %2450 = vmatpush1.bf16.msra.mxu0 0
        %2451 = vmatprep.subr.bf16.mxu0 0
        %2452 = vmatpush1.bf16.msra.mxu0 0
        %2453 = vmatprep.subr.bf16.mxu0 0
        %2454 = vmatpush1.bf16.msra.mxu0 0
        %2455 = vmatprep.subr.bf16.mxu0 0
        %2456 = vmatpush1.bf16.msra.mxu0 0
        %2457 = vmatprep.subr.bf16.mxu0 0
        %2458 = vmatpush1.bf16.msra.mxu0 0
        %2459 = vmatprep.subr.bf16.mxu0 0
        %2460 = vmatpush1.bf16.msra.mxu0 0
        %2461 = vmatprep.subr.bf16.mxu0 0
        %2462 = vmatpush1.bf16.msra.mxu0 %v2445
        %2463 = vmatprep.subr.bf16.mxu0 0
        %2464 = vmatpush2.bf16.msra.mxu0 0
        %2465 = vmatprep.subr.bf16.mxu0 0
        %2466 = vmatpush2.bf16.msra.mxu0 0
        %2467 = vmatprep.subr.bf16.mxu0 0
        %2468 = vmatpush2.bf16.msra.mxu0 0
        %2469 = vmatprep.subr.bf16.mxu0 0
        %2470 = vmatpush2.bf16.msra.mxu0 0
        %2471 = vmatprep.subr.bf16.mxu0 0
        %2472 = vmatpush2.bf16.msra.mxu0 0
        %2473 = vmatprep.subr.bf16.mxu0 0
        %2474 = vmatpush2.bf16.msra.mxu0 0
        %2475 = vmatprep.subr.bf16.mxu0 0
        %2476 = vmatpush2.bf16.msra.mxu0 0
        %2477 = vmatprep.subr.bf16.mxu0 0
        %2478 = vmatpush2.bf16.msra.mxu0 0
        %2479 = vmatprep.mubr.bf16.mxu0 0
        %2480 = vmatmul.mubr.bf16.gmra.mxu0 %v2442
        %v2481 = vpop.f32.mrf.mxu0
        %v2482 = vadd.f32 %v2436, %v2481
        %v2483 = vpop.f32.mrf.mxu0
        %v2484 = vpop.f32.mrf.mxu0
        %v2485 = vpop.f32.mrf.mxu0
        %2486 = vdwg.mxu0
        %2487 = vrot.lane.b32.xlu0 %v2173, 112
        %v2488 = vpop.permute.xlu0 %2487
        %2489 = vrot.lane.b32.xlu0 %v2174, 112
        %v2490 = vpop.permute.xlu0 %2489
        %v2492 = vsel %vm1167, %v2488, 0
        %v2495 = vsel %vm1167, %v2490, 0
        %2497 = vmatprep.subr.bf16.mxu0 0
        %2498 = vmatpush1.bf16.xpose.msra.mxu0 0
        %2499 = vmatprep.subr.bf16.mxu0 0
        %2500 = vmatpush1.bf16.xpose.msra.mxu0 0
        %2501 = vmatprep.subr.bf16.mxu0 0
        %2502 = vmatpush1.bf16.xpose.msra.mxu0 0
        %2503 = vmatprep.subr.bf16.mxu0 0
        %2504 = vmatpush1.bf16.xpose.msra.mxu0 0
        %2505 = vmatprep.subr.bf16.mxu0 0
        %2506 = vmatpush1.bf16.xpose.msra.mxu0 0
        %2507 = vmatprep.subr.bf16.mxu0 0
        %2508 = vmatpush1.bf16.xpose.msra.mxu0 0
        %2509 = vmatprep.subr.bf16.mxu0 0
        %2510 = vmatpush1.bf16.xpose.msra.mxu0 0
        %2511 = vmatprep.subr.bf16.mxu0 0
        %2512 = vmatpush1.bf16.xpose.msra.mxu0 %v2495
        %2513 = vmatprep.subr.bf16.mxu0 0
        %2514 = vmatpush2.bf16.xpose.msra.mxu0 0
        %2515 = vmatprep.subr.bf16.mxu0 0
        %2516 = vmatpush2.bf16.xpose.msra.mxu0 0
        %2517 = vmatprep.subr.bf16.mxu0 0
        %2518 = vmatpush2.bf16.xpose.msra.mxu0 0
        %2519 = vmatprep.subr.bf16.mxu0 0
        %2520 = vmatpush2.bf16.xpose.msra.mxu0 0
        %2521 = vmatprep.subr.bf16.mxu0 0
        %2522 = vmatpush2.bf16.xpose.msra.mxu0 0
        %2523 = vmatprep.subr.bf16.mxu0 0
        %2524 = vmatpush2.bf16.xpose.msra.mxu0 0
        %2525 = vmatprep.subr.bf16.mxu0 0
        %2526 = vmatpush2.bf16.xpose.msra.mxu0 0
        %2527 = vmatprep.subr.bf16.mxu0 0
        %2528 = vmatpush2.bf16.xpose.msra.mxu0 0
        %2529 = vmatprep.mubr.bf16.mxu0 0
        %2530 = vmatmul.mubr.bf16.gmra.mxu0 %v2492
        %v2531 = vpop.f32.mrf.mxu0
        %v2532 = vadd.f32 0.0, %v2531
        %v2533 = vpop.f32.mrf.mxu0
        %v2534 = vpop.f32.mrf.mxu0
        %v2535 = vpop.f32.mrf.mxu0
        %2536 = vdwg.mxu0
        %v2537 = vsel %vm1167, %v2532, -inf
        %2538 = vmax.xlane.f32.xlu0 %v2537
        %v2539 = vpop.xlane.xlu0 %2538
        %v2540 = vsub.f32 %v2532, %v2539
        %v2541 = vmul.f32 %v2540, 1.442695
        %v2542 = vpow.pop %v2541
        %v2543 = vsel %vm1167, %v2542, 0.0
        %2544 = vadd.xlane.f32.xlu0 %v2543
        %v2545 = vpop.xlane.xlu0 %2544
        %v2546 = vpack.c.bf16 %v2542, %v2542
        %2547 = vrot.lane.b32.xlu0 %v2174, 80
        %v2548 = vpop.permute.xlu0 %2547
        %v2550 = vsel %vm1167, %v2546, 0
        %v2553 = vsel %vm1388, %v2548, 0
        %2555 = vmatprep.subr.bf16.mxu0 0
        %2556 = vmatpush1.bf16.msra.mxu0 0
        %2557 = vmatprep.subr.bf16.mxu0 0
        %2558 = vmatpush1.bf16.msra.mxu0 0
        %2559 = vmatprep.subr.bf16.mxu0 0
        %2560 = vmatpush1.bf16.msra.mxu0 0
        %2561 = vmatprep.subr.bf16.mxu0 0
        %2562 = vmatpush1.bf16.msra.mxu0 0
        %2563 = vmatprep.subr.bf16.mxu0 0
        %2564 = vmatpush1.bf16.msra.mxu0 0
        %2565 = vmatprep.subr.bf16.mxu0 0
        %2566 = vmatpush1.bf16.msra.mxu0 0
        %2567 = vmatprep.subr.bf16.mxu0 0
        %2568 = vmatpush1.bf16.msra.mxu0 0
        %2569 = vmatprep.subr.bf16.mxu0 0
        %2570 = vmatpush1.bf16.msra.mxu0 %v2553
        %2571 = vmatprep.subr.bf16.mxu0 0
        %2572 = vmatpush2.bf16.msra.mxu0 0
        %2573 = vmatprep.subr.bf16.mxu0 0
        %2574 = vmatpush2.bf16.msra.mxu0 0
        %2575 = vmatprep.subr.bf16.mxu0 0
        %2576 = vmatpush2.bf16.msra.mxu0 0
        %2577 = vmatprep.subr.bf16.mxu0 0
        %2578 = vmatpush2.bf16.msra.mxu0 0
        %2579 = vmatprep.subr.bf16.mxu0 0
        %2580 = vmatpush2.bf16.msra.mxu0 0
        %2581 = vmatprep.subr.bf16.mxu0 0
        %2582 = vmatpush2.bf16.msra.mxu0 0
        %2583 = vmatprep.subr.bf16.mxu0 0
        %2584 = vmatpush2.bf16.msra.mxu0 0
        %2585 = vmatprep.subr.bf16.mxu0 0
        %2586 = vmatpush2.bf16.msra.mxu0 0
        %2587 = vmatprep.mubr.bf16.mxu0 0
        %2588 = vmatmul.mubr.bf16.gmra.mxu0 %v2550
        %v2589 = vpop.f32.mrf.mxu0
        %v2590 = vadd.f32 0.0, %v2589
        %v2591 = vpop.f32.mrf.mxu0
        %v2592 = vpop.f32.mrf.mxu0
        %v2593 = vpop.f32.mrf.mxu0
        %2594 = vdwg.mxu0
        %v2595 = vrcp.pop %v2545
        %v2596 = vmul.f32 %v2590, %v2595
        %v2597 = vpack.c.bf16 %v2596, %v2596
        %v2599 = vsel %vm1167, %v2597, 0
        %v2602 = vsel %vm1388, %v2062, 0
        %2604 = vmatprep.subr.bf16.mxu0 0
        %2605 = vmatpush1.bf16.msra.mxu0 0
        %2606 = vmatprep.subr.bf16.mxu0 0
        %2607 = vmatpush1.bf16.msra.mxu0 0
        %2608 = vmatprep.subr.bf16.mxu0 0
        %2609 = vmatpush1.bf16.msra.mxu0 0
        %2610 = vmatprep.subr.bf16.mxu0 0
        %2611 = vmatpush1.bf16.msra.mxu0 0
        %2612 = vmatprep.subr.bf16.mxu0 0
        %2613 = vmatpush1.bf16.msra.mxu0 0
        %2614 = vmatprep.subr.bf16.mxu0 0
        %2615 = vmatpush1.bf16.msra.mxu0 0
        %2616 = vmatprep.subr.bf16.mxu0 0
        %2617 = vmatpush1.bf16.msra.mxu0 0
        %2618 = vmatprep.subr.bf16.mxu0 0
        %2619 = vmatpush1.bf16.msra.mxu0 %v2602
        %2620 = vmatprep.subr.bf16.mxu0 0
        %2621 = vmatpush2.bf16.msra.mxu0 0
        %2622 = vmatprep.subr.bf16.mxu0 0
        %2623 = vmatpush2.bf16.msra.mxu0 0
        %2624 = vmatprep.subr.bf16.mxu0 0
        %2625 = vmatpush2.bf16.msra.mxu0 0
        %2626 = vmatprep.subr.bf16.mxu0 0
        %2627 = vmatpush2.bf16.msra.mxu0 0
        %2628 = vmatprep.subr.bf16.mxu0 0
        %2629 = vmatpush2.bf16.msra.mxu0 0
        %2630 = vmatprep.subr.bf16.mxu0 0
        %2631 = vmatpush2.bf16.msra.mxu0 0
        %2632 = vmatprep.subr.bf16.mxu0 0
        %2633 = vmatpush2.bf16.msra.mxu0 0
        %2634 = vmatprep.subr.bf16.mxu0 0
        %2635 = vmatpush2.bf16.msra.mxu0 0
        %2636 = vmatprep.mubr.bf16.mxu0 0
        %2637 = vmatmul.mubr.bf16.gmra.mxu0 %v2599
        %v2638 = vpop.f32.mrf.mxu0
        %v2639 = vadd.f32 0.0, %v2638
        %v2640 = vpop.f32.mrf.mxu0
        %v2641 = vpop.f32.mrf.mxu0
        %v2642 = vpop.f32.mrf.mxu0
        %2643 = vdwg.mxu0
        %v2644 = vadd.f32 %v2482, %v2639
        %2645 = vrot.lane.b32.xlu0 %v2173, 104
        %v2646 = vpop.permute.xlu0 %2645
        %2647 = vrot.lane.b32.xlu0 %v2174, 104
        %v2648 = vpop.permute.xlu0 %2647
        %v2650 = vsel %vm1167, %v2646, 0
        %v2653 = vsel %vm1167, %v2648, 0
        %2655 = vmatprep.subr.bf16.mxu0 0
        %2656 = vmatpush1.bf16.xpose.msra.mxu0 0
        %2657 = vmatprep.subr.bf16.mxu0 0
        %2658 = vmatpush1.bf16.xpose.msra.mxu0 0
        %2659 = vmatprep.subr.bf16.mxu0 0
        %2660 = vmatpush1.bf16.xpose.msra.mxu0 0
        %2661 = vmatprep.subr.bf16.mxu0 0
        %2662 = vmatpush1.bf16.xpose.msra.mxu0 0
        %2663 = vmatprep.subr.bf16.mxu0 0
        %2664 = vmatpush1.bf16.xpose.msra.mxu0 0
        %2665 = vmatprep.subr.bf16.mxu0 0
        %2666 = vmatpush1.bf16.xpose.msra.mxu0 0
        %2667 = vmatprep.subr.bf16.mxu0 0
        %2668 = vmatpush1.bf16.xpose.msra.mxu0 0
        %2669 = vmatprep.subr.bf16.mxu0 0
        %2670 = vmatpush1.bf16.xpose.msra.mxu0 %v2653
        %2671 = vmatprep.subr.bf16.mxu0 0
        %2672 = vmatpush2.bf16.xpose.msra.mxu0 0
        %2673 = vmatprep.subr.bf16.mxu0 0
        %2674 = vmatpush2.bf16.xpose.msra.mxu0 0
        %2675 = vmatprep.subr.bf16.mxu0 0
        %2676 = vmatpush2.bf16.xpose.msra.mxu0 0
        %2677 = vmatprep.subr.bf16.mxu0 0
        %2678 = vmatpush2.bf16.xpose.msra.mxu0 0
        %2679 = vmatprep.subr.bf16.mxu0 0
        %2680 = vmatpush2.bf16.xpose.msra.mxu0 0
        %2681 = vmatprep.subr.bf16.mxu0 0
        %2682 = vmatpush2.bf16.xpose.msra.mxu0 0
        %2683 = vmatprep.subr.bf16.mxu0 0
        %2684 = vmatpush2.bf16.xpose.msra.mxu0 0
        %2685 = vmatprep.subr.bf16.mxu0 0
        %2686 = vmatpush2.bf16.xpose.msra.mxu0 0
        %2687 = vmatprep.mubr.bf16.mxu0 0
        %2688 = vmatmul.mubr.bf16.gmra.mxu0 %v2650
        %v2689 = vpop.f32.mrf.mxu0
        %v2690 = vadd.f32 0.0, %v2689
        %v2691 = vpop.f32.mrf.mxu0
        %v2692 = vpop.f32.mrf.mxu0
        %v2693 = vpop.f32.mrf.mxu0
        %2694 = vdwg.mxu0
        %v2695 = vsel %vm1167, %v2690, -inf
        %2696 = vmax.xlane.f32.xlu0 %v2695
        %v2697 = vpop.xlane.xlu0 %2696
        %v2698 = vsub.f32 %v2690, %v2697
        %v2699 = vmul.f32 %v2698, 1.442695
        %v2700 = vpow.pop %v2699
        %v2701 = vsel %vm1167, %v2700, 0.0
        %2702 = vadd.xlane.f32.xlu0 %v2701
        %v2703 = vpop.xlane.xlu0 %2702
        %v2704 = vpack.c.bf16 %v2700, %v2700
        %2705 = vrot.lane.b32.xlu0 %v2174, 72
        %v2706 = vpop.permute.xlu0 %2705
        %v2708 = vsel %vm1167, %v2704, 0
        %v2711 = vsel %vm1388, %v2706, 0
        %2713 = vmatprep.subr.bf16.mxu0 0
        %2714 = vmatpush1.bf16.msra.mxu0 0
        %2715 = vmatprep.subr.bf16.mxu0 0
        %2716 = vmatpush1.bf16.msra.mxu0 0
        %2717 = vmatprep.subr.bf16.mxu0 0
        %2718 = vmatpush1.bf16.msra.mxu0 0
        %2719 = vmatprep.subr.bf16.mxu0 0
        %2720 = vmatpush1.bf16.msra.mxu0 0
        %2721 = vmatprep.subr.bf16.mxu0 0
        %2722 = vmatpush1.bf16.msra.mxu0 0
        %2723 = vmatprep.subr.bf16.mxu0 0
        %2724 = vmatpush1.bf16.msra.mxu0 0
        %2725 = vmatprep.subr.bf16.mxu0 0
        %2726 = vmatpush1.bf16.msra.mxu0 0
        %2727 = vmatprep.subr.bf16.mxu0 0
        %2728 = vmatpush1.bf16.msra.mxu0 %v2711
        %2729 = vmatprep.subr.bf16.mxu0 0
        %2730 = vmatpush2.bf16.msra.mxu0 0
        %2731 = vmatprep.subr.bf16.mxu0 0
        %2732 = vmatpush2.bf16.msra.mxu0 0
        %2733 = vmatprep.subr.bf16.mxu0 0
        %2734 = vmatpush2.bf16.msra.mxu0 0
        %2735 = vmatprep.subr.bf16.mxu0 0
        %2736 = vmatpush2.bf16.msra.mxu0 0
        %2737 = vmatprep.subr.bf16.mxu0 0
        %2738 = vmatpush2.bf16.msra.mxu0 0
        %2739 = vmatprep.subr.bf16.mxu0 0
        %2740 = vmatpush2.bf16.msra.mxu0 0
        %2741 = vmatprep.subr.bf16.mxu0 0
        %2742 = vmatpush2.bf16.msra.mxu0 0
        %2743 = vmatprep.subr.bf16.mxu0 0
        %2744 = vmatpush2.bf16.msra.mxu0 0
        %2745 = vmatprep.mubr.bf16.mxu0 0
        %2746 = vmatmul.mubr.bf16.gmra.mxu0 %v2708
        %v2747 = vpop.f32.mrf.mxu0
        %v2748 = vadd.f32 0.0, %v2747
        %v2749 = vpop.f32.mrf.mxu0
        %v2750 = vpop.f32.mrf.mxu0
        %v2751 = vpop.f32.mrf.mxu0
        %2752 = vdwg.mxu0
        %v2753 = vrcp.pop %v2703
        %v2754 = vmul.f32 %v2748, %v2753
        %v2755 = vpack.c.bf16 %v2754, %v2754
        %v2757 = vsel %vm1167, %v2755, 0
        %v2760 = vsel %vm1388, %v2063, 0
        %2762 = vmatprep.subr.bf16.mxu0 0
        %2763 = vmatpush1.bf16.msra.mxu0 0
        %2764 = vmatprep.subr.bf16.mxu0 0
        %2765 = vmatpush1.bf16.msra.mxu0 0
        %2766 = vmatprep.subr.bf16.mxu0 0
        %2767 = vmatpush1.bf16.msra.mxu0 0
        %2768 = vmatprep.subr.bf16.mxu0 0
        %2769 = vmatpush1.bf16.msra.mxu0 0
        %2770 = vmatprep.subr.bf16.mxu0 0
        %2771 = vmatpush1.bf16.msra.mxu0 0
        %2772 = vmatprep.subr.bf16.mxu0 0
        %2773 = vmatpush1.bf16.msra.mxu0 0
        %2774 = vmatprep.subr.bf16.mxu0 0
        %2775 = vmatpush1.bf16.msra.mxu0 0
        %2776 = vmatprep.subr.bf16.mxu0 0
        %2777 = vmatpush1.bf16.msra.mxu0 %v2760
        %2778 = vmatprep.subr.bf16.mxu0 0
        %2779 = vmatpush2.bf16.msra.mxu0 0
        %2780 = vmatprep.subr.bf16.mxu0 0
        %2781 = vmatpush2.bf16.msra.mxu0 0
        %2782 = vmatprep.subr.bf16.mxu0 0
        %2783 = vmatpush2.bf16.msra.mxu0 0
        %2784 = vmatprep.subr.bf16.mxu0 0
        %2785 = vmatpush2.bf16.msra.mxu0 0
        %2786 = vmatprep.subr.bf16.mxu0 0
        %2787 = vmatpush2.bf16.msra.mxu0 0
        %2788 = vmatprep.subr.bf16.mxu0 0
        %2789 = vmatpush2.bf16.msra.mxu0 0
        %2790 = vmatprep.subr.bf16.mxu0 0
        %2791 = vmatpush2.bf16.msra.mxu0 0
        %2792 = vmatprep.subr.bf16.mxu0 0
        %2793 = vmatpush2.bf16.msra.mxu0 0
        %2794 = vmatprep.mubr.bf16.mxu0 0
        %2795 = vmatmul.mubr.bf16.gmra.mxu0 %v2757
        %v2796 = vpop.f32.mrf.mxu0
        %v2797 = vadd.f32 0.0, %v2796
        %v2798 = vpop.f32.mrf.mxu0
        %v2799 = vpop.f32.mrf.mxu0
        %v2800 = vpop.f32.mrf.mxu0
        %2801 = vdwg.mxu0
        %v2802 = vadd.f32 %v2644, %v2797
        %v2804 = vlaneseq
        %v2805 = vshrl.u32 %v2804, 7
        %v2806 = vsub.s32 0, %v2805
        %v2807 = vrot.slane %v2064, %v2806
        %v2809 = vadd.f32 %v2802, %v2807
        %v2810 = vadd.f32 %v2027, %v2809
        %v2811 = vsel %vm976, %v2810, 0.0
        %2812 = vadd.xlane.f32.xlu0 %v2811
        %v2813 = vpop.xlane.xlu0 %2812
        %v2814 = vmul.f32 %v2813, %v980
        %v2815 = vsub.f32 %v2810, %v2814
        %v2816 = vmul.f32 %v2815, %v2815
        %v2817 = vsel %vm976, %v2816, 0.0
        %2818 = vadd.xlane.f32.xlu0 %v2817
        %v2819 = vpop.xlane.xlu0 %2818
        %v2820 = vmul.f32 %v2819, %v980
        %v2821 = vadd.f32 %v2820, 1e-05
        %v2822 = vrsqrt.pop %v2821
        %v2823 = vmul.f32 %v2815, %v2822
        %v2824 = vlaneseq
        %v2825 = vshrl.u32 %v2824, 7
        %v2826 = vsub.s32 2, %v2825
        %v2827 = vrot.slane %v2028, %v2826
        %v2828 = vmul.f32 %v2823, %v2827
        %v2829 = vlaneseq
        %v2830 = vshrl.u32 %v2829, 7
        %v2831 = vsub.s32 3, %v2830
        %v2832 = vrot.slane %v2028, %v2831
        %v2833 = vadd.f32 %v2828, %v2832
        %v2834 = vld [vmem:[%s20] sm:$0xf]
        %v2835 = vld [vmem:[%s20 + $0x4] sm:$0xf]
        %v2836 = vld [vmem:[%s20 + $0x8] sm:$0xf]
        %v2837 = vld [vmem:[%s20 + $0xc] sm:$0xf]
        %v2838 = vld [vmem:[%s21] sm:$0x1]
        %v2839 = vld [vmem:[%s22] sm:$0xf]
        %v2840 = vld [vmem:[%s22 + $0x4] sm:$0xf]
        %v2841 = vld [vmem:[%s22 + $0x8] sm:$0xf]
        %v2842 = vld [vmem:[%s22 + $0xc] sm:$0xf]
        %v2843 = vld [vmem:[%s22 + $0x10] sm:$0xf]
        %v2844 = vld [vmem:[%s22 + $0x14] sm:$0xf]
        %v2845 = vld [vmem:[%s22 + $0x18] sm:$0xf]
        %v2846 = vld [vmem:[%s22 + $0x1c] sm:$0xf]
        %v2847 = vld [vmem:[%s22 + $0x20] sm:$0xf]
        %v2848 = vld [vmem:[%s22 + $0x24] sm:$0xf]
        %v2849 = vld [vmem:[%s22 + $0x28] sm:$0xf]
        %v2850 = vld [vmem:[%s22 + $0x2c] sm:$0xf]
        %v2851 = vld [vmem:[%s22 + $0x30] sm:$0xf]
        %v2852 = vld [vmem:[%s22 + $0x34] sm:$0xf]
        %v2853 = vld [vmem:[%s22 + $0x38] sm:$0xf]
        %v2854 = vld [vmem:[%s22 + $0x3c] sm:$0xf]
        %v2855 = vld [vmem:[%s23] sm:$0x1]
        %v2856 = vpack.c.bf16 %v2833, %v2833
        %v2858 = vlaneseq
        %v2859 = vshrl.u32 %v2858, 7
        %v2860 = vsub.s32 0, %v2859
        %v2861 = vrot.slane %v2838, %v2860
        %v2867 = vunpack.c.l.b16 %v2834
        %v2868 = vunpack.c.l.b16 %v2835
        %v2869 = vunpack.c.l.b16 %v2836
        %v2870 = vunpack.c.l.b16 %v2837
        %v2871 = vpack.c.b16 %v2868, %v2867
        %v2872 = vpack.c.b16 %v2870, %v2869
        %v2876 = vsel %vm976, %v2856, 0
        %2878 = vmatprep.subr.bf16.mxu0 0
        %2879 = vmatpush1.bf16.msra.mxu0 0
        %2880 = vmatprep.subr.bf16.mxu0 0
        %2881 = vmatpush1.bf16.msra.mxu0 0
        %2882 = vmatprep.subr.bf16.mxu0 0
        %2883 = vmatpush1.bf16.msra.mxu0 0
        %2884 = vmatprep.subr.bf16.mxu0 0
        %2885 = vmatpush1.bf16.msra.mxu0 0
        %2886 = vmatprep.subr.bf16.mxu0 0
        %2887 = vmatpush1.bf16.msra.mxu0 0
        %2888 = vmatprep.subr.bf16.mxu0 0
        %2889 = vmatpush1.bf16.msra.mxu0 0
        %2890 = vmatprep.subr.bf16.mxu0 0
        %2891 = vmatpush1.bf16.msra.mxu0 %v2872
        %2892 = vmatprep.subr.bf16.mxu0 0
        %2893 = vmatpush1.bf16.msra.mxu0 %v2871
        %2894 = vmatprep.subr.bf16.mxu0 0
        %2895 = vmatpush2.bf16.msra.mxu0 0
        %2896 = vmatprep.subr.bf16.mxu0 0
        %2897 = vmatpush2.bf16.msra.mxu0 0
        %2898 = vmatprep.subr.bf16.mxu0 0
        %2899 = vmatpush2.bf16.msra.mxu0 0
        %2900 = vmatprep.subr.bf16.mxu0 0
        %2901 = vmatpush2.bf16.msra.mxu0 0
        %2902 = vmatprep.subr.bf16.mxu0 0
        %2903 = vmatpush2.bf16.msra.mxu0 0
        %2904 = vmatprep.subr.bf16.mxu0 0
        %2905 = vmatpush2.bf16.msra.mxu0 0
        %2906 = vmatprep.subr.bf16.mxu0 0
        %2907 = vmatpush2.bf16.msra.mxu0 0
        %2908 = vmatprep.subr.bf16.mxu0 0
        %2909 = vmatpush2.bf16.msra.mxu0 0
        %2910 = vmatprep.mubr.bf16.mxu0 0
        %2911 = vmatmul.mubr.bf16.gmra.mxu0 %v2876
        %v2912 = vpop.f32.mrf.mxu0
        %v2913 = vadd.f32 %v2861, %v2912
        %v2914 = vpop.f32.mrf.mxu0
        %v2915 = vpop.f32.mrf.mxu0
        %v2916 = vpop.f32.mrf.mxu0
        %2917 = vdwg.mxu0
        %v2918 = vmul.f32 %v2913, 0.5
        %v2919 = vmul.f32 %v2913, 0.70710677
        %vm2920 = vcmp.ge.f32.partialorder %v2919, 0.0
        %v2921 = vsel %vm2920, 1.0, -1.0
        %v2922 = vand.u32 2147483647, %v2919
        %v2923 = vmul.f32 %v2922, 0.3275911
        %v2924 = vadd.f32 %v2923, 1.0
        %v2925 = vrcp.pop %v2924
        %v2926 = vmul.f32 1.0, %v2925
        %v2927 = vmul.f32 %v2926, 1.0614054
        %v2928 = vadd.f32 %v2927, -1.4531521
        %v2929 = vmul.f32 %v2928, %v2926
        %v2930 = vadd.f32 %v2929, 1.4214138
        %v2931 = vmul.f32 %v2930, %v2926
        %v2932 = vadd.f32 %v2931, -0.28449672
        %v2933 = vmul.f32 %v2932, %v2926
        %v2934 = vadd.f32 %v2933, 0.2548296
        %v2935 = vmul.f32 %v2934, %v2926
        %v2936 = vsub.f32 0.0, %v2922
        %v2937 = vmul.f32 %v2936, %v2922
        %v2938 = vmul.f32 %v2937, 1.442695
        %v2939 = vpow.pop %v2938
        %v2940 = vmul.f32 %v2935, %v2939
        %v2941 = vsub.f32 1.0, %v2940
        %v2942 = vmul.f32 %v2921, %v2941
        %v2943 = vadd.f32 %v2942, 1.0
        %v2944 = vmul.f32 %v2918, %v2943
        %v2945 = vpack.c.bf16 %v2944, %v2944
        %v2947 = vlaneseq
        %v2948 = vshrl.u32 %v2947, 7
        %v2949 = vsub.s32 0, %v2948
        %v2950 = vrot.slane %v2855, %v2949
        %v2968 = vunpack.c.l.b16 %v2839
        %v2969 = vunpack.c.l.b16 %v2840
        %v2970 = vunpack.c.l.b16 %v2841
        %v2971 = vunpack.c.l.b16 %v2842
        %v2972 = vunpack.c.l.b16 %v2843
        %v2973 = vunpack.c.l.b16 %v2844
        %v2974 = vunpack.c.l.b16 %v2845
        %v2975 = vunpack.c.l.b16 %v2846
        %v2976 = vunpack.c.l.b16 %v2847
        %v2977 = vunpack.c.l.b16 %v2848
        %v2978 = vunpack.c.l.b16 %v2849
        %v2979 = vunpack.c.l.b16 %v2850
        %v2980 = vunpack.c.l.b16 %v2851
        %v2981 = vunpack.c.l.b16 %v2852
        %v2982 = vunpack.c.l.b16 %v2853
        %v2983 = vunpack.c.l.b16 %v2854
        %v2984 = vpack.c.b16 %v2969, %v2968
        %v2985 = vpack.c.b16 %v2971, %v2970
        %v2986 = vpack.c.b16 %v2973, %v2972
        %v2987 = vpack.c.b16 %v2975, %v2974
        %v2988 = vpack.c.b16 %v2977, %v2976
        %v2989 = vpack.c.b16 %v2979, %v2978
        %v2990 = vpack.c.b16 %v2981, %v2980
        %v2991 = vpack.c.b16 %v2983, %v2982
        %3000 = vmatprep.subr.bf16.mxu0 0
        %3001 = vmatpush1.bf16.msra.mxu0 %v2991
        %3002 = vmatprep.subr.bf16.mxu0 0
        %3003 = vmatpush1.bf16.msra.mxu0 %v2990
        %3004 = vmatprep.subr.bf16.mxu0 0
        %3005 = vmatpush1.bf16.msra.mxu0 %v2989
        %3006 = vmatprep.subr.bf16.mxu0 0
        %3007 = vmatpush1.bf16.msra.mxu0 %v2988
        %3008 = vmatprep.subr.bf16.mxu0 0
        %3009 = vmatpush1.bf16.msra.mxu0 %v2987
        %3010 = vmatprep.subr.bf16.mxu0 0
        %3011 = vmatpush1.bf16.msra.mxu0 %v2986
        %3012 = vmatprep.subr.bf16.mxu0 0
        %3013 = vmatpush1.bf16.msra.mxu0 %v2985
        %3014 = vmatprep.subr.bf16.mxu0 0
        %3015 = vmatpush1.bf16.msra.mxu0 %v2984
        %3016 = vmatprep.subr.bf16.mxu0 0
        %3017 = vmatpush2.bf16.msra.mxu0 0
        %3018 = vmatprep.subr.bf16.mxu0 0
        %3019 = vmatpush2.bf16.msra.mxu0 0
        %3020 = vmatprep.subr.bf16.mxu0 0
        %3021 = vmatpush2.bf16.msra.mxu0 0
        %3022 = vmatprep.subr.bf16.mxu0 0
        %3023 = vmatpush2.bf16.msra.mxu0 0
        %3024 = vmatprep.subr.bf16.mxu0 0
        %3025 = vmatpush2.bf16.msra.mxu0 0
        %3026 = vmatprep.subr.bf16.mxu0 0
        %3027 = vmatpush2.bf16.msra.mxu0 0
        %3028 = vmatprep.subr.bf16.mxu0 0
        %3029 = vmatpush2.bf16.msra.mxu0 0
        %3030 = vmatprep.subr.bf16.mxu0 0
        %3031 = vmatpush2.bf16.msra.mxu0 0
        %3032 = vmatprep.mubr.bf16.mxu0 0
        %3033 = vmatmul.mubr.bf16.gmra.mxu0 %v2945
        %v3034 = vpop.f32.mrf.mxu0
        %v3035 = vadd.f32 %v2950, %v3034
        %v3036 = vpop.f32.mrf.mxu0
        %v3037 = vpop.f32.mrf.mxu0
        %v3038 = vpop.f32.mrf.mxu0
        %3039 = vdwg.mxu0
        %v3040 = vadd.f32 %v2810, %v3035
        %s3041 = scalar_lea.vmem %s15, 4
        %v3042 = vld [vmem:[%s3041] sm:$0xf]
        %v3043 = vsel %vm976, %v3040, 0.0
        %3044 = vadd.xlane.f32.xlu0 %v3043
        %v3045 = vpop.xlane.xlu0 %3044
        %v3046 = vmul.f32 %v3045, %v980
        %v3047 = vsub.f32 %v3040, %v3046
        %v3048 = vmul.f32 %v3047, %v3047
        %v3049 = vsel %vm976, %v3048, 0.0
        %3050 = vadd.xlane.f32.xlu0 %v3049
        %v3051 = vpop.xlane.xlu0 %3050
        %v3052 = vmul.f32 %v3051, %v980
        %v3053 = vadd.f32 %v3052, 1e-05
        %v3054 = vrsqrt.pop %v3053
        %v3055 = vmul.f32 %v3047, %v3054
        %v3056 = vlaneseq
        %v3057 = vshrl.u32 %v3056, 7
        %v3058 = vsub.s32 0, %v3057
        %v3059 = vrot.slane %v3042, %v3058
        %v3060 = vmul.f32 %v3055, %v3059
        %v3061 = vlaneseq
        %v3062 = vshrl.u32 %v3061, 7
        %v3063 = vsub.s32 1, %v3062
        %v3064 = vrot.slane %v3042, %v3063
        %v3065 = vadd.f32 %v3060, %v3064
        %s3066 = scalar_lea.vmem %s16, 16
        %v3067 = vld [vmem:[%s3066] sm:$0xf]
        %v3068 = vld [vmem:[%s3066 + $0x4] sm:$0xf]
        %v3069 = vld [vmem:[%s3066 + $0x8] sm:$0xf]
        %v3070 = vld [vmem:[%s3066 + $0xc] sm:$0xf]
        %s3071 = scalar_lea.vmem %s17, 16
        %v3072 = vld [vmem:[%s3071] sm:$0xf]
        %v3073 = vld [vmem:[%s3071 + $0x4] sm:$0xf]
        %v3074 = vld [vmem:[%s3071 + $0x8] sm:$0xf]
        %v3075 = vld [vmem:[%s3071 + $0xc] sm:$0xf]
        %s3076 = scalar_lea.vmem %s18, 16
        %v3077 = vld [vmem:[%s3076] sm:$0xf]
        %v3078 = vld [vmem:[%s3076 + $0x4] sm:$0xf]
        %v3079 = vld [vmem:[%s3076 + $0x8] sm:$0xf]
        %v3080 = vld [vmem:[%s3076 + $0xc] sm:$0xf]
        %s3081 = scalar_lea.vmem %s19, 1
        %v3082 = vld [vmem:[%s3081] sm:$0x1]
        %v3083 = vpack.c.bf16 %v3065, %v3065
        %v3088 = vunpack.c.l.b16 %v3067
        %v3089 = vunpack.c.l.b16 %v3068
        %v3090 = vunpack.c.l.b16 %v3069
        %v3091 = vunpack.c.l.b16 %v3070
        %v3092 = vpack.c.b16 %v3089, %v3088
        %v3093 = vpack.c.b16 %v3091, %v3090
        %v3097 = vsel %vm976, %v3083, 0
        %3099 = vmatprep.subr.bf16.mxu0 0
        %3100 = vmatpush1.bf16.msra.mxu0 0
        %3101 = vmatprep.subr.bf16.mxu0 0
        %3102 = vmatpush1.bf16.msra.mxu0 0
        %3103 = vmatprep.subr.bf16.mxu0 0
        %3104 = vmatpush1.bf16.msra.mxu0 0
        %3105 = vmatprep.subr.bf16.mxu0 0
        %3106 = vmatpush1.bf16.msra.mxu0 0
        %3107 = vmatprep.subr.bf16.mxu0 0
        %3108 = vmatpush1.bf16.msra.mxu0 0
        %3109 = vmatprep.subr.bf16.mxu0 0
        %3110 = vmatpush1.bf16.msra.mxu0 0
        %3111 = vmatprep.subr.bf16.mxu0 0
        %3112 = vmatpush1.bf16.msra.mxu0 %v3093
        %3113 = vmatprep.subr.bf16.mxu0 0
        %3114 = vmatpush1.bf16.msra.mxu0 %v3092
        %3115 = vmatprep.subr.bf16.mxu0 0
        %3116 = vmatpush2.bf16.msra.mxu0 0
        %3117 = vmatprep.subr.bf16.mxu0 0
        %3118 = vmatpush2.bf16.msra.mxu0 0
        %3119 = vmatprep.subr.bf16.mxu0 0
        %3120 = vmatpush2.bf16.msra.mxu0 0
        %3121 = vmatprep.subr.bf16.mxu0 0
        %3122 = vmatpush2.bf16.msra.mxu0 0
        %3123 = vmatprep.subr.bf16.mxu0 0
        %3124 = vmatpush2.bf16.msra.mxu0 0
        %3125 = vmatprep.subr.bf16.mxu0 0
        %3126 = vmatpush2.bf16.msra.mxu0 0
        %3127 = vmatprep.subr.bf16.mxu0 0
        %3128 = vmatpush2.bf16.msra.mxu0 0
        %3129 = vmatprep.subr.bf16.mxu0 0
        %3130 = vmatpush2.bf16.msra.mxu0 0
        %3131 = vmatprep.mubr.bf16.mxu0 0
        %3132 = vmatmul.mubr.bf16.gmra.mxu0 %v3097
        %v3133 = vpop.f32.mrf.mxu0
        %v3134 = vadd.f32 0.0, %v3133
        %v3135 = vpop.f32.mrf.mxu0
        %v3136 = vpop.f32.mrf.mxu0
        %v3137 = vpop.f32.mrf.mxu0
        %3138 = vdwg.mxu0
        %v3143 = vunpack.c.l.b16 %v3072
        %v3144 = vunpack.c.l.b16 %v3073
        %v3145 = vunpack.c.l.b16 %v3074
        %v3146 = vunpack.c.l.b16 %v3075
        %v3147 = vpack.c.b16 %v3144, %v3143
        %v3148 = vpack.c.b16 %v3146, %v3145
        %3151 = vmatprep.subr.bf16.mxu0 0
        %3152 = vmatpush1.bf16.msra.mxu0 0
        %3153 = vmatprep.subr.bf16.mxu0 0
        %3154 = vmatpush1.bf16.msra.mxu0 0
        %3155 = vmatprep.subr.bf16.mxu0 0
        %3156 = vmatpush1.bf16.msra.mxu0 0
        %3157 = vmatprep.subr.bf16.mxu0 0
        %3158 = vmatpush1.bf16.msra.mxu0 0
        %3159 = vmatprep.subr.bf16.mxu0 0
        %3160 = vmatpush1.bf16.msra.mxu0 0
        %3161 = vmatprep.subr.bf16.mxu0 0
        %3162 = vmatpush1.bf16.msra.mxu0 0
        %3163 = vmatprep.subr.bf16.mxu0 0
        %3164 = vmatpush1.bf16.msra.mxu0 %v3148
        %3165 = vmatprep.subr.bf16.mxu0 0
        %3166 = vmatpush1.bf16.msra.mxu0 %v3147
        %3167 = vmatprep.subr.bf16.mxu0 0
        %3168 = vmatpush2.bf16.msra.mxu0 0
        %3169 = vmatprep.subr.bf16.mxu0 0
        %3170 = vmatpush2.bf16.msra.mxu0 0
        %3171 = vmatprep.subr.bf16.mxu0 0
        %3172 = vmatpush2.bf16.msra.mxu0 0
        %3173 = vmatprep.subr.bf16.mxu0 0
        %3174 = vmatpush2.bf16.msra.mxu0 0
        %3175 = vmatprep.subr.bf16.mxu0 0
        %3176 = vmatpush2.bf16.msra.mxu0 0
        %3177 = vmatprep.subr.bf16.mxu0 0
        %3178 = vmatpush2.bf16.msra.mxu0 0
        %3179 = vmatprep.subr.bf16.mxu0 0
        %3180 = vmatpush2.bf16.msra.mxu0 0
        %3181 = vmatprep.subr.bf16.mxu0 0
        %3182 = vmatpush2.bf16.msra.mxu0 0
        %3183 = vmatprep.mubr.bf16.mxu0 0
        %3184 = vmatmul.mubr.bf16.gmra.mxu0 %v3097
        %v3185 = vpop.f32.mrf.mxu0
        %v3186 = vadd.f32 0.0, %v3185
        %v3187 = vpop.f32.mrf.mxu0
        %v3188 = vpop.f32.mrf.mxu0
        %v3189 = vpop.f32.mrf.mxu0
        %3190 = vdwg.mxu0
        %v3191 = vpack.c.bf16 %v3134, %v3134
        %v3192 = vpack.c.bf16 %v3186, %v3186
        %v3194 = vsel %vm1167, %v3191, 0
        %v3197 = vsel %vm1167, %v3192, 0
        %3199 = vmatprep.subr.bf16.mxu0 0
        %3200 = vmatpush1.bf16.xpose.msra.mxu0 0
        %3201 = vmatprep.subr.bf16.mxu0 0
        %3202 = vmatpush1.bf16.xpose.msra.mxu0 0
        %3203 = vmatprep.subr.bf16.mxu0 0
        %3204 = vmatpush1.bf16.xpose.msra.mxu0 0
        %3205 = vmatprep.subr.bf16.mxu0 0
        %3206 = vmatpush1.bf16.xpose.msra.mxu0 0
        %3207 = vmatprep.subr.bf16.mxu0 0
        %3208 = vmatpush1.bf16.xpose.msra.mxu0 0
        %3209 = vmatprep.subr.bf16.mxu0 0
        %3210 = vmatpush1.bf16.xpose.msra.mxu0 0
        %3211 = vmatprep.subr.bf16.mxu0 0
        %3212 = vmatpush1.bf16.xpose.msra.mxu0 0
        %3213 = vmatprep.subr.bf16.mxu0 0
        %3214 = vmatpush1.bf16.xpose.msra.mxu0 %v3197
        %3215 = vmatprep.subr.bf16.mxu0 0
        %3216 = vmatpush2.bf16.xpose.msra.mxu0 0
        %3217 = vmatprep.subr.bf16.mxu0 0
        %3218 = vmatpush2.bf16.xpose.msra.mxu0 0
        %3219 = vmatprep.subr.bf16.mxu0 0
        %3220 = vmatpush2.bf16.xpose.msra.mxu0 0
        %3221 = vmatprep.subr.bf16.mxu0 0
        %3222 = vmatpush2.bf16.xpose.msra.mxu0 0
        %3223 = vmatprep.subr.bf16.mxu0 0
        %3224 = vmatpush2.bf16.xpose.msra.mxu0 0
        %3225 = vmatprep.subr.bf16.mxu0 0
        %3226 = vmatpush2.bf16.xpose.msra.mxu0 0
        %3227 = vmatprep.subr.bf16.mxu0 0
        %3228 = vmatpush2.bf16.xpose.msra.mxu0 0
        %3229 = vmatprep.subr.bf16.mxu0 0
        %3230 = vmatpush2.bf16.xpose.msra.mxu0 0
        %3231 = vmatprep.mubr.bf16.mxu0 0
        %3232 = vmatmul.mubr.bf16.gmra.mxu0 %v3194
        %v3233 = vpop.f32.mrf.mxu0
        %v3234 = vadd.f32 0.0, %v3233
        %v3235 = vpop.f32.mrf.mxu0
        %v3236 = vpop.f32.mrf.mxu0
        %v3237 = vpop.f32.mrf.mxu0
        %3238 = vdwg.mxu0
        %v3239 = vsel %vm1167, %v3234, -inf
        %3240 = vmax.xlane.f32.xlu0 %v3239
        %v3241 = vpop.xlane.xlu0 %3240
        %v3242 = vsub.f32 %v3234, %v3241
        %v3243 = vmul.f32 %v3242, 1.442695
        %v3244 = vpow.pop %v3243
        %v3245 = vsel %vm1167, %v3244, 0.0
        %3246 = vadd.xlane.f32.xlu0 %v3245
        %v3247 = vpop.xlane.xlu0 %3246
        %v3248 = vpack.c.bf16 %v3244, %v3244
        %3250 = vrot.lane.b32.xlu0 %v3192, 96
        %v3251 = vpop.permute.xlu0 %3250
        %v3253 = vsel %vm1167, %v3248, 0
        %v3256 = vsel %vm1388, %v3251, 0
        %3258 = vmatprep.subr.bf16.mxu0 0
        %3259 = vmatpush1.bf16.msra.mxu0 0
        %3260 = vmatprep.subr.bf16.mxu0 0
        %3261 = vmatpush1.bf16.msra.mxu0 0
        %3262 = vmatprep.subr.bf16.mxu0 0
        %3263 = vmatpush1.bf16.msra.mxu0 0
        %3264 = vmatprep.subr.bf16.mxu0 0
        %3265 = vmatpush1.bf16.msra.mxu0 0
        %3266 = vmatprep.subr.bf16.mxu0 0
        %3267 = vmatpush1.bf16.msra.mxu0 0
        %3268 = vmatprep.subr.bf16.mxu0 0
        %3269 = vmatpush1.bf16.msra.mxu0 0
        %3270 = vmatprep.subr.bf16.mxu0 0
        %3271 = vmatpush1.bf16.msra.mxu0 0
        %3272 = vmatprep.subr.bf16.mxu0 0
        %3273 = vmatpush1.bf16.msra.mxu0 %v3256
        %3274 = vmatprep.subr.bf16.mxu0 0
        %3275 = vmatpush2.bf16.msra.mxu0 0
        %3276 = vmatprep.subr.bf16.mxu0 0
        %3277 = vmatpush2.bf16.msra.mxu0 0
        %3278 = vmatprep.subr.bf16.mxu0 0
        %3279 = vmatpush2.bf16.msra.mxu0 0
        %3280 = vmatprep.subr.bf16.mxu0 0
        %3281 = vmatpush2.bf16.msra.mxu0 0
        %3282 = vmatprep.subr.bf16.mxu0 0
        %3283 = vmatpush2.bf16.msra.mxu0 0
        %3284 = vmatprep.subr.bf16.mxu0 0
        %3285 = vmatpush2.bf16.msra.mxu0 0
        %3286 = vmatprep.subr.bf16.mxu0 0
        %3287 = vmatpush2.bf16.msra.mxu0 0
        %3288 = vmatprep.subr.bf16.mxu0 0
        %3289 = vmatpush2.bf16.msra.mxu0 0
        %3290 = vmatprep.mubr.bf16.mxu0 0
        %3291 = vmatmul.mubr.bf16.gmra.mxu0 %v3253
        %v3292 = vpop.f32.mrf.mxu0
        %v3293 = vadd.f32 0.0, %v3292
        %v3294 = vpop.f32.mrf.mxu0
        %v3295 = vpop.f32.mrf.mxu0
        %v3296 = vpop.f32.mrf.mxu0
        %3297 = vdwg.mxu0
        %v3298 = vrcp.pop %v3247
        %v3299 = vmul.f32 %v3293, %v3298
        %v3300 = vpack.c.bf16 %v3299, %v3299
        %3302 = vrot.lane.b32.xlu0 %v3191, 120
        %v3303 = vpop.permute.xlu0 %3302
        %3304 = vrot.lane.b32.xlu0 %v3192, 120
        %v3305 = vpop.permute.xlu0 %3304
        %v3307 = vsel %vm1167, %v3303, 0
        %v3310 = vsel %vm1167, %v3305, 0
        %3312 = vmatprep.subr.bf16.mxu0 0
        %3313 = vmatpush1.bf16.xpose.msra.mxu0 0
        %3314 = vmatprep.subr.bf16.mxu0 0
        %3315 = vmatpush1.bf16.xpose.msra.mxu0 0
        %3316 = vmatprep.subr.bf16.mxu0 0
        %3317 = vmatpush1.bf16.xpose.msra.mxu0 0
        %3318 = vmatprep.subr.bf16.mxu0 0
        %3319 = vmatpush1.bf16.xpose.msra.mxu0 0
        %3320 = vmatprep.subr.bf16.mxu0 0
        %3321 = vmatpush1.bf16.xpose.msra.mxu0 0
        %3322 = vmatprep.subr.bf16.mxu0 0
        %3323 = vmatpush1.bf16.xpose.msra.mxu0 0
        %3324 = vmatprep.subr.bf16.mxu0 0
        %3325 = vmatpush1.bf16.xpose.msra.mxu0 0
        %3326 = vmatprep.subr.bf16.mxu0 0
        %3327 = vmatpush1.bf16.xpose.msra.mxu0 %v3310
        %3328 = vmatprep.subr.bf16.mxu0 0
        %3329 = vmatpush2.bf16.xpose.msra.mxu0 0
        %3330 = vmatprep.subr.bf16.mxu0 0
        %3331 = vmatpush2.bf16.xpose.msra.mxu0 0
        %3332 = vmatprep.subr.bf16.mxu0 0
        %3333 = vmatpush2.bf16.xpose.msra.mxu0 0
        %3334 = vmatprep.subr.bf16.mxu0 0
        %3335 = vmatpush2.bf16.xpose.msra.mxu0 0
        %3336 = vmatprep.subr.bf16.mxu0 0
        %3337 = vmatpush2.bf16.xpose.msra.mxu0 0
        %3338 = vmatprep.subr.bf16.mxu0 0
        %3339 = vmatpush2.bf16.xpose.msra.mxu0 0
        %3340 = vmatprep.subr.bf16.mxu0 0
        %3341 = vmatpush2.bf16.xpose.msra.mxu0 0
        %3342 = vmatprep.subr.bf16.mxu0 0
        %3343 = vmatpush2.bf16.xpose.msra.mxu0 0
        %3344 = vmatprep.mubr.bf16.mxu0 0
        %3345 = vmatmul.mubr.bf16.gmra.mxu0 %v3307
        %v3346 = vpop.f32.mrf.mxu0
        %v3347 = vadd.f32 0.0, %v3346
        %v3348 = vpop.f32.mrf.mxu0
        %v3349 = vpop.f32.mrf.mxu0
        %v3350 = vpop.f32.mrf.mxu0
        %3351 = vdwg.mxu0
        %v3352 = vsel %vm1167, %v3347, -inf
        %3353 = vmax.xlane.f32.xlu0 %v3352
        %v3354 = vpop.xlane.xlu0 %3353
        %v3355 = vsub.f32 %v3347, %v3354
        %v3356 = vmul.f32 %v3355, 1.442695
        %v3357 = vpow.pop %v3356
        %v3358 = vsel %vm1167, %v3357, 0.0
        %3359 = vadd.xlane.f32.xlu0 %v3358
        %v3360 = vpop.xlane.xlu0 %3359
        %v3361 = vpack.c.bf16 %v3357, %v3357
        %3362 = vrot.lane.b32.xlu0 %v3192, 88
        %v3363 = vpop.permute.xlu0 %3362
        %v3365 = vsel %vm1167, %v3361, 0
        %v3368 = vsel %vm1388, %v3363, 0
        %3370 = vmatprep.subr.bf16.mxu0 0
        %3371 = vmatpush1.bf16.msra.mxu0 0
        %3372 = vmatprep.subr.bf16.mxu0 0
        %3373 = vmatpush1.bf16.msra.mxu0 0
        %3374 = vmatprep.subr.bf16.mxu0 0
        %3375 = vmatpush1.bf16.msra.mxu0 0
        %3376 = vmatprep.subr.bf16.mxu0 0
        %3377 = vmatpush1.bf16.msra.mxu0 0
        %3378 = vmatprep.subr.bf16.mxu0 0
        %3379 = vmatpush1.bf16.msra.mxu0 0
        %3380 = vmatprep.subr.bf16.mxu0 0
        %3381 = vmatpush1.bf16.msra.mxu0 0
        %3382 = vmatprep.subr.bf16.mxu0 0
        %3383 = vmatpush1.bf16.msra.mxu0 0
        %3384 = vmatprep.subr.bf16.mxu0 0
        %3385 = vmatpush1.bf16.msra.mxu0 %v3368
        %3386 = vmatprep.subr.bf16.mxu0 0
        %3387 = vmatpush2.bf16.msra.mxu0 0
        %3388 = vmatprep.subr.bf16.mxu0 0
        %3389 = vmatpush2.bf16.msra.mxu0 0
        %3390 = vmatprep.subr.bf16.mxu0 0
        %3391 = vmatpush2.bf16.msra.mxu0 0
        %3392 = vmatprep.subr.bf16.mxu0 0
        %3393 = vmatpush2.bf16.msra.mxu0 0
        %3394 = vmatprep.subr.bf16.mxu0 0
        %3395 = vmatpush2.bf16.msra.mxu0 0
        %3396 = vmatprep.subr.bf16.mxu0 0
        %3397 = vmatpush2.bf16.msra.mxu0 0
        %3398 = vmatprep.subr.bf16.mxu0 0
        %3399 = vmatpush2.bf16.msra.mxu0 0
        %3400 = vmatprep.subr.bf16.mxu0 0
        %3401 = vmatpush2.bf16.msra.mxu0 0
        %3402 = vmatprep.mubr.bf16.mxu0 0
        %3403 = vmatmul.mubr.bf16.gmra.mxu0 %v3365
        %v3404 = vpop.f32.mrf.mxu0
        %v3405 = vadd.f32 0.0, %v3404
        %v3406 = vpop.f32.mrf.mxu0
        %v3407 = vpop.f32.mrf.mxu0
        %v3408 = vpop.f32.mrf.mxu0
        %3409 = vdwg.mxu0
        %v3410 = vrcp.pop %v3360
        %v3411 = vmul.f32 %v3405, %v3410
        %v3412 = vpack.c.bf16 %v3411, %v3411
        %v3414 = vsel %vm1167, %v3412, 0
        %v3417 = vsel %vm1388, %v3078, 0
        %3419 = vmatprep.subr.bf16.mxu0 0
        %3420 = vmatpush1.bf16.msra.mxu0 0
        %3421 = vmatprep.subr.bf16.mxu0 0
        %3422 = vmatpush1.bf16.msra.mxu0 0
        %3423 = vmatprep.subr.bf16.mxu0 0
        %3424 = vmatpush1.bf16.msra.mxu0 0
        %3425 = vmatprep.subr.bf16.mxu0 0
        %3426 = vmatpush1.bf16.msra.mxu0 0
        %3427 = vmatprep.subr.bf16.mxu0 0
        %3428 = vmatpush1.bf16.msra.mxu0 0
        %3429 = vmatprep.subr.bf16.mxu0 0
        %3430 = vmatpush1.bf16.msra.mxu0 0
        %3431 = vmatprep.subr.bf16.mxu0 0
        %3432 = vmatpush1.bf16.msra.mxu0 0
        %3433 = vmatprep.subr.bf16.mxu0 0
        %3434 = vmatpush1.bf16.msra.mxu0 %v3417
        %3435 = vmatprep.subr.bf16.mxu0 0
        %3436 = vmatpush2.bf16.msra.mxu0 0
        %3437 = vmatprep.subr.bf16.mxu0 0
        %3438 = vmatpush2.bf16.msra.mxu0 0
        %3439 = vmatprep.subr.bf16.mxu0 0
        %3440 = vmatpush2.bf16.msra.mxu0 0
        %3441 = vmatprep.subr.bf16.mxu0 0
        %3442 = vmatpush2.bf16.msra.mxu0 0
        %3443 = vmatprep.subr.bf16.mxu0 0
        %3444 = vmatpush2.bf16.msra.mxu0 0
        %3445 = vmatprep.subr.bf16.mxu0 0
        %3446 = vmatpush2.bf16.msra.mxu0 0
        %3447 = vmatprep.subr.bf16.mxu0 0
        %3448 = vmatpush2.bf16.msra.mxu0 0
        %3449 = vmatprep.subr.bf16.mxu0 0
        %3450 = vmatpush2.bf16.msra.mxu0 0
        %3451 = vmatprep.mubr.bf16.mxu0 0
        %3452 = vmatmul.mubr.bf16.gmra.mxu0 %v3414
        %v3453 = vpop.f32.mrf.mxu0
        %v3454 = vadd.f32 0.0, %v3453
        %v3455 = vpop.f32.mrf.mxu0
        %v3456 = vpop.f32.mrf.mxu0
        %v3457 = vpop.f32.mrf.mxu0
        %3458 = vdwg.mxu0
        %v3460 = vsel %vm1167, %v3300, 0
        %v3463 = vsel %vm1388, %v3077, 0
        %3465 = vmatprep.subr.bf16.mxu0 0
        %3466 = vmatpush1.bf16.msra.mxu0 0
        %3467 = vmatprep.subr.bf16.mxu0 0
        %3468 = vmatpush1.bf16.msra.mxu0 0
        %3469 = vmatprep.subr.bf16.mxu0 0
        %3470 = vmatpush1.bf16.msra.mxu0 0
        %3471 = vmatprep.subr.bf16.mxu0 0
        %3472 = vmatpush1.bf16.msra.mxu0 0
        %3473 = vmatprep.subr.bf16.mxu0 0
        %3474 = vmatpush1.bf16.msra.mxu0 0
        %3475 = vmatprep.subr.bf16.mxu0 0
        %3476 = vmatpush1.bf16.msra.mxu0 0
        %3477 = vmatprep.subr.bf16.mxu0 0
        %3478 = vmatpush1.bf16.msra.mxu0 0
        %3479 = vmatprep.subr.bf16.mxu0 0
        %3480 = vmatpush1.bf16.msra.mxu0 %v3463
        %3481 = vmatprep.subr.bf16.mxu0 0
        %3482 = vmatpush2.bf16.msra.mxu0 0
        %3483 = vmatprep.subr.bf16.mxu0 0
        %3484 = vmatpush2.bf16.msra.mxu0 0
        %3485 = vmatprep.subr.bf16.mxu0 0
        %3486 = vmatpush2.bf16.msra.mxu0 0
        %3487 = vmatprep.subr.bf16.mxu0 0
        %3488 = vmatpush2.bf16.msra.mxu0 0
        %3489 = vmatprep.subr.bf16.mxu0 0
        %3490 = vmatpush2.bf16.msra.mxu0 0
        %3491 = vmatprep.subr.bf16.mxu0 0
        %3492 = vmatpush2.bf16.msra.mxu0 0
        %3493 = vmatprep.subr.bf16.mxu0 0
        %3494 = vmatpush2.bf16.msra.mxu0 0
        %3495 = vmatprep.subr.bf16.mxu0 0
        %3496 = vmatpush2.bf16.msra.mxu0 0
        %3497 = vmatprep.mubr.bf16.mxu0 0
        %3498 = vmatmul.mubr.bf16.gmra.mxu0 %v3460
        %v3499 = vpop.f32.mrf.mxu0
        %v3500 = vadd.f32 %v3454, %v3499
        %v3501 = vpop.f32.mrf.mxu0
        %v3502 = vpop.f32.mrf.mxu0
        %v3503 = vpop.f32.mrf.mxu0
        %3504 = vdwg.mxu0
        %3505 = vrot.lane.b32.xlu0 %v3191, 112
        %v3506 = vpop.permute.xlu0 %3505
        %3507 = vrot.lane.b32.xlu0 %v3192, 112
        %v3508 = vpop.permute.xlu0 %3507
        %v3510 = vsel %vm1167, %v3506, 0
        %v3513 = vsel %vm1167, %v3508, 0
        %3515 = vmatprep.subr.bf16.mxu0 0
        %3516 = vmatpush1.bf16.xpose.msra.mxu0 0
        %3517 = vmatprep.subr.bf16.mxu0 0
        %3518 = vmatpush1.bf16.xpose.msra.mxu0 0
        %3519 = vmatprep.subr.bf16.mxu0 0
        %3520 = vmatpush1.bf16.xpose.msra.mxu0 0
        %3521 = vmatprep.subr.bf16.mxu0 0
        %3522 = vmatpush1.bf16.xpose.msra.mxu0 0
        %3523 = vmatprep.subr.bf16.mxu0 0
        %3524 = vmatpush1.bf16.xpose.msra.mxu0 0
        %3525 = vmatprep.subr.bf16.mxu0 0
        %3526 = vmatpush1.bf16.xpose.msra.mxu0 0
        %3527 = vmatprep.subr.bf16.mxu0 0
        %3528 = vmatpush1.bf16.xpose.msra.mxu0 0
        %3529 = vmatprep.subr.bf16.mxu0 0
        %3530 = vmatpush1.bf16.xpose.msra.mxu0 %v3513
        %3531 = vmatprep.subr.bf16.mxu0 0
        %3532 = vmatpush2.bf16.xpose.msra.mxu0 0
        %3533 = vmatprep.subr.bf16.mxu0 0
        %3534 = vmatpush2.bf16.xpose.msra.mxu0 0
        %3535 = vmatprep.subr.bf16.mxu0 0
        %3536 = vmatpush2.bf16.xpose.msra.mxu0 0
        %3537 = vmatprep.subr.bf16.mxu0 0
        %3538 = vmatpush2.bf16.xpose.msra.mxu0 0
        %3539 = vmatprep.subr.bf16.mxu0 0
        %3540 = vmatpush2.bf16.xpose.msra.mxu0 0
        %3541 = vmatprep.subr.bf16.mxu0 0
        %3542 = vmatpush2.bf16.xpose.msra.mxu0 0
        %3543 = vmatprep.subr.bf16.mxu0 0
        %3544 = vmatpush2.bf16.xpose.msra.mxu0 0
        %3545 = vmatprep.subr.bf16.mxu0 0
        %3546 = vmatpush2.bf16.xpose.msra.mxu0 0
        %3547 = vmatprep.mubr.bf16.mxu0 0
        %3548 = vmatmul.mubr.bf16.gmra.mxu0 %v3510
        %v3549 = vpop.f32.mrf.mxu0
        %v3550 = vadd.f32 0.0, %v3549
        %v3551 = vpop.f32.mrf.mxu0
        %v3552 = vpop.f32.mrf.mxu0
        %v3553 = vpop.f32.mrf.mxu0
        %3554 = vdwg.mxu0
        %v3555 = vsel %vm1167, %v3550, -inf
        %3556 = vmax.xlane.f32.xlu0 %v3555
        %v3557 = vpop.xlane.xlu0 %3556
        %v3558 = vsub.f32 %v3550, %v3557
        %v3559 = vmul.f32 %v3558, 1.442695
        %v3560 = vpow.pop %v3559
        %v3561 = vsel %vm1167, %v3560, 0.0
        %3562 = vadd.xlane.f32.xlu0 %v3561
        %v3563 = vpop.xlane.xlu0 %3562
        %v3564 = vpack.c.bf16 %v3560, %v3560
        %3565 = vrot.lane.b32.xlu0 %v3192, 80
        %v3566 = vpop.permute.xlu0 %3565
        %v3568 = vsel %vm1167, %v3564, 0
        %v3571 = vsel %vm1388, %v3566, 0
        %3573 = vmatprep.subr.bf16.mxu0 0
        %3574 = vmatpush1.bf16.msra.mxu0 0
        %3575 = vmatprep.subr.bf16.mxu0 0
        %3576 = vmatpush1.bf16.msra.mxu0 0
        %3577 = vmatprep.subr.bf16.mxu0 0
        %3578 = vmatpush1.bf16.msra.mxu0 0
        %3579 = vmatprep.subr.bf16.mxu0 0
        %3580 = vmatpush1.bf16.msra.mxu0 0
        %3581 = vmatprep.subr.bf16.mxu0 0
        %3582 = vmatpush1.bf16.msra.mxu0 0
        %3583 = vmatprep.subr.bf16.mxu0 0
        %3584 = vmatpush1.bf16.msra.mxu0 0
        %3585 = vmatprep.subr.bf16.mxu0 0
        %3586 = vmatpush1.bf16.msra.mxu0 0
        %3587 = vmatprep.subr.bf16.mxu0 0
        %3588 = vmatpush1.bf16.msra.mxu0 %v3571
        %3589 = vmatprep.subr.bf16.mxu0 0
        %3590 = vmatpush2.bf16.msra.mxu0 0
        %3591 = vmatprep.subr.bf16.mxu0 0
        %3592 = vmatpush2.bf16.msra.mxu0 0
        %3593 = vmatprep.subr.bf16.mxu0 0
        %3594 = vmatpush2.bf16.msra.mxu0 0
        %3595 = vmatprep.subr.bf16.mxu0 0
        %3596 = vmatpush2.bf16.msra.mxu0 0
        %3597 = vmatprep.subr.bf16.mxu0 0
        %3598 = vmatpush2.bf16.msra.mxu0 0
        %3599 = vmatprep.subr.bf16.mxu0 0
        %3600 = vmatpush2.bf16.msra.mxu0 0
        %3601 = vmatprep.subr.bf16.mxu0 0
        %3602 = vmatpush2.bf16.msra.mxu0 0
        %3603 = vmatprep.subr.bf16.mxu0 0
        %3604 = vmatpush2.bf16.msra.mxu0 0
        %3605 = vmatprep.mubr.bf16.mxu0 0
        %3606 = vmatmul.mubr.bf16.gmra.mxu0 %v3568
        %v3607 = vpop.f32.mrf.mxu0
        %v3608 = vadd.f32 0.0, %v3607
        %v3609 = vpop.f32.mrf.mxu0
        %v3610 = vpop.f32.mrf.mxu0
        %v3611 = vpop.f32.mrf.mxu0
        %3612 = vdwg.mxu0
        %v3613 = vrcp.pop %v3563
        %v3614 = vmul.f32 %v3608, %v3613
        %v3615 = vpack.c.bf16 %v3614, %v3614
        %v3617 = vsel %vm1167, %v3615, 0
        %v3620 = vsel %vm1388, %v3079, 0
        %3622 = vmatprep.subr.bf16.mxu0 0
        %3623 = vmatpush1.bf16.msra.mxu0 0
        %3624 = vmatprep.subr.bf16.mxu0 0
        %3625 = vmatpush1.bf16.msra.mxu0 0
        %3626 = vmatprep.subr.bf16.mxu0 0
        %3627 = vmatpush1.bf16.msra.mxu0 0
        %3628 = vmatprep.subr.bf16.mxu0 0
        %3629 = vmatpush1.bf16.msra.mxu0 0
        %3630 = vmatprep.subr.bf16.mxu0 0
        %3631 = vmatpush1.bf16.msra.mxu0 0
        %3632 = vmatprep.subr.bf16.mxu0 0
        %3633 = vmatpush1.bf16.msra.mxu0 0
        %3634 = vmatprep.subr.bf16.mxu0 0
        %3635 = vmatpush1.bf16.msra.mxu0 0
        %3636 = vmatprep.subr.bf16.mxu0 0
        %3637 = vmatpush1.bf16.msra.mxu0 %v3620
        %3638 = vmatprep.subr.bf16.mxu0 0
        %3639 = vmatpush2.bf16.msra.mxu0 0
        %3640 = vmatprep.subr.bf16.mxu0 0
        %3641 = vmatpush2.bf16.msra.mxu0 0
        %3642 = vmatprep.subr.bf16.mxu0 0
        %3643 = vmatpush2.bf16.msra.mxu0 0
        %3644 = vmatprep.subr.bf16.mxu0 0
        %3645 = vmatpush2.bf16.msra.mxu0 0
        %3646 = vmatprep.subr.bf16.mxu0 0
        %3647 = vmatpush2.bf16.msra.mxu0 0
        %3648 = vmatprep.subr.bf16.mxu0 0
        %3649 = vmatpush2.bf16.msra.mxu0 0
        %3650 = vmatprep.subr.bf16.mxu0 0
        %3651 = vmatpush2.bf16.msra.mxu0 0
        %3652 = vmatprep.subr.bf16.mxu0 0
        %3653 = vmatpush2.bf16.msra.mxu0 0
        %3654 = vmatprep.mubr.bf16.mxu0 0
        %3655 = vmatmul.mubr.bf16.gmra.mxu0 %v3617
        %v3656 = vpop.f32.mrf.mxu0
        %v3657 = vadd.f32 0.0, %v3656
        %v3658 = vpop.f32.mrf.mxu0
        %v3659 = vpop.f32.mrf.mxu0
        %v3660 = vpop.f32.mrf.mxu0
        %3661 = vdwg.mxu0
        %v3662 = vadd.f32 %v3500, %v3657
        %3663 = vrot.lane.b32.xlu0 %v3191, 104
        %v3664 = vpop.permute.xlu0 %3663
        %3665 = vrot.lane.b32.xlu0 %v3192, 104
        %v3666 = vpop.permute.xlu0 %3665
        %v3668 = vsel %vm1167, %v3664, 0
        %v3671 = vsel %vm1167, %v3666, 0
        %3673 = vmatprep.subr.bf16.mxu0 0
        %3674 = vmatpush1.bf16.xpose.msra.mxu0 0
        %3675 = vmatprep.subr.bf16.mxu0 0
        %3676 = vmatpush1.bf16.xpose.msra.mxu0 0
        %3677 = vmatprep.subr.bf16.mxu0 0
        %3678 = vmatpush1.bf16.xpose.msra.mxu0 0
        %3679 = vmatprep.subr.bf16.mxu0 0
        %3680 = vmatpush1.bf16.xpose.msra.mxu0 0
        %3681 = vmatprep.subr.bf16.mxu0 0
        %3682 = vmatpush1.bf16.xpose.msra.mxu0 0
        %3683 = vmatprep.subr.bf16.mxu0 0
        %3684 = vmatpush1.bf16.xpose.msra.mxu0 0
        %3685 = vmatprep.subr.bf16.mxu0 0
        %3686 = vmatpush1.bf16.xpose.msra.mxu0 0
        %3687 = vmatprep.subr.bf16.mxu0 0
        %3688 = vmatpush1.bf16.xpose.msra.mxu0 %v3671
        %3689 = vmatprep.subr.bf16.mxu0 0
        %3690 = vmatpush2.bf16.xpose.msra.mxu0 0
        %3691 = vmatprep.subr.bf16.mxu0 0
        %3692 = vmatpush2.bf16.xpose.msra.mxu0 0
        %3693 = vmatprep.subr.bf16.mxu0 0
        %3694 = vmatpush2.bf16.xpose.msra.mxu0 0
        %3695 = vmatprep.subr.bf16.mxu0 0
        %3696 = vmatpush2.bf16.xpose.msra.mxu0 0
        %3697 = vmatprep.subr.bf16.mxu0 0
        %3698 = vmatpush2.bf16.xpose.msra.mxu0 0
        %3699 = vmatprep.subr.bf16.mxu0 0
        %3700 = vmatpush2.bf16.xpose.msra.mxu0 0
        %3701 = vmatprep.subr.bf16.mxu0 0
        %3702 = vmatpush2.bf16.xpose.msra.mxu0 0
        %3703 = vmatprep.subr.bf16.mxu0 0
        %3704 = vmatpush2.bf16.xpose.msra.mxu0 0
        %3705 = vmatprep.mubr.bf16.mxu0 0
        %3706 = vmatmul.mubr.bf16.gmra.mxu0 %v3668
        %v3707 = vpop.f32.mrf.mxu0
        %v3708 = vadd.f32 0.0, %v3707
        %v3709 = vpop.f32.mrf.mxu0
        %v3710 = vpop.f32.mrf.mxu0
        %v3711 = vpop.f32.mrf.mxu0
        %3712 = vdwg.mxu0
        %v3713 = vsel %vm1167, %v3708, -inf
        %3714 = vmax.xlane.f32.xlu0 %v3713
        %v3715 = vpop.xlane.xlu0 %3714
        %v3716 = vsub.f32 %v3708, %v3715
        %v3717 = vmul.f32 %v3716, 1.442695
        %v3718 = vpow.pop %v3717
        %v3719 = vsel %vm1167, %v3718, 0.0
        %3720 = vadd.xlane.f32.xlu0 %v3719
        %v3721 = vpop.xlane.xlu0 %3720
        %v3722 = vpack.c.bf16 %v3718, %v3718
        %3723 = vrot.lane.b32.xlu0 %v3192, 72
        %v3724 = vpop.permute.xlu0 %3723
        %v3726 = vsel %vm1167, %v3722, 0
        %v3729 = vsel %vm1388, %v3724, 0
        %3731 = vmatprep.subr.bf16.mxu0 0
        %3732 = vmatpush1.bf16.msra.mxu0 0
        %3733 = vmatprep.subr.bf16.mxu0 0
        %3734 = vmatpush1.bf16.msra.mxu0 0
        %3735 = vmatprep.subr.bf16.mxu0 0
        %3736 = vmatpush1.bf16.msra.mxu0 0
        %3737 = vmatprep.subr.bf16.mxu0 0
        %3738 = vmatpush1.bf16.msra.mxu0 0
        %3739 = vmatprep.subr.bf16.mxu0 0
        %3740 = vmatpush1.bf16.msra.mxu0 0
        %3741 = vmatprep.subr.bf16.mxu0 0
        %3742 = vmatpush1.bf16.msra.mxu0 0
        %3743 = vmatprep.subr.bf16.mxu0 0
        %3744 = vmatpush1.bf16.msra.mxu0 0
        %3745 = vmatprep.subr.bf16.mxu0 0
        %3746 = vmatpush1.bf16.msra.mxu0 %v3729
        %3747 = vmatprep.subr.bf16.mxu0 0
        %3748 = vmatpush2.bf16.msra.mxu0 0
        %3749 = vmatprep.subr.bf16.mxu0 0
        %3750 = vmatpush2.bf16.msra.mxu0 0
        %3751 = vmatprep.subr.bf16.mxu0 0
        %3752 = vmatpush2.bf16.msra.mxu0 0
        %3753 = vmatprep.subr.bf16.mxu0 0
        %3754 = vmatpush2.bf16.msra.mxu0 0
        %3755 = vmatprep.subr.bf16.mxu0 0
        %3756 = vmatpush2.bf16.msra.mxu0 0
        %3757 = vmatprep.subr.bf16.mxu0 0
        %3758 = vmatpush2.bf16.msra.mxu0 0
        %3759 = vmatprep.subr.bf16.mxu0 0
        %3760 = vmatpush2.bf16.msra.mxu0 0
        %3761 = vmatprep.subr.bf16.mxu0 0
        %3762 = vmatpush2.bf16.msra.mxu0 0
        %3763 = vmatprep.mubr.bf16.mxu0 0
        %3764 = vmatmul.mubr.bf16.gmra.mxu0 %v3726
        %v3765 = vpop.f32.mrf.mxu0
        %v3766 = vadd.f32 0.0, %v3765
        %v3767 = vpop.f32.mrf.mxu0
        %v3768 = vpop.f32.mrf.mxu0
        %v3769 = vpop.f32.mrf.mxu0
        %3770 = vdwg.mxu0
        %v3771 = vrcp.pop %v3721
        %v3772 = vmul.f32 %v3766, %v3771
        %v3773 = vpack.c.bf16 %v3772, %v3772
        %v3775 = vsel %vm1167, %v3773, 0
        %v3778 = vsel %vm1388, %v3080, 0
        %3780 = vmatprep.subr.bf16.mxu0 0
        %3781 = vmatpush1.bf16.msra.mxu0 0
        %3782 = vmatprep.subr.bf16.mxu0 0
        %3783 = vmatpush1.bf16.msra.mxu0 0
        %3784 = vmatprep.subr.bf16.mxu0 0
        %3785 = vmatpush1.bf16.msra.mxu0 0
        %3786 = vmatprep.subr.bf16.mxu0 0
        %3787 = vmatpush1.bf16.msra.mxu0 0
        %3788 = vmatprep.subr.bf16.mxu0 0
        %3789 = vmatpush1.bf16.msra.mxu0 0
        %3790 = vmatprep.subr.bf16.mxu0 0
        %3791 = vmatpush1.bf16.msra.mxu0 0
        %3792 = vmatprep.subr.bf16.mxu0 0
        %3793 = vmatpush1.bf16.msra.mxu0 0
        %3794 = vmatprep.subr.bf16.mxu0 0
        %3795 = vmatpush1.bf16.msra.mxu0 %v3778
        %3796 = vmatprep.subr.bf16.mxu0 0
        %3797 = vmatpush2.bf16.msra.mxu0 0
        %3798 = vmatprep.subr.bf16.mxu0 0
        %3799 = vmatpush2.bf16.msra.mxu0 0
        %3800 = vmatprep.subr.bf16.mxu0 0
        %3801 = vmatpush2.bf16.msra.mxu0 0
        %3802 = vmatprep.subr.bf16.mxu0 0
        %3803 = vmatpush2.bf16.msra.mxu0 0
        %3804 = vmatprep.subr.bf16.mxu0 0
        %3805 = vmatpush2.bf16.msra.mxu0 0
        %3806 = vmatprep.subr.bf16.mxu0 0
        %3807 = vmatpush2.bf16.msra.mxu0 0
        %3808 = vmatprep.subr.bf16.mxu0 0
        %3809 = vmatpush2.bf16.msra.mxu0 0
        %3810 = vmatprep.subr.bf16.mxu0 0
        %3811 = vmatpush2.bf16.msra.mxu0 0
        %3812 = vmatprep.mubr.bf16.mxu0 0
        %3813 = vmatmul.mubr.bf16.gmra.mxu0 %v3775
        %v3814 = vpop.f32.mrf.mxu0
        %v3815 = vadd.f32 0.0, %v3814
        %v3816 = vpop.f32.mrf.mxu0
        %v3817 = vpop.f32.mrf.mxu0
        %v3818 = vpop.f32.mrf.mxu0
        %3819 = vdwg.mxu0
        %v3820 = vadd.f32 %v3662, %v3815
        %v3822 = vlaneseq
        %v3823 = vshrl.u32 %v3822, 7
        %v3824 = vsub.s32 0, %v3823
        %v3825 = vrot.slane %v3082, %v3824
        %v3827 = vadd.f32 %v3820, %v3825
        %v3828 = vadd.f32 %v3040, %v3827
        %v3829 = vsel %vm976, %v3828, 0.0
        %3830 = vadd.xlane.f32.xlu0 %v3829
        %v3831 = vpop.xlane.xlu0 %3830
        %v3832 = vmul.f32 %v3831, %v980
        %v3833 = vsub.f32 %v3828, %v3832
        %v3834 = vmul.f32 %v3833, %v3833
        %v3835 = vsel %vm976, %v3834, 0.0
        %3836 = vadd.xlane.f32.xlu0 %v3835
        %v3837 = vpop.xlane.xlu0 %3836
        %v3838 = vmul.f32 %v3837, %v980
        %v3839 = vadd.f32 %v3838, 1e-05
        %v3840 = vrsqrt.pop %v3839
        %v3841 = vmul.f32 %v3833, %v3840
        %v3842 = vlaneseq
        %v3843 = vshrl.u32 %v3842, 7
        %v3844 = vsub.s32 2, %v3843
        %v3845 = vrot.slane %v3042, %v3844
        %v3846 = vmul.f32 %v3841, %v3845
        %v3847 = vlaneseq
        %v3848 = vshrl.u32 %v3847, 7
        %v3849 = vsub.s32 3, %v3848
        %v3850 = vrot.slane %v3042, %v3849
        %v3851 = vadd.f32 %v3846, %v3850
        %s3852 = scalar_lea.vmem %s20, 16
        %v3853 = vld [vmem:[%s3852] sm:$0xf]
        %v3854 = vld [vmem:[%s3852 + $0x4] sm:$0xf]
        %v3855 = vld [vmem:[%s3852 + $0x8] sm:$0xf]
        %v3856 = vld [vmem:[%s3852 + $0xc] sm:$0xf]
        %s3857 = scalar_lea.vmem %s21, 1
        %v3858 = vld [vmem:[%s3857] sm:$0x1]
        %s3859 = scalar_lea.vmem %s22, 64
        %v3860 = vld [vmem:[%s3859] sm:$0xf]
        %v3861 = vld [vmem:[%s3859 + $0x4] sm:$0xf]
        %v3862 = vld [vmem:[%s3859 + $0x8] sm:$0xf]
        %v3863 = vld [vmem:[%s3859 + $0xc] sm:$0xf]
        %v3864 = vld [vmem:[%s3859 + $0x10] sm:$0xf]
        %v3865 = vld [vmem:[%s3859 + $0x14] sm:$0xf]
        %v3866 = vld [vmem:[%s3859 + $0x18] sm:$0xf]
        %v3867 = vld [vmem:[%s3859 + $0x1c] sm:$0xf]
        %v3868 = vld [vmem:[%s3859 + $0x20] sm:$0xf]
        %v3869 = vld [vmem:[%s3859 + $0x24] sm:$0xf]
        %v3870 = vld [vmem:[%s3859 + $0x28] sm:$0xf]
        %v3871 = vld [vmem:[%s3859 + $0x2c] sm:$0xf]
        %v3872 = vld [vmem:[%s3859 + $0x30] sm:$0xf]
        %v3873 = vld [vmem:[%s3859 + $0x34] sm:$0xf]
        %v3874 = vld [vmem:[%s3859 + $0x38] sm:$0xf]
        %v3875 = vld [vmem:[%s3859 + $0x3c] sm:$0xf]
        %s3876 = scalar_lea.vmem %s23, 1
        %v3877 = vld [vmem:[%s3876] sm:$0x1]
        %v3878 = vpack.c.bf16 %v3851, %v3851
        %v3880 = vlaneseq
        %v3881 = vshrl.u32 %v3880, 7
        %v3882 = vsub.s32 0, %v3881
        %v3883 = vrot.slane %v3858, %v3882
        %v3889 = vunpack.c.l.b16 %v3853
        %v3890 = vunpack.c.l.b16 %v3854
        %v3891 = vunpack.c.l.b16 %v3855
        %v3892 = vunpack.c.l.b16 %v3856
        %v3893 = vpack.c.b16 %v3890, %v3889
        %v3894 = vpack.c.b16 %v3892, %v3891
        %v3898 = vsel %vm976, %v3878, 0
        %3900 = vmatprep.subr.bf16.mxu0 0
        %3901 = vmatpush1.bf16.msra.mxu0 0
        %3902 = vmatprep.subr.bf16.mxu0 0
        %3903 = vmatpush1.bf16.msra.mxu0 0
        %3904 = vmatprep.subr.bf16.mxu0 0
        %3905 = vmatpush1.bf16.msra.mxu0 0
        %3906 = vmatprep.subr.bf16.mxu0 0
        %3907 = vmatpush1.bf16.msra.mxu0 0
        %3908 = vmatprep.subr.bf16.mxu0 0
        %3909 = vmatpush1.bf16.msra.mxu0 0
        %3910 = vmatprep.subr.bf16.mxu0 0
        %3911 = vmatpush1.bf16.msra.mxu0 0
        %3912 = vmatprep.subr.bf16.mxu0 0
        %3913 = vmatpush1.bf16.msra.mxu0 %v3894
        %3914 = vmatprep.subr.bf16.mxu0 0
        %3915 = vmatpush1.bf16.msra.mxu0 %v3893
        %3916 = vmatprep.subr.bf16.mxu0 0
        %3917 = vmatpush2.bf16.msra.mxu0 0
        %3918 = vmatprep.subr.bf16.mxu0 0
        %3919 = vmatpush2.bf16.msra.mxu0 0
        %3920 = vmatprep.subr.bf16.mxu0 0
        %3921 = vmatpush2.bf16.msra.mxu0 0
        %3922 = vmatprep.subr.bf16.mxu0 0
        %3923 = vmatpush2.bf16.msra.mxu0 0
        %3924 = vmatprep.subr.bf16.mxu0 0
        %3925 = vmatpush2.bf16.msra.mxu0 0
        %3926 = vmatprep.subr.bf16.mxu0 0
        %3927 = vmatpush2.bf16.msra.mxu0 0
        %3928 = vmatprep.subr.bf16.mxu0 0
        %3929 = vmatpush2.bf16.msra.mxu0 0
        %3930 = vmatprep.subr.bf16.mxu0 0
        %3931 = vmatpush2.bf16.msra.mxu0 0
        %3932 = vmatprep.mubr.bf16.mxu0 0
        %3933 = vmatmul.mubr.bf16.gmra.mxu0 %v3898
        %v3934 = vpop.f32.mrf.mxu0
        %v3935 = vadd.f32 %v3883, %v3934
        %v3936 = vpop.f32.mrf.mxu0
        %v3937 = vpop.f32.mrf.mxu0
        %v3938 = vpop.f32.mrf.mxu0
        %3939 = vdwg.mxu0
        %v3940 = vmul.f32 %v3935, 0.5
        %v3941 = vmul.f32 %v3935, 0.70710677
        %vm3942 = vcmp.ge.f32.partialorder %v3941, 0.0
        %v3943 = vsel %vm3942, 1.0, -1.0
        %v3944 = vand.u32 2147483647, %v3941
        %v3945 = vmul.f32 %v3944, 0.3275911
        %v3946 = vadd.f32 %v3945, 1.0
        %v3947 = vrcp.pop %v3946
        %v3948 = vmul.f32 1.0, %v3947
        %v3949 = vmul.f32 %v3948, 1.0614054
        %v3950 = vadd.f32 %v3949, -1.4531521
        %v3951 = vmul.f32 %v3950, %v3948
        %v3952 = vadd.f32 %v3951, 1.4214138
        %v3953 = vmul.f32 %v3952, %v3948
        %v3954 = vadd.f32 %v3953, -0.28449672
        %v3955 = vmul.f32 %v3954, %v3948
        %v3956 = vadd.f32 %v3955, 0.2548296
        %v3957 = vmul.f32 %v3956, %v3948
        %v3958 = vsub.f32 0.0, %v3944
        %v3959 = vmul.f32 %v3958, %v3944
        %v3960 = vmul.f32 %v3959, 1.442695
        %v3961 = vpow.pop %v3960
        %v3962 = vmul.f32 %v3957, %v3961
        %v3963 = vsub.f32 1.0, %v3962
        %v3964 = vmul.f32 %v3943, %v3963
        %v3965 = vadd.f32 %v3964, 1.0
        %v3966 = vmul.f32 %v3940, %v3965
        %v3967 = vpack.c.bf16 %v3966, %v3966
        %v3969 = vlaneseq
        %v3970 = vshrl.u32 %v3969, 7
        %v3971 = vsub.s32 0, %v3970
        %v3972 = vrot.slane %v3877, %v3971
        %v3990 = vunpack.c.l.b16 %v3860
        %v3991 = vunpack.c.l.b16 %v3861
        %v3992 = vunpack.c.l.b16 %v3862
        %v3993 = vunpack.c.l.b16 %v3863
        %v3994 = vunpack.c.l.b16 %v3864
        %v3995 = vunpack.c.l.b16 %v3865
        %v3996 = vunpack.c.l.b16 %v3866
        %v3997 = vunpack.c.l.b16 %v3867
        %v3998 = vunpack.c.l.b16 %v3868
        %v3999 = vunpack.c.l.b16 %v3869
        %v4000 = vunpack.c.l.b16 %v3870
        %v4001 = vunpack.c.l.b16 %v3871
        %v4002 = vunpack.c.l.b16 %v3872
        %v4003 = vunpack.c.l.b16 %v3873
        %v4004 = vunpack.c.l.b16 %v3874
        %v4005 = vunpack.c.l.b16 %v3875
        %v4006 = vpack.c.b16 %v3991, %v3990
        %v4007 = vpack.c.b16 %v3993, %v3992
        %v4008 = vpack.c.b16 %v3995, %v3994
        %v4009 = vpack.c.b16 %v3997, %v3996
        %v4010 = vpack.c.b16 %v3999, %v3998
        %v4011 = vpack.c.b16 %v4001, %v4000
        %v4012 = vpack.c.b16 %v4003, %v4002
        %v4013 = vpack.c.b16 %v4005, %v4004
        %4022 = vmatprep.subr.bf16.mxu0 0
        %4023 = vmatpush1.bf16.msra.mxu0 %v4013
        %4024 = vmatprep.subr.bf16.mxu0 0
        %4025 = vmatpush1.bf16.msra.mxu0 %v4012
        %4026 = vmatprep.subr.bf16.mxu0 0
        %4027 = vmatpush1.bf16.msra.mxu0 %v4011
        %4028 = vmatprep.subr.bf16.mxu0 0
        %4029 = vmatpush1.bf16.msra.mxu0 %v4010
        %4030 = vmatprep.subr.bf16.mxu0 0
        %4031 = vmatpush1.bf16.msra.mxu0 %v4009
        %4032 = vmatprep.subr.bf16.mxu0 0
        %4033 = vmatpush1.bf16.msra.mxu0 %v4008
        %4034 = vmatprep.subr.bf16.mxu0 0
        %4035 = vmatpush1.bf16.msra.mxu0 %v4007
        %4036 = vmatprep.subr.bf16.mxu0 0
        %4037 = vmatpush1.bf16.msra.mxu0 %v4006
        %4038 = vmatprep.subr.bf16.mxu0 0
        %4039 = vmatpush2.bf16.msra.mxu0 0
        %4040 = vmatprep.subr.bf16.mxu0 0
        %4041 = vmatpush2.bf16.msra.mxu0 0
        %4042 = vmatprep.subr.bf16.mxu0 0
        %4043 = vmatpush2.bf16.msra.mxu0 0
        %4044 = vmatprep.subr.bf16.mxu0 0
        %4045 = vmatpush2.bf16.msra.mxu0 0
        %4046 = vmatprep.subr.bf16.mxu0 0
        %4047 = vmatpush2.bf16.msra.mxu0 0
        %4048 = vmatprep.subr.bf16.mxu0 0
        %4049 = vmatpush2.bf16.msra.mxu0 0
        %4050 = vmatprep.subr.bf16.mxu0 0
        %4051 = vmatpush2.bf16.msra.mxu0 0
        %4052 = vmatprep.subr.bf16.mxu0 0
        %4053 = vmatpush2.bf16.msra.mxu0 0
        %4054 = vmatprep.mubr.bf16.mxu0 0
        %4055 = vmatmul.mubr.bf16.gmra.mxu0 %v3967
        %v4056 = vpop.f32.mrf.mxu0
        %v4057 = vadd.f32 %v3972, %v4056
        %v4058 = vpop.f32.mrf.mxu0
        %v4059 = vpop.f32.mrf.mxu0
        %v4060 = vpop.f32.mrf.mxu0
        %4061 = vdwg.mxu0
        %v4062 = vadd.f32 %v3828, %v4057
        %v4063 = vld [vmem:[%s24] sm:$0x3]
        %v4064 = vsel %vm976, %v4062, 0.0
        %4065 = vadd.xlane.f32.xlu0 %v4064
        %v4066 = vpop.xlane.xlu0 %4065
        %v4067 = vmul.f32 %v4066, %v980
        %v4068 = vsub.f32 %v4062, %v4067
        %v4069 = vmul.f32 %v4068, %v4068
        %v4070 = vsel %vm976, %v4069, 0.0
        %4071 = vadd.xlane.f32.xlu0 %v4070
        %v4072 = vpop.xlane.xlu0 %4071
        %v4073 = vmul.f32 %v4072, %v980
        %v4074 = vadd.f32 %v4073, 1e-05
        %v4075 = vrsqrt.pop %v4074
        %v4076 = vmul.f32 %v4068, %v4075
        %v4077 = vlaneseq
        %v4078 = vshrl.u32 %v4077, 7
        %v4079 = vsub.s32 0, %v4078
        %v4080 = vrot.slane %v4063, %v4079
        %v4081 = vmul.f32 %v4076, %v4080
        %v4082 = vlaneseq
        %v4083 = vshrl.u32 %v4082, 7
        %v4084 = vsub.s32 1, %v4083
        %v4085 = vrot.slane %v4063, %v4084
        %v4086 = vadd.f32 %v4081, %v4085
        %4087 = vst.msk [vmem:[%s770] sm:$0xff] %vm976, %v4086
        %s4088 = sand.u32 %s582, 1
        %s4089 = scalar_lea.sflag [#allocation3], %s4088
        %s4090 = sand.u32 %s582, 1
        %s4091 = smul.addr %s4090, 8
        %s4092 = scalar_lea.vmem [#allocation2], %s4091
        // Predicated region
        $region121: #{cross_attention_encoder_forward.1} parent=119 // pred_check
          %p4093 = pneg %p592
        $region122: #{cross_attention_encoder_forward.1} parent=119 // pred_check_branch
          %4095 = sbr.rel (%p4093) target = $region124
        $region123: #{cross_attention_encoder_forward.1} parent=119 // pred_region
          %s4097 = ssub.s32 128, 128
          %4098 = vsyncadd %s4089, %s4097
          %s4099 = smul.addr %s39, 128
          %s4100 = scalar_lea.hbm %s25, %s4099
          %s4102 = sshll.u32 %s4092, 4
          %s4103 = int_to_ptr.vmem [resolvable:$true] %s4102
          %4105 = dma.vmem_to_hbm [thread:$0]  %s4103, 128, %s4100, %s4089
        $region124: #{cross_attention_encoder_forward.1} parent=119 // pred_fallthru
          _
      $region120: #{cross_attention_encoder_forward.1} parent=5 // pred_fallthru
        _
      %p4106 = scmp.le.s32.totalorder 2, %s34
      // Predicated region
      $region125: #{cross_attention_encoder_forward.1} parent=5 // pred_check
        %p4107 = pneg %p4106
      $region126: #{cross_attention_encoder_forward.1} parent=5 // pred_check_branch
        %4109 = sbr.rel (%p4107) target = $region128
      $region127: #{cross_attention_encoder_forward.1} parent=5 // pred_region
        %s4110 = ssub.s32 %s34, 2
        // Predicated region
        $region129: #{cross_attention_encoder_forward.1} parent=127 // pred_check
          %p4111 = pneg %p598
        $region130: #{cross_attention_encoder_forward.1} parent=127 // pred_check_branch
          %4113 = sbr.rel (%p4111) target = $region132
        $region131: #{cross_attention_encoder_forward.1} parent=127 // pred_region
          %s4114 = sand.u32 %s583, 1
          %s4115 = scalar_lea.sflag [#allocation3], %s4114
          %s4116 = sand.u32 %s583, 1
          %s4117 = smul.addr %s4116, 8
          %s4118 = scalar_lea.vmem [#allocation2], %s4117
          %4119 = dma.done %s4115, 128
        $region132: #{cross_attention_encoder_forward.1} parent=127 // pred_fallthru
          _
      $region128: #{cross_attention_encoder_forward.1} parent=5 // pred_fallthru
        _
    $region6: #{cross_attention_encoder_forward.1} parent=1 // loop_footer
      %s38 = sadd.s32 1, %s34
    $region7: #{cross_attention_encoder_forward.1} parent=1 // loop_footer_branch
      %33 = sbr.rel target = $region3
    $region8: #{cross_attention_encoder_forward.1} parent=1 // loop_exit
      _
    %4120 = vsyncpa [#allocation3], 1
    %s4121 = scalar_lea.sflag [#allocation3], 1
    %4122 = vsyncpa %s4121, 1

</llo_original>
